<compile_context>
chip_gen: v7x
topology: tpu7x:2x2x1
jax: 0.10.0
libtpu: 0.0.40
codegen_flags: <defaults>
</compile_context>

<pallas_src>
import functools

import jax
import jax.numpy as jnp
from jax import lax
from jax.experimental import pallas as pl
from jax.experimental.pallas import tpu as pltpu


def _round_up(x, m):
    return (x + m - 1) // m * m


# Tiling targets: >=256-row tiles fill the 256-wide MXU on v6e/v7x; 16-step
# time chunks keep the bf16 gx scratch small and double-bufferable.
_ROW_TILE_TARGET = 256
_TIME_CHUNK_TARGET = 16


# ----------------------------------------------------------------------------
# GRU kernel: one (batch-tile, time-chunk) grid step.
# Gate order follows torch.nn.GRU: (r, z, n).
# ----------------------------------------------------------------------------
def _gru_kernel(x_ref, wih_t_ref, whh_t_ref, bih_ref, bhh_ref, out_ref, gx_ref,
                *, t_total, unroll, needs_mask):
    """x_ref:     (Tc, NB, E) bf16 time-major block for this chunk / batch tile.
       wih_t_ref: (E, 3H) bf16.  whh_t_ref: (H, 3H) bf16 (constant block index
                  -> DMA'd once, resident).
       bih_ref / bhh_ref: (1, 3H) f32.
       out_ref:   (NB, H) f32 -- also the persistent h carry across the
                  'arbitrary' time-chunk axis (same block index every chunk).
       gx_ref:    (Tc, NB, 3H) bf16 VMEM scratch (hoisted input projection)."""
    nb, hdim = out_ref.shape
    t_chunk = x_ref.shape[0]
    chunk = pl.program_id(1)

    # Phase 1: hoisted input projection for the whole chunk -- one MXU matmul.
    x2 = x_ref[...].reshape(t_chunk * nb, x_ref.shape[2])            # (Tc*NB, E)
    gx = jnp.dot(x2, wih_t_ref[...],
                 preferred_element_type=jnp.float32) + bih_ref[...]  # (Tc*NB, 3H) f32
    gx_ref[...] = gx.reshape(t_chunk, nb, 3 * hdim).astype(gx_ref.dtype)

    # h carry lives in out_ref (resident across the time axis); init at chunk 0.
    @pl.when(chunk == 0)
    def _():
        out_ref[...] = jnp.zeros_like(out_ref)

    whh_t = whh_t_ref[...]          # (H, 3H) bf16, loaded into vregs once
    bhh = bhh_ref[...]              # (1, 3H) f32
    base = chunk * t_chunk

    def step(t, h):
        gx_t = gx_ref[t].astype(jnp.float32)                         # (NB, 3H)
        gh = jnp.dot(h.astype(whh_t.dtype), whh_t,
                     preferred_element_type=jnp.float32) + bhh       # (NB, 3H)
        # Elementwise gate math in f32 (v5e VPU/EUP have no bf16).
        r = jax.nn.sigmoid(gx_t[:, :hdim] + gh[:, :hdim])
        z = jax.nn.sigmoid(gx_t[:, hdim:2 * hdim] + gh[:, hdim:2 * hdim])
        n = jnp.tanh(gx_t[:, 2 * hdim:] + r * gh[:, 2 * hdim:])
        h_new = (1.0 - z) * n + z * h
        if needs_mask:  # trailing padded time steps (only when T % T_chunk != 0)
            h_new = jnp.where(base + t < t_total, h_new, h)
        return h_new

    out_ref[...] = lax.fori_loop(0, t_chunk, step, out_ref[...], unroll=unroll)


def _gru_vmem_limit_bytes(t_chunk, row_tile, e_dim, h_dim):
    need = (
        2 * t_chunk * row_tile * e_dim * 2        # x block (bf16), double-buffered
        + t_chunk * row_tile * 3 * h_dim * 2      # gx scratch (bf16)
        + 2 * (e_dim + h_dim) * 3 * h_dim * 2     # weight blocks (bf16, 2 slots)
        + 2 * 2 * 3 * h_dim * 4                   # biases
        + 2 * row_tile * h_dim * 4                # out / h-carry block
    )
    return int(min(64 * 2 ** 20, max(16 * 2 ** 20, 2 * need)))


def gru_last_hidden(x_tm, t_total, wih_t, whh_t, bih2, bhh2, *, row_tile, t_chunk):
    """x_tm: (T_pad, Np, E) bf16 time-major.  Returns last hidden (Np, H) f32."""
    t_pad, np_rows, e_dim = x_tm.shape
    h_dim = whh_t.shape[0]
    grid = (np_rows // row_tile, t_pad // t_chunk)
    kernel = functools.partial(
        _gru_kernel,
        t_total=t_total,
        unroll=min(t_chunk, 8),              # capped unroll
        needs_mask=(t_pad != t_total),
    )
    return pl.pallas_call(
        kernel,
        out_shape=jax.ShapeDtypeStruct((np_rows, h_dim), jnp.float32),
        grid_spec=pltpu.PrefetchScalarGridSpec(
            num_scalar_prefetch=0,
            grid=grid,                                      # (batch_tiles, time_chunks)
            in_specs=[
                pl.BlockSpec((t_chunk, row_tile, e_dim), lambda b, t: (t, b, 0)),
                pl.BlockSpec((e_dim, 3 * h_dim), lambda b, t: (0, 0)),
                pl.BlockSpec((h_dim, 3 * h_dim), lambda b, t: (0, 0)),
                pl.BlockSpec((1, 3 * h_dim), lambda b, t: (0, 0)),
                pl.BlockSpec((1, 3 * h_dim), lambda b, t: (0, 0)),
            ],
            out_specs=pl.BlockSpec((row_tile, h_dim), lambda b, t: (b, 0)),
            scratch_shapes=[pltpu.VMEM((t_chunk, row_tile, 3 * h_dim), jnp.bfloat16)],
        ),
        compiler_params=pltpu.CompilerParams(
            dimension_semantics=("parallel", "arbitrary"),
            vmem_limit_bytes=_gru_vmem_limit_bytes(t_chunk, row_tile, e_dim, h_dim),
        ),
    )(x_tm, wih_t, whh_t, bih2, bhh2)


# ----------------------------------------------------------------------------
# Scoring kernel: lane-dense full score matrix
#   S = sigmoid((ctx_h @ M) @ cand_h^T + 2*bias)        (Bp, Nc)
# The module's scores are the (b, b*C + c) entries (extracted outside).
# Algebraically identical to sum(repeat(ctx_h, C) * (cand_h @ M^T), -1).
# ----------------------------------------------------------------------------
def _score_kernel(ctx_ref, cand_ref, m_ref, bias_ref, out_ref):
    """ctx_ref: (Bp, H) f32.  cand_ref: (Nc, H) bf16.  m_ref: (H, H) bf16.
       bias_ref: (1,) f32 in SMEM.  out_ref: (Bp, Nc) f32 (lane-dense)."""
    ctx_p = jnp.dot(ctx_ref[...].astype(m_ref.dtype), m_ref[...],
                    preferred_element_type=jnp.float32)              # (Bp, H) = ctx @ M
    s = jnp.dot(ctx_p.astype(cand_ref.dtype), cand_ref[...].T,
                preferred_element_type=jnp.float32)                  # (Bp, Nc)
    # The PyTorch code adds the bias both before and inside the sigmoid.
    out_ref[...] = jax.nn.sigmoid(s + 2.0 * bias_ref[0])


def score_matrix(ctx_h_pad, cand_h_pad, m_bf16, bias1):
    bp, _ = ctx_h_pad.shape
    nc = cand_h_pad.shape[0]
    return pl.pallas_call(
        _score_kernel,
        out_shape=jax.ShapeDtypeStruct((bp, nc), jnp.float32),
        in_specs=[
            pl.BlockSpec(memory_space=pltpu.MemorySpace.VMEM),
            pl.BlockSpec(memory_space=pltpu.MemorySpace.VMEM),
            pl.BlockSpec(memory_space=pltpu.MemorySpace.VMEM),
            pl.BlockSpec(memory_space=pltpu.MemorySpace.SMEM),       # scalar bias
        ],
        out_specs=pl.BlockSpec(memory_space=pltpu.MemorySpace.VMEM),
    )(ctx_h_pad, cand_h_pad, m_bf16, bias1)


# ----------------------------------------------------------------------------
# Glue: one-time parameter prep, embedding gather, tiling choices, forward.
# ----------------------------------------------------------------------------
def prepare_params(params):
    """One-time prep hoisted out of the per-call path (cast / transpose once)."""
    h_dim = params["ctx_whh"].shape[1]
    prep = {
        "emb_bf16": params["emb"].astype(jnp.bfloat16),
        "M_bf16": params["M"].astype(jnp.bfloat16),
        "bias1": jnp.reshape(params["bias"], (1,)).astype(jnp.float32),
    }
    for enc in ("ctx", "cand"):
        prep[f"{enc}_wih_t"] = jnp.transpose(params[f"{enc}_wih"]).astype(jnp.bfloat16)
        prep[f"{enc}_whh_t"] = jnp.transpose(params[f"{enc}_whh"]).astype(jnp.bfloat16)
        prep[f"{enc}_bih2"] = params[f"{enc}_bih"].reshape(1, 3 * h_dim).astype(jnp.float32)
        prep[f"{enc}_bhh2"] = params[f"{enc}_bhh"].reshape(1, 3 * h_dim).astype(jnp.float32)
    return prep


def _pick_row_tile(n_rows):
    if n_rows >= _ROW_TILE_TARGET:
        return _ROW_TILE_TARGET, _round_up(n_rows, _ROW_TILE_TARGET)
    padded = _round_up(max(n_rows, 1), 8)
    return padded, padded


def _pick_time_chunk(t):
    tc = min(t, _TIME_CHUNK_TARGET)
    return tc, _round_up(t, tc)


def _embed_time_major(emb_bf16, tokens_2d, n_pad, t_pad):
    """tokens_2d: (N, T) int32 -> (T_pad, n_pad, E) bf16, time-major.
    Only the tiny int32 id array is transposed / padded; the float embeddings
    are gathered directly in time-major order (no HBM transpose of floats)."""
    n, t = tokens_2d.shape
    tok_tm = jnp.transpose(tokens_2d)                               # (T, N)
    tok_tm = jnp.pad(tok_tm, ((0, t_pad - t), (0, n_pad - n)))      # pad time & rows
    x = jnp.take(emb_bf16, tok_tm.reshape(-1), axis=0)              # (T_pad*n_pad, E)
    return x.reshape(t_pad, n_pad, emb_bf16.shape[1])


def dual_encoder_forward(prep, text_vec, cand_vecs):
    B, Tctx = text_vec.shape
    _, C, Tc = cand_vecs.shape
    emb = prep["emb_bf16"]

    # Context encoder.
    row_tile_c, Bp = _pick_row_tile(B)
    tchunk_c, tctx_pad = _pick_time_chunk(Tctx)
    x_ctx = _embed_time_major(emb, text_vec, Bp, tctx_pad)
    ctx_h = gru_last_hidden(x_ctx, Tctx, prep["ctx_wih_t"], prep["ctx_whh_t"],
                            prep["ctx_bih2"], prep["ctx_bhh2"],
                            row_tile=row_tile_c, t_chunk=tchunk_c)        # (Bp, H)

    # Candidate encoder (flattened over B*C).
    N = B * C
    row_tile_k, Np = _pick_row_tile(N)
    tchunk_k, tc_pad = _pick_time_chunk(Tc)
    x_cand = _embed_time_major(emb, cand_vecs.reshape(N, Tc), Np, tc_pad)
    cand_h = gru_last_hidden(x_cand, Tc, prep["cand_wih_t"], prep["cand_whh_t"],
                             prep["cand_bih2"], prep["cand_bhh2"],
                             row_tile=row_tile_k, t_chunk=tchunk_k)       # (Np, H)

    # Dropout with p=0 (module default) is the identity -> no-op.

    # Scoring: lane-dense (Bp, Nc) score matrix, then pick (b, b*C + c).
    Nc = _round_up(N, 128)
    cand_pad = jnp.pad(cand_h[:N], ((0, Nc - N), (0, 0))).astype(jnp.bfloat16)
    S = score_matrix(ctx_h, cand_pad, prep["M_bf16"], prep["bias1"])      # (Bp, Nc)
    idx = jnp.arange(B)[:, None] * C + jnp.arange(C)[None, :]
    return jnp.take_along_axis(S[:B], idx, axis=1)                        # (B, C)


# ----------------------------------------------------------------------------
# Pure-JAX reference (bf16 matmul operands / f32 accumulate, f32 gx; written in
# the original repeat + cand_h @ M^T form to validate the kernel rewrite).
# ----------------------------------------------------------------------------
def _gru_ref(x_bte, wih, whh, bih, bhh):
    bn, t_len, _ = x_bte.shape
    h_dim = whh.shape[1]
    x = x_bte.astype(jnp.bfloat16)
    wih_t = jnp.transpose(wih).astype(jnp.bfloat16)
    whh_t = jnp.transpose(whh).astype(jnp.bfloat16)
    gx_all = jnp.einsum("bte,eg->btg", x, wih_t,
                        preferred_element_type=jnp.float32) + bih
    h = jnp.zeros((bn, h_dim), jnp.float32)
    for t in range(t_len):
        gx = gx_all[:, t]
        gh = jnp.dot(h.astype(jnp.bfloat16), whh_t,
                     preferred_element_type=jnp.float32) + bhh
        r = jax.nn.sigmoid(gx[:, :h_dim] + gh[:, :h_dim])
        z = jax.nn.sigmoid(gx[:, h_dim:2 * h_dim] + gh[:, h_dim:2 * h_dim])
        n = jnp.tanh(gx[:, 2 * h_dim:] + r * gh[:, 2 * h_dim:])
        h = (1.0 - z) * n + z * h
    return h


def _forward_ref(params, text_vec, cand_vecs):
    B, C, Tc = cand_vecs.shape
    emb = params["emb"]
    ctx_h = _gru_ref(jnp.take(emb, text_vec, axis=0),
                     params["ctx_wih"], params["ctx_whh"],
                     params["ctx_bih"], params["ctx_bhh"])
    cand_h = _gru_ref(jnp.take(emb, cand_vecs.reshape(B * C, Tc), axis=0),
                      params["cand_wih"], params["cand_whh"],
                      params["cand_bih"], params["cand_bhh"])
    ctx_exp = jnp.repeat(ctx_h, C, axis=0)
    cand_p = jnp.dot(cand_h.astype(jnp.bfloat16),
                     jnp.transpose(params["M"]).astype(jnp.bfloat16),
                     preferred_element_type=jnp.float32)
    raw = jnp.sum(ctx_exp * cand_p, axis=1, keepdims=True)
    return jax.nn.sigmoid(raw + 2.0 * params["bias"]).reshape(B, C)


# ----------------------------------------------------------------------------
# Deterministic parameter init + demo
# ----------------------------------------------------------------------------
def init_params(key, vocab, e_dim, h_dim):
    ks = jax.random.split(key, 12)
    u = lambda k, shape, lim: jax.random.uniform(k, shape, jnp.float32, -lim, lim)
    lim = 1.0 / float(jnp.sqrt(h_dim))
    return {
        "emb": jax.random.normal(ks[0], (vocab, e_dim), jnp.float32),
        "ctx_wih": u(ks[1], (3 * h_dim, e_dim), lim),
        "ctx_whh": u(ks[2], (3 * h_dim, h_dim), lim),
        "ctx_bih": u(ks[3], (3 * h_dim,), lim),
        "ctx_bhh": u(ks[4], (3 * h_dim,), lim),
        "cand_wih": u(ks[5], (3 * h_dim, e_dim), lim),
        "cand_whh": u(ks[6], (3 * h_dim, h_dim), lim),
        "cand_bih": u(ks[7], (3 * h_dim,), lim),
        "cand_bhh": u(ks[8], (3 * h_dim,), lim),
        "M": u(ks[9], (h_dim, h_dim), 0.01),
        "bias": u(ks[10], (), 0.01),
    }


if __name__ == "__main__":
    B, C = 2, 3          # batch, num candidates
    Tctx, Tc = 8, 6      # context / candidate sequence lengths
    E, H = 128, 128      # embedding size, hidden dim (lane-aligned)
    vocab = 100

    key = jax.random.PRNGKey(0)
    kp, kt, kc = jax.random.split(key, 3)
    params = init_params(kp, vocab, E, H)
    text_vec = jax.random.randint(kt, (B, Tctx), 0, vocab, dtype=jnp.int32)
    cand_vecs = jax.random.randint(kc, (B, C, Tc), 0, vocab, dtype=jnp.int32)

    prep = prepare_params(params)            # one-time prep, out of the hot path
    fwd = jax.jit(dual_encoder_forward)
    out = jax.block_until_ready(fwd(prep, text_vec, cand_vecs))

    ref = _forward_ref(params, text_vec, cand_vecs)
    assert out.shape == (B, C)
    assert bool(jnp.all(jnp.isfinite(out)))
    # Tolerance accounts for bf16 MXU operands, the bf16 gx scratch, the
    # (ctx@M)@cand^T algebraic rewrite and transcendental approximation diffs.
    assert bool(jnp.allclose(out, ref, atol=1e-2, rtol=1e-2)), (out, ref)

    print("KERNEL_OK")
</pallas_src>

<mosaic_0001>
module attributes {stable_mosaic.version = 11 : i64} {
  func.func @_gru_kernel(%arg0: i32, %arg1: i32, %arg2: memref<8x8x128xbf16, #tpu.memory_space<vmem>>, %arg3: memref<128x384xbf16, #tpu.memory_space<vmem>>, %arg4: memref<128x384xbf16, #tpu.memory_space<vmem>>, %arg5: memref<1x384xf32, #tpu.memory_space<vmem>>, %arg6: memref<1x384xf32, #tpu.memory_space<vmem>>, %arg7: memref<8x128xf32, #tpu.memory_space<vmem>>, %arg8: memref<8x8x384xbf16, #tpu.memory_space<vmem>>) attributes {dimension_semantics = [#tpu.dimension_semantics<parallel>, #tpu.dimension_semantics<arbitrary>], iteration_bounds = array<i64: 1, 1>, scalar_prefetch = 0 : i64, scratch_operands = 1 : i64, tpu.core_type = #tpu.core_type<tc>, window_params = [{transform_indices = @transform_0, window_bounds = array<i64: 8, 8, 128>}, {pipeline_mode = #tpu.pipeline_mode<synchronous>, transform_indices = @transform_1, window_bounds = array<i64: 128, 384>}, {pipeline_mode = #tpu.pipeline_mode<synchronous>, transform_indices = @transform_2, window_bounds = array<i64: 128, 384>}, {pipeline_mode = #tpu.pipeline_mode<synchronous>, transform_indices = @transform_3, window_bounds = array<i64: 1, 384>}, {pipeline_mode = #tpu.pipeline_mode<synchronous>, transform_indices = @transform_4, window_bounds = array<i64: 1, 384>}, {transform_indices = @transform_5, window_bounds = array<i64: 8, 128>}]} {
    %c0 = arith.constant 0 : index
    %c0_0 = arith.constant 0 : index
    %c0_1 = arith.constant 0 : index
    %0 = vector.load %arg2[%c0, %c0_0, %c0_1] : memref<8x8x128xbf16, #tpu.memory_space<vmem>>, vector<8x8x128xbf16>
    %1 = vector.shape_cast %0 : vector<8x8x128xbf16> to vector<64x128xbf16>
    %c0_2 = arith.constant 0 : index
    %c0_3 = arith.constant 0 : index
    %2 = vector.load %arg3[%c0_2, %c0_3] : memref<128x384xbf16, #tpu.memory_space<vmem>>, vector<128x384xbf16>
    %cst = arith.constant dense<0.000000e+00> : vector<64x384xf32>
    %3 = tpu.matmul %1, %2, %cst {dimension_numbers = #tpu.dot_dimension_numbers<[1], [0], [0], [1], [0, 0, 1, 1], [], []>} : vector<64x128xbf16>, vector<128x384xbf16>, vector<64x384xf32> -> vector<64x384xf32>
    %c0_4 = arith.constant 0 : index
    %c0_5 = arith.constant 0 : index
    %4 = vector.load %arg5[%c0_4, %c0_5] : memref<1x384xf32, #tpu.memory_space<vmem>>, vector<1x384xf32>
    %5 = vector.broadcast %4 : vector<1x384xf32> to vector<64x384xf32>
    %6 = arith.addf %3, %5 : vector<64x384xf32>
    %7 = vector.shape_cast %6 : vector<64x384xf32> to vector<8x8x384xf32>
    %8 = arith.truncf %7 : vector<8x8x384xf32> to vector<8x8x384xbf16>
    %c0_6 = arith.constant 0 : index
    %c0_7 = arith.constant 0 : index
    %c0_8 = arith.constant 0 : index
    %9 = vector.load %arg8[%c0_6, %c0_7, %c0_8] : memref<8x8x384xbf16, #tpu.memory_space<vmem>>, vector<8x8x384xbf16>
    tpu.vector_store %arg8[%c0_6, %c0_7, %c0_8], %8 {strides = array<i32>} : memref<8x8x384xbf16, #tpu.memory_space<vmem>>, vector<8x8x384xbf16>,
    %c0_i32 = arith.constant 0 : i32
    %10 = arith.cmpi eq, %arg1, %c0_i32 : i32
    %11 = arith.extui %10 : i1 to i32
    %c0_i32_9 = arith.constant 0 : i32
    %12 = arith.cmpi ne, %11, %c0_i32_9 : i32
    scf.if %12 {
      %cst_67 = arith.constant 0.000000e+00 : f32
      %289 = vector.broadcast %cst_67 : f32 to vector<8x128xf32>
      %c0_68 = arith.constant 0 : index
      %c0_69 = arith.constant 0 : index
      %290 = vector.load %arg7[%c0_68, %c0_69] : memref<8x128xf32, #tpu.memory_space<vmem>>, vector<8x128xf32>
      tpu.vector_store %arg7[%c0_68, %c0_69], %289 {strides = array<i32>} : memref<8x128xf32, #tpu.memory_space<vmem>>, vector<8x128xf32>,
    } else {
    }
    %c0_10 = arith.constant 0 : index
    %c0_11 = arith.constant 0 : index
    %13 = vector.load %arg4[%c0_10, %c0_11] : memref<128x384xbf16, #tpu.memory_space<vmem>>, vector<128x384xbf16>
    %c0_12 = arith.constant 0 : index
    %c0_13 = arith.constant 0 : index
    %14 = vector.load %arg6[%c0_12, %c0_13] : memref<1x384xf32, #tpu.memory_space<vmem>>, vector<1x384xf32>
    %c0_14 = arith.constant 0 : index
    %c0_15 = arith.constant 0 : index
    %15 = vector.load %arg7[%c0_14, %c0_15] : memref<8x128xf32, #tpu.memory_space<vmem>>, vector<8x128xf32>
    %c0_i32_16 = arith.constant 0 : i32
    %16 = arith.index_cast %c0_i32_16 : i32 to index
    %c0_17 = arith.constant 0 : index
    %c0_18 = arith.constant 0 : index
    %17 = vector.load %arg8[%16, %c0_17, %c0_18] : memref<8x8x384xbf16, #tpu.memory_space<vmem>>, vector<1x8x384xbf16>
    %18 = vector.shape_cast %17 : vector<1x8x384xbf16> to vector<8x384xbf16>
    %19 = arith.extf %18 : vector<8x384xbf16> to vector<8x384xf32>
    %20 = arith.truncf %15 : vector<8x128xf32> to vector<8x128xbf16>
    %cst_19 = arith.constant dense<0.000000e+00> : vector<8x384xf32>
    %21 = tpu.matmul %20, %13, %cst_19 {dimension_numbers = #tpu.dot_dimension_numbers<[1], [0], [0], [1], [0, 0, 1, 1], [], []>} : vector<8x128xbf16>, vector<128x384xbf16>, vector<8x384xf32> -> vector<8x384xf32>
    %22 = vector.broadcast %14 : vector<1x384xf32> to vector<8x384xf32>
    %23 = arith.addf %21, %22 : vector<8x384xf32>
    %24 = vector.extract_strided_slice %19 {offsets = [0, 0], sizes = [8, 128], strides = [1, 1]} : vector<8x384xf32> to vector<8x128xf32>
    %25 = vector.extract_strided_slice %23 {offsets = [0, 0], sizes = [8, 128], strides = [1, 1]} : vector<8x384xf32> to vector<8x128xf32>
    %26 = arith.addf %24, %25 : vector<8x128xf32>
    %27 = arith.negf %26 : vector<8x128xf32>
    %28 = math.exp %27 : vector<8x128xf32>
    %cst_20 = arith.constant 1.000000e+00 : f32
    %29 = vector.broadcast %cst_20 : f32 to vector<8x128xf32>
    %30 = arith.addf %29, %28 : vector<8x128xf32>
    %31 = arith.divf %29, %30 : vector<8x128xf32>
    %32 = vector.extract_strided_slice %19 {offsets = [0, 128], sizes = [8, 128], strides = [1, 1]} : vector<8x384xf32> to vector<8x128xf32>
    %33 = vector.extract_strided_slice %23 {offsets = [0, 128], sizes = [8, 128], strides = [1, 1]} : vector<8x384xf32> to vector<8x128xf32>
    %34 = arith.addf %32, %33 : vector<8x128xf32>
    %35 = arith.negf %34 : vector<8x128xf32>
    %36 = math.exp %35 : vector<8x128xf32>
    %cst_21 = arith.constant 1.000000e+00 : f32
    %37 = vector.broadcast %cst_21 : f32 to vector<8x128xf32>
    %38 = arith.addf %37, %36 : vector<8x128xf32>
    %39 = arith.divf %37, %38 : vector<8x128xf32>
    %40 = vector.extract_strided_slice %19 {offsets = [0, 256], sizes = [8, 128], strides = [1, 1]} : vector<8x384xf32> to vector<8x128xf32>
    %41 = vector.extract_strided_slice %23 {offsets = [0, 256], sizes = [8, 128], strides = [1, 1]} : vector<8x384xf32> to vector<8x128xf32>
    %42 = arith.mulf %31, %41 : vector<8x128xf32>
    %43 = arith.addf %40, %42 : vector<8x128xf32>
    %44 = math.tanh %43 : vector<8x128xf32>
    %cst_22 = arith.constant 1.000000e+00 : f32
    %45 = vector.broadcast %cst_22 : f32 to vector<8x128xf32>
    %46 = arith.subf %45, %39 : vector<8x128xf32>
    %47 = arith.mulf %46, %44 : vector<8x128xf32>
    %48 = arith.mulf %39, %15 : vector<8x128xf32>
    %49 = arith.addf %47, %48 : vector<8x128xf32>
    %c1_i32 = arith.constant 1 : i32
    %50 = arith.index_cast %c1_i32 : i32 to index
    %c0_23 = arith.constant 0 : index
    %c0_24 = arith.constant 0 : index
    %51 = vector.load %arg8[%50, %c0_23, %c0_24] : memref<8x8x384xbf16, #tpu.memory_space<vmem>>, vector<1x8x384xbf16>
    %52 = vector.shape_cast %51 : vector<1x8x384xbf16> to vector<8x384xbf16>
    %53 = arith.extf %52 : vector<8x384xbf16> to vector<8x384xf32>
    %54 = arith.truncf %49 : vector<8x128xf32> to vector<8x128xbf16>
    %cst_25 = arith.constant dense<0.000000e+00> : vector<8x384xf32>
    %55 = tpu.matmul %54, %13, %cst_25 {dimension_numbers = #tpu.dot_dimension_numbers<[1], [0], [0], [1], [0, 0, 1, 1], [], []>} : vector<8x128xbf16>, vector<128x384xbf16>, vector<8x384xf32> -> vector<8x384xf32>
    %56 = vector.broadcast %14 : vector<1x384xf32> to vector<8x384xf32>
    %57 = arith.addf %55, %56 : vector<8x384xf32>
    %58 = vector.extract_strided_slice %53 {offsets = [0, 0], sizes = [8, 128], strides = [1, 1]} : vector<8x384xf32> to vector<8x128xf32>
    %59 = vector.extract_strided_slice %57 {offsets = [0, 0], sizes = [8, 128], strides = [1, 1]} : vector<8x384xf32> to vector<8x128xf32>
    %60 = arith.addf %58, %59 : vector<8x128xf32>
    %61 = arith.negf %60 : vector<8x128xf32>
    %62 = math.exp %61 : vector<8x128xf32>
    %cst_26 = arith.constant 1.000000e+00 : f32
    %63 = vector.broadcast %cst_26 : f32 to vector<8x128xf32>
    %64 = arith.addf %63, %62 : vector<8x128xf32>
    %65 = arith.divf %63, %64 : vector<8x128xf32>
    %66 = vector.extract_strided_slice %53 {offsets = [0, 128], sizes = [8, 128], strides = [1, 1]} : vector<8x384xf32> to vector<8x128xf32>
    %67 = vector.extract_strided_slice %57 {offsets = [0, 128], sizes = [8, 128], strides = [1, 1]} : vector<8x384xf32> to vector<8x128xf32>
    %68 = arith.addf %66, %67 : vector<8x128xf32>
    %69 = arith.negf %68 : vector<8x128xf32>
    %70 = math.exp %69 : vector<8x128xf32>
    %cst_27 = arith.constant 1.000000e+00 : f32
    %71 = vector.broadcast %cst_27 : f32 to vector<8x128xf32>
    %72 = arith.addf %71, %70 : vector<8x128xf32>
    %73 = arith.divf %71, %72 : vector<8x128xf32>
    %74 = vector.extract_strided_slice %53 {offsets = [0, 256], sizes = [8, 128], strides = [1, 1]} : vector<8x384xf32> to vector<8x128xf32>
    %75 = vector.extract_strided_slice %57 {offsets = [0, 256], sizes = [8, 128], strides = [1, 1]} : vector<8x384xf32> to vector<8x128xf32>
    %76 = arith.mulf %65, %75 : vector<8x128xf32>
    %77 = arith.addf %74, %76 : vector<8x128xf32>
    %78 = math.tanh %77 : vector<8x128xf32>
    %cst_28 = arith.constant 1.000000e+00 : f32
    %79 = vector.broadcast %cst_28 : f32 to vector<8x128xf32>
    %80 = arith.subf %79, %73 : vector<8x128xf32>
    %81 = arith.mulf %80, %78 : vector<8x128xf32>
    %82 = arith.mulf %73, %49 : vector<8x128xf32>
    %83 = arith.addf %81, %82 : vector<8x128xf32>
    %c2_i32 = arith.constant 2 : i32
    %84 = arith.index_cast %c2_i32 : i32 to index
    %c0_29 = arith.constant 0 : index
    %c0_30 = arith.constant 0 : index
    %85 = vector.load %arg8[%84, %c0_29, %c0_30] : memref<8x8x384xbf16, #tpu.memory_space<vmem>>, vector<1x8x384xbf16>
    %86 = vector.shape_cast %85 : vector<1x8x384xbf16> to vector<8x384xbf16>
    %87 = arith.extf %86 : vector<8x384xbf16> to vector<8x384xf32>
    %88 = arith.truncf %83 : vector<8x128xf32> to vector<8x128xbf16>
    %cst_31 = arith.constant dense<0.000000e+00> : vector<8x384xf32>
    %89 = tpu.matmul %88, %13, %cst_31 {dimension_numbers = #tpu.dot_dimension_numbers<[1], [0], [0], [1], [0, 0, 1, 1], [], []>} : vector<8x128xbf16>, vector<128x384xbf16>, vector<8x384xf32> -> vector<8x384xf32>
    %90 = vector.broadcast %14 : vector<1x384xf32> to vector<8x384xf32>
    %91 = arith.addf %89, %90 : vector<8x384xf32>
    %92 = vector.extract_strided_slice %87 {offsets = [0, 0], sizes = [8, 128], strides = [1, 1]} : vector<8x384xf32> to vector<8x128xf32>
    %93 = vector.extract_strided_slice %91 {offsets = [0, 0], sizes = [8, 128], strides = [1, 1]} : vector<8x384xf32> to vector<8x128xf32>
    %94 = arith.addf %92, %93 : vector<8x128xf32>
    %95 = arith.negf %94 : vector<8x128xf32>
    %96 = math.exp %95 : vector<8x128xf32>
    %cst_32 = arith.constant 1.000000e+00 : f32
    %97 = vector.broadcast %cst_32 : f32 to vector<8x128xf32>
    %98 = arith.addf %97, %96 : vector<8x128xf32>
    %99 = arith.divf %97, %98 : vector<8x128xf32>
    %100 = vector.extract_strided_slice %87 {offsets = [0, 128], sizes = [8, 128], strides = [1, 1]} : vector<8x384xf32> to vector<8x128xf32>
    %101 = vector.extract_strided_slice %91 {offsets = [0, 128], sizes = [8, 128], strides = [1, 1]} : vector<8x384xf32> to vector<8x128xf32>
    %102 = arith.addf %100, %101 : vector<8x128xf32>
    %103 = arith.negf %102 : vector<8x128xf32>
    %104 = math.exp %103 : vector<8x128xf32>
    %cst_33 = arith.constant 1.000000e+00 : f32
    %105 = vector.broadcast %cst_33 : f32 to vector<8x128xf32>
    %106 = arith.addf %105, %104 : vector<8x128xf32>
    %107 = arith.divf %105, %106 : vector<8x128xf32>
    %108 = vector.extract_strided_slice %87 {offsets = [0, 256], sizes = [8, 128], strides = [1, 1]} : vector<8x384xf32> to vector<8x128xf32>
    %109 = vector.extract_strided_slice %91 {offsets = [0, 256], sizes = [8, 128], strides = [1, 1]} : vector<8x384xf32> to vector<8x128xf32>
    %110 = arith.mulf %99, %109 : vector<8x128xf32>
    %111 = arith.addf %108, %110 : vector<8x128xf32>
    %112 = math.tanh %111 : vector<8x128xf32>
    %cst_34 = arith.constant 1.000000e+00 : f32
    %113 = vector.broadcast %cst_34 : f32 to vector<8x128xf32>
    %114 = arith.subf %113, %107 : vector<8x128xf32>
    %115 = arith.mulf %114, %112 : vector<8x128xf32>
    %116 = arith.mulf %107, %83 : vector<8x128xf32>
    %117 = arith.addf %115, %116 : vector<8x128xf32>
    %c3_i32 = arith.constant 3 : i32
    %118 = arith.index_cast %c3_i32 : i32 to index
    %c0_35 = arith.constant 0 : index
    %c0_36 = arith.constant 0 : index
    %119 = vector.load %arg8[%118, %c0_35, %c0_36] : memref<8x8x384xbf16, #tpu.memory_space<vmem>>, vector<1x8x384xbf16>
    %120 = vector.shape_cast %119 : vector<1x8x384xbf16> to vector<8x384xbf16>
    %121 = arith.extf %120 : vector<8x384xbf16> to vector<8x384xf32>
    %122 = arith.truncf %117 : vector<8x128xf32> to vector<8x128xbf16>
    %cst_37 = arith.constant dense<0.000000e+00> : vector<8x384xf32>
    %123 = tpu.matmul %122, %13, %cst_37 {dimension_numbers = #tpu.dot_dimension_numbers<[1], [0], [0], [1], [0, 0, 1, 1], [], []>} : vector<8x128xbf16>, vector<128x384xbf16>, vector<8x384xf32> -> vector<8x384xf32>
    %124 = vector.broadcast %14 : vector<1x384xf32> to vector<8x384xf32>
    %125 = arith.addf %123, %124 : vector<8x384xf32>
    %126 = vector.extract_strided_slice %121 {offsets = [0, 0], sizes = [8, 128], strides = [1, 1]} : vector<8x384xf32> to vector<8x128xf32>
    %127 = vector.extract_strided_slice %125 {offsets = [0, 0], sizes = [8, 128], strides = [1, 1]} : vector<8x384xf32> to vector<8x128xf32>
    %128 = arith.addf %126, %127 : vector<8x128xf32>
    %129 = arith.negf %128 : vector<8x128xf32>
    %130 = math.exp %129 : vector<8x128xf32>
    %cst_38 = arith.constant 1.000000e+00 : f32
    %131 = vector.broadcast %cst_38 : f32 to vector<8x128xf32>
    %132 = arith.addf %131, %130 : vector<8x128xf32>
    %133 = arith.divf %131, %132 : vector<8x128xf32>
    %134 = vector.extract_strided_slice %121 {offsets = [0, 128], sizes = [8, 128], strides = [1, 1]} : vector<8x384xf32> to vector<8x128xf32>
    %135 = vector.extract_strided_slice %125 {offsets = [0, 128], sizes = [8, 128], strides = [1, 1]} : vector<8x384xf32> to vector<8x128xf32>
    %136 = arith.addf %134, %135 : vector<8x128xf32>
    %137 = arith.negf %136 : vector<8x128xf32>
    %138 = math.exp %137 : vector<8x128xf32>
    %cst_39 = arith.constant 1.000000e+00 : f32
    %139 = vector.broadcast %cst_39 : f32 to vector<8x128xf32>
    %140 = arith.addf %139, %138 : vector<8x128xf32>
    %141 = arith.divf %139, %140 : vector<8x128xf32>
    %142 = vector.extract_strided_slice %121 {offsets = [0, 256], sizes = [8, 128], strides = [1, 1]} : vector<8x384xf32> to vector<8x128xf32>
    %143 = vector.extract_strided_slice %125 {offsets = [0, 256], sizes = [8, 128], strides = [1, 1]} : vector<8x384xf32> to vector<8x128xf32>
    %144 = arith.mulf %133, %143 : vector<8x128xf32>
    %145 = arith.addf %142, %144 : vector<8x128xf32>
    %146 = math.tanh %145 : vector<8x128xf32>
    %cst_40 = arith.constant 1.000000e+00 : f32
    %147 = vector.broadcast %cst_40 : f32 to vector<8x128xf32>
    %148 = arith.subf %147, %141 : vector<8x128xf32>
    %149 = arith.mulf %148, %146 : vector<8x128xf32>
    %150 = arith.mulf %141, %117 : vector<8x128xf32>
    %151 = arith.addf %149, %150 : vector<8x128xf32>
    %c4_i32 = arith.constant 4 : i32
    %152 = arith.index_cast %c4_i32 : i32 to index
    %c0_41 = arith.constant 0 : index
    %c0_42 = arith.constant 0 : index
    %153 = vector.load %arg8[%152, %c0_41, %c0_42] : memref<8x8x384xbf16, #tpu.memory_space<vmem>>, vector<1x8x384xbf16>
    %154 = vector.shape_cast %153 : vector<1x8x384xbf16> to vector<8x384xbf16>
    %155 = arith.extf %154 : vector<8x384xbf16> to vector<8x384xf32>
    %156 = arith.truncf %151 : vector<8x128xf32> to vector<8x128xbf16>
    %cst_43 = arith.constant dense<0.000000e+00> : vector<8x384xf32>
    %157 = tpu.matmul %156, %13, %cst_43 {dimension_numbers = #tpu.dot_dimension_numbers<[1], [0], [0], [1], [0, 0, 1, 1], [], []>} : vector<8x128xbf16>, vector<128x384xbf16>, vector<8x384xf32> -> vector<8x384xf32>
    %158 = vector.broadcast %14 : vector<1x384xf32> to vector<8x384xf32>
    %159 = arith.addf %157, %158 : vector<8x384xf32>
    %160 = vector.extract_strided_slice %155 {offsets = [0, 0], sizes = [8, 128], strides = [1, 1]} : vector<8x384xf32> to vector<8x128xf32>
    %161 = vector.extract_strided_slice %159 {offsets = [0, 0], sizes = [8, 128], strides = [1, 1]} : vector<8x384xf32> to vector<8x128xf32>
    %162 = arith.addf %160, %161 : vector<8x128xf32>
    %163 = arith.negf %162 : vector<8x128xf32>
    %164 = math.exp %163 : vector<8x128xf32>
    %cst_44 = arith.constant 1.000000e+00 : f32
    %165 = vector.broadcast %cst_44 : f32 to vector<8x128xf32>
    %166 = arith.addf %165, %164 : vector<8x128xf32>
    %167 = arith.divf %165, %166 : vector<8x128xf32>
    %168 = vector.extract_strided_slice %155 {offsets = [0, 128], sizes = [8, 128], strides = [1, 1]} : vector<8x384xf32> to vector<8x128xf32>
    %169 = vector.extract_strided_slice %159 {offsets = [0, 128], sizes = [8, 128], strides = [1, 1]} : vector<8x384xf32> to vector<8x128xf32>
    %170 = arith.addf %168, %169 : vector<8x128xf32>
    %171 = arith.negf %170 : vector<8x128xf32>
    %172 = math.exp %171 : vector<8x128xf32>
    %cst_45 = arith.constant 1.000000e+00 : f32
    %173 = vector.broadcast %cst_45 : f32 to vector<8x128xf32>
    %174 = arith.addf %173, %172 : vector<8x128xf32>
    %175 = arith.divf %173, %174 : vector<8x128xf32>
    %176 = vector.extract_strided_slice %155 {offsets = [0, 256], sizes = [8, 128], strides = [1, 1]} : vector<8x384xf32> to vector<8x128xf32>
    %177 = vector.extract_strided_slice %159 {offsets = [0, 256], sizes = [8, 128], strides = [1, 1]} : vector<8x384xf32> to vector<8x128xf32>
    %178 = arith.mulf %167, %177 : vector<8x128xf32>
    %179 = arith.addf %176, %178 : vector<8x128xf32>
    %180 = math.tanh %179 : vector<8x128xf32>
    %cst_46 = arith.constant 1.000000e+00 : f32
    %181 = vector.broadcast %cst_46 : f32 to vector<8x128xf32>
    %182 = arith.subf %181, %175 : vector<8x128xf32>
    %183 = arith.mulf %182, %180 : vector<8x128xf32>
    %184 = arith.mulf %175, %151 : vector<8x128xf32>
    %185 = arith.addf %183, %184 : vector<8x128xf32>
    %c5_i32 = arith.constant 5 : i32
    %186 = arith.index_cast %c5_i32 : i32 to index
    %c0_47 = arith.constant 0 : index
    %c0_48 = arith.constant 0 : index
    %187 = vector.load %arg8[%186, %c0_47, %c0_48] : memref<8x8x384xbf16, #tpu.memory_space<vmem>>, vector<1x8x384xbf16>
    %188 = vector.shape_cast %187 : vector<1x8x384xbf16> to vector<8x384xbf16>
    %189 = arith.extf %188 : vector<8x384xbf16> to vector<8x384xf32>
    %190 = arith.truncf %185 : vector<8x128xf32> to vector<8x128xbf16>
    %cst_49 = arith.constant dense<0.000000e+00> : vector<8x384xf32>
    %191 = tpu.matmul %190, %13, %cst_49 {dimension_numbers = #tpu.dot_dimension_numbers<[1], [0], [0], [1], [0, 0, 1, 1], [], []>} : vector<8x128xbf16>, vector<128x384xbf16>, vector<8x384xf32> -> vector<8x384xf32>
    %192 = vector.broadcast %14 : vector<1x384xf32> to vector<8x384xf32>
    %193 = arith.addf %191, %192 : vector<8x384xf32>
    %194 = vector.extract_strided_slice %189 {offsets = [0, 0], sizes = [8, 128], strides = [1, 1]} : vector<8x384xf32> to vector<8x128xf32>
    %195 = vector.extract_strided_slice %193 {offsets = [0, 0], sizes = [8, 128], strides = [1, 1]} : vector<8x384xf32> to vector<8x128xf32>
    %196 = arith.addf %194, %195 : vector<8x128xf32>
    %197 = arith.negf %196 : vector<8x128xf32>
    %198 = math.exp %197 : vector<8x128xf32>
    %cst_50 = arith.constant 1.000000e+00 : f32
    %199 = vector.broadcast %cst_50 : f32 to vector<8x128xf32>
    %200 = arith.addf %199, %198 : vector<8x128xf32>
    %201 = arith.divf %199, %200 : vector<8x128xf32>
    %202 = vector.extract_strided_slice %189 {offsets = [0, 128], sizes = [8, 128], strides = [1, 1]} : vector<8x384xf32> to vector<8x128xf32>
    %203 = vector.extract_strided_slice %193 {offsets = [0, 128], sizes = [8, 128], strides = [1, 1]} : vector<8x384xf32> to vector<8x128xf32>
    %204 = arith.addf %202, %203 : vector<8x128xf32>
    %205 = arith.negf %204 : vector<8x128xf32>
    %206 = math.exp %205 : vector<8x128xf32>
    %cst_51 = arith.constant 1.000000e+00 : f32
    %207 = vector.broadcast %cst_51 : f32 to vector<8x128xf32>
    %208 = arith.addf %207, %206 : vector<8x128xf32>
    %209 = arith.divf %207, %208 : vector<8x128xf32>
    %210 = vector.extract_strided_slice %189 {offsets = [0, 256], sizes = [8, 128], strides = [1, 1]} : vector<8x384xf32> to vector<8x128xf32>
    %211 = vector.extract_strided_slice %193 {offsets = [0, 256], sizes = [8, 128], strides = [1, 1]} : vector<8x384xf32> to vector<8x128xf32>
    %212 = arith.mulf %201, %211 : vector<8x128xf32>
    %213 = arith.addf %210, %212 : vector<8x128xf32>
    %214 = math.tanh %213 : vector<8x128xf32>
    %cst_52 = arith.constant 1.000000e+00 : f32
    %215 = vector.broadcast %cst_52 : f32 to vector<8x128xf32>
    %216 = arith.subf %215, %209 : vector<8x128xf32>
    %217 = arith.mulf %216, %214 : vector<8x128xf32>
    %218 = arith.mulf %209, %185 : vector<8x128xf32>
    %219 = arith.addf %217, %218 : vector<8x128xf32>
    %c6_i32 = arith.constant 6 : i32
    %220 = arith.index_cast %c6_i32 : i32 to index
    %c0_53 = arith.constant 0 : index
    %c0_54 = arith.constant 0 : index
    %221 = vector.load %arg8[%220, %c0_53, %c0_54] : memref<8x8x384xbf16, #tpu.memory_space<vmem>>, vector<1x8x384xbf16>
    %222 = vector.shape_cast %221 : vector<1x8x384xbf16> to vector<8x384xbf16>
    %223 = arith.extf %222 : vector<8x384xbf16> to vector<8x384xf32>
    %224 = arith.truncf %219 : vector<8x128xf32> to vector<8x128xbf16>
    %cst_55 = arith.constant dense<0.000000e+00> : vector<8x384xf32>
    %225 = tpu.matmul %224, %13, %cst_55 {dimension_numbers = #tpu.dot_dimension_numbers<[1], [0], [0], [1], [0, 0, 1, 1], [], []>} : vector<8x128xbf16>, vector<128x384xbf16>, vector<8x384xf32> -> vector<8x384xf32>
    %226 = vector.broadcast %14 : vector<1x384xf32> to vector<8x384xf32>
    %227 = arith.addf %225, %226 : vector<8x384xf32>
    %228 = vector.extract_strided_slice %223 {offsets = [0, 0], sizes = [8, 128], strides = [1, 1]} : vector<8x384xf32> to vector<8x128xf32>
    %229 = vector.extract_strided_slice %227 {offsets = [0, 0], sizes = [8, 128], strides = [1, 1]} : vector<8x384xf32> to vector<8x128xf32>
    %230 = arith.addf %228, %229 : vector<8x128xf32>
    %231 = arith.negf %230 : vector<8x128xf32>
    %232 = math.exp %231 : vector<8x128xf32>
    %cst_56 = arith.constant 1.000000e+00 : f32
    %233 = vector.broadcast %cst_56 : f32 to vector<8x128xf32>
    %234 = arith.addf %233, %232 : vector<8x128xf32>
    %235 = arith.divf %233, %234 : vector<8x128xf32>
    %236 = vector.extract_strided_slice %223 {offsets = [0, 128], sizes = [8, 128], strides = [1, 1]} : vector<8x384xf32> to vector<8x128xf32>
    %237 = vector.extract_strided_slice %227 {offsets = [0, 128], sizes = [8, 128], strides = [1, 1]} : vector<8x384xf32> to vector<8x128xf32>
    %238 = arith.addf %236, %237 : vector<8x128xf32>
    %239 = arith.negf %238 : vector<8x128xf32>
    %240 = math.exp %239 : vector<8x128xf32>
    %cst_57 = arith.constant 1.000000e+00 : f32
    %241 = vector.broadcast %cst_57 : f32 to vector<8x128xf32>
    %242 = arith.addf %241, %240 : vector<8x128xf32>
    %243 = arith.divf %241, %242 : vector<8x128xf32>
    %244 = vector.extract_strided_slice %223 {offsets = [0, 256], sizes = [8, 128], strides = [1, 1]} : vector<8x384xf32> to vector<8x128xf32>
    %245 = vector.extract_strided_slice %227 {offsets = [0, 256], sizes = [8, 128], strides = [1, 1]} : vector<8x384xf32> to vector<8x128xf32>
    %246 = arith.mulf %235, %245 : vector<8x128xf32>
    %247 = arith.addf %244, %246 : vector<8x128xf32>
    %248 = math.tanh %247 : vector<8x128xf32>
    %cst_58 = arith.constant 1.000000e+00 : f32
    %249 = vector.broadcast %cst_58 : f32 to vector<8x128xf32>
    %250 = arith.subf %249, %243 : vector<8x128xf32>
    %251 = arith.mulf %250, %248 : vector<8x128xf32>
    %252 = arith.mulf %243, %219 : vector<8x128xf32>
    %253 = arith.addf %251, %252 : vector<8x128xf32>
    %c7_i32 = arith.constant 7 : i32
    %254 = arith.index_cast %c7_i32 : i32 to index
    %c0_59 = arith.constant 0 : index
    %c0_60 = arith.constant 0 : index
    %255 = vector.load %arg8[%254, %c0_59, %c0_60] : memref<8x8x384xbf16, #tpu.memory_space<vmem>>, vector<1x8x384xbf16>
    %256 = vector.shape_cast %255 : vector<1x8x384xbf16> to vector<8x384xbf16>
    %257 = arith.extf %256 : vector<8x384xbf16> to vector<8x384xf32>
    %258 = arith.truncf %253 : vector<8x128xf32> to vector<8x128xbf16>
    %cst_61 = arith.constant dense<0.000000e+00> : vector<8x384xf32>
    %259 = tpu.matmul %258, %13, %cst_61 {dimension_numbers = #tpu.dot_dimension_numbers<[1], [0], [0], [1], [0, 0, 1, 1], [], []>} : vector<8x128xbf16>, vector<128x384xbf16>, vector<8x384xf32> -> vector<8x384xf32>
    %260 = vector.broadcast %14 : vector<1x384xf32> to vector<8x384xf32>
    %261 = arith.addf %259, %260 : vector<8x384xf32>
    %262 = vector.extract_strided_slice %257 {offsets = [0, 0], sizes = [8, 128], strides = [1, 1]} : vector<8x384xf32> to vector<8x128xf32>
    %263 = vector.extract_strided_slice %261 {offsets = [0, 0], sizes = [8, 128], strides = [1, 1]} : vector<8x384xf32> to vector<8x128xf32>
    %264 = arith.addf %262, %263 : vector<8x128xf32>
    %265 = arith.negf %264 : vector<8x128xf32>
    %266 = math.exp %265 : vector<8x128xf32>
    %cst_62 = arith.constant 1.000000e+00 : f32
    %267 = vector.broadcast %cst_62 : f32 to vector<8x128xf32>
    %268 = arith.addf %267, %266 : vector<8x128xf32>
    %269 = arith.divf %267, %268 : vector<8x128xf32>
    %270 = vector.extract_strided_slice %257 {offsets = [0, 128], sizes = [8, 128], strides = [1, 1]} : vector<8x384xf32> to vector<8x128xf32>
    %271 = vector.extract_strided_slice %261 {offsets = [0, 128], sizes = [8, 128], strides = [1, 1]} : vector<8x384xf32> to vector<8x128xf32>
    %272 = arith.addf %270, %271 : vector<8x128xf32>
    %273 = arith.negf %272 : vector<8x128xf32>
    %274 = math.exp %273 : vector<8x128xf32>
    %cst_63 = arith.constant 1.000000e+00 : f32
    %275 = vector.broadcast %cst_63 : f32 to vector<8x128xf32>
    %276 = arith.addf %275, %274 : vector<8x128xf32>
    %277 = arith.divf %275, %276 : vector<8x128xf32>
    %278 = vector.extract_strided_slice %257 {offsets = [0, 256], sizes = [8, 128], strides = [1, 1]} : vector<8x384xf32> to vector<8x128xf32>
    %279 = vector.extract_strided_slice %261 {offsets = [0, 256], sizes = [8, 128], strides = [1, 1]} : vector<8x384xf32> to vector<8x128xf32>
    %280 = arith.mulf %269, %279 : vector<8x128xf32>
    %281 = arith.addf %278, %280 : vector<8x128xf32>
    %282 = math.tanh %281 : vector<8x128xf32>
    %cst_64 = arith.constant 1.000000e+00 : f32
    %283 = vector.broadcast %cst_64 : f32 to vector<8x128xf32>
    %284 = arith.subf %283, %277 : vector<8x128xf32>
    %285 = arith.mulf %284, %282 : vector<8x128xf32>
    %286 = arith.mulf %277, %253 : vector<8x128xf32>
    %287 = arith.addf %285, %286 : vector<8x128xf32>
    %c8_i32 = arith.constant 8 : i32
    %c0_65 = arith.constant 0 : index
    %c0_66 = arith.constant 0 : index
    %288 = vector.load %arg7[%c0_65, %c0_66] : memref<8x128xf32, #tpu.memory_space<vmem>>, vector<8x128xf32>
    tpu.vector_store %arg7[%c0_65, %c0_66], %287 {strides = array<i32>} : memref<8x128xf32, #tpu.memory_space<vmem>>, vector<8x128xf32>,
    return
  }
  func.func @transform_0(%arg0: i32, %arg1: i32) -> (i32, i32, i32) {
    %c0_i32 = arith.constant 0 : i32
    %c0_i32_0 = arith.constant 0 : i32
    return %arg1, %arg0, %c0_i32 : i32, i32, i32
  }
  func.func @transform_1(%arg0: i32, %arg1: i32) -> (i32, i32) {
    %c0_i32 = arith.constant 0 : i32
    %c0_i32_0 = arith.constant 0 : i32
    %c0_i32_1 = arith.constant 0 : i32
    return %c0_i32, %c0_i32_0 : i32, i32
  }
  func.func @transform_2(%arg0: i32, %arg1: i32) -> (i32, i32) {
    %c0_i32 = arith.constant 0 : i32
    %c0_i32_0 = arith.constant 0 : i32
    %c0_i32_1 = arith.constant 0 : i32
    return %c0_i32, %c0_i32_0 : i32, i32
  }
  func.func @transform_3(%arg0: i32, %arg1: i32) -> (i32, i32) {
    %c0_i32 = arith.constant 0 : i32
    %c0_i32_0 = arith.constant 0 : i32
    %c0_i32_1 = arith.constant 0 : i32
    return %c0_i32, %c0_i32_0 : i32, i32
  }
  func.func @transform_4(%arg0: i32, %arg1: i32) -> (i32, i32) {
    %c0_i32 = arith.constant 0 : i32
    %c0_i32_0 = arith.constant 0 : i32
    %c0_i32_1 = arith.constant 0 : i32
    return %c0_i32, %c0_i32_0 : i32, i32
  }
  func.func @transform_5(%arg0: i32, %arg1: i32) -> (i32, i32) {
    %c0_i32 = arith.constant 0 : i32
    %c0_i32_0 = arith.constant 0 : i32
    return %arg0, %c0_i32 : i32, i32
  }
}

module attributes {stable_mosaic.version = 11 : i64} {
  func.func @_gru_kernel(%arg0: i32, %arg1: i32, %arg2: memref<6x8x128xbf16, #tpu.memory_space<vmem>>, %arg3: memref<128x384xbf16, #tpu.memory_space<vmem>>, %arg4: memref<128x384xbf16, #tpu.memory_space<vmem>>, %arg5: memref<1x384xf32, #tpu.memory_space<vmem>>, %arg6: memref<1x384xf32, #tpu.memory_space<vmem>>, %arg7: memref<8x128xf32, #tpu.memory_space<vmem>>, %arg8: memref<6x8x384xbf16, #tpu.memory_space<vmem>>) attributes {dimension_semantics = [#tpu.dimension_semantics<parallel>, #tpu.dimension_semantics<arbitrary>], iteration_bounds = array<i64: 1, 1>, scalar_prefetch = 0 : i64, scratch_operands = 1 : i64, tpu.core_type = #tpu.core_type<tc>, window_params = [{transform_indices = @transform_0, window_bounds = array<i64: 6, 8, 128>}, {pipeline_mode = #tpu.pipeline_mode<synchronous>, transform_indices = @transform_1, window_bounds = array<i64: 128, 384>}, {pipeline_mode = #tpu.pipeline_mode<synchronous>, transform_indices = @transform_2, window_bounds = array<i64: 128, 384>}, {pipeline_mode = #tpu.pipeline_mode<synchronous>, transform_indices = @transform_3, window_bounds = array<i64: 1, 384>}, {pipeline_mode = #tpu.pipeline_mode<synchronous>, transform_indices = @transform_4, window_bounds = array<i64: 1, 384>}, {transform_indices = @transform_5, window_bounds = array<i64: 8, 128>}]} {
    %c0 = arith.constant 0 : index
    %c0_0 = arith.constant 0 : index
    %c0_1 = arith.constant 0 : index
    %0 = vector.load %arg2[%c0, %c0_0, %c0_1] : memref<6x8x128xbf16, #tpu.memory_space<vmem>>, vector<6x8x128xbf16>
    %1 = vector.shape_cast %0 : vector<6x8x128xbf16> to vector<48x128xbf16>
    %c0_2 = arith.constant 0 : index
    %c0_3 = arith.constant 0 : index
    %2 = vector.load %arg3[%c0_2, %c0_3] : memref<128x384xbf16, #tpu.memory_space<vmem>>, vector<128x384xbf16>
    %cst = arith.constant dense<0.000000e+00> : vector<48x384xf32>
    %3 = tpu.matmul %1, %2, %cst {dimension_numbers = #tpu.dot_dimension_numbers<[1], [0], [0], [1], [0, 0, 1, 1], [], []>} : vector<48x128xbf16>, vector<128x384xbf16>, vector<48x384xf32> -> vector<48x384xf32>
    %c0_4 = arith.constant 0 : index
    %c0_5 = arith.constant 0 : index
    %4 = vector.load %arg5[%c0_4, %c0_5] : memref<1x384xf32, #tpu.memory_space<vmem>>, vector<1x384xf32>
    %5 = vector.broadcast %4 : vector<1x384xf32> to vector<48x384xf32>
    %6 = arith.addf %3, %5 : vector<48x384xf32>
    %7 = vector.shape_cast %6 : vector<48x384xf32> to vector<6x8x384xf32>
    %8 = arith.truncf %7 : vector<6x8x384xf32> to vector<6x8x384xbf16>
    %c0_6 = arith.constant 0 : index
    %c0_7 = arith.constant 0 : index
    %c0_8 = arith.constant 0 : index
    %9 = vector.load %arg8[%c0_6, %c0_7, %c0_8] : memref<6x8x384xbf16, #tpu.memory_space<vmem>>, vector<6x8x384xbf16>
    tpu.vector_store %arg8[%c0_6, %c0_7, %c0_8], %8 {strides = array<i32>} : memref<6x8x384xbf16, #tpu.memory_space<vmem>>, vector<6x8x384xbf16>,
    %c0_i32 = arith.constant 0 : i32
    %10 = arith.cmpi eq, %arg1, %c0_i32 : i32
    %11 = arith.extui %10 : i1 to i32
    %c0_i32_9 = arith.constant 0 : i32
    %12 = arith.cmpi ne, %11, %c0_i32_9 : i32
    scf.if %12 {
      %cst_55 = arith.constant 0.000000e+00 : f32
      %221 = vector.broadcast %cst_55 : f32 to vector<8x128xf32>
      %c0_56 = arith.constant 0 : index
      %c0_57 = arith.constant 0 : index
      %222 = vector.load %arg7[%c0_56, %c0_57] : memref<8x128xf32, #tpu.memory_space<vmem>>, vector<8x128xf32>
      tpu.vector_store %arg7[%c0_56, %c0_57], %221 {strides = array<i32>} : memref<8x128xf32, #tpu.memory_space<vmem>>, vector<8x128xf32>,
    } else {
    }
    %c0_10 = arith.constant 0 : index
    %c0_11 = arith.constant 0 : index
    %13 = vector.load %arg4[%c0_10, %c0_11] : memref<128x384xbf16, #tpu.memory_space<vmem>>, vector<128x384xbf16>
    %c0_12 = arith.constant 0 : index
    %c0_13 = arith.constant 0 : index
    %14 = vector.load %arg6[%c0_12, %c0_13] : memref<1x384xf32, #tpu.memory_space<vmem>>, vector<1x384xf32>
    %c0_14 = arith.constant 0 : index
    %c0_15 = arith.constant 0 : index
    %15 = vector.load %arg7[%c0_14, %c0_15] : memref<8x128xf32, #tpu.memory_space<vmem>>, vector<8x128xf32>
    %c0_i32_16 = arith.constant 0 : i32
    %16 = arith.index_cast %c0_i32_16 : i32 to index
    %c0_17 = arith.constant 0 : index
    %c0_18 = arith.constant 0 : index
    %17 = vector.load %arg8[%16, %c0_17, %c0_18] : memref<6x8x384xbf16, #tpu.memory_space<vmem>>, vector<1x8x384xbf16>
    %18 = vector.shape_cast %17 : vector<1x8x384xbf16> to vector<8x384xbf16>
    %19 = arith.extf %18 : vector<8x384xbf16> to vector<8x384xf32>
    %20 = arith.truncf %15 : vector<8x128xf32> to vector<8x128xbf16>
    %cst_19 = arith.constant dense<0.000000e+00> : vector<8x384xf32>
    %21 = tpu.matmul %20, %13, %cst_19 {dimension_numbers = #tpu.dot_dimension_numbers<[1], [0], [0], [1], [0, 0, 1, 1], [], []>} : vector<8x128xbf16>, vector<128x384xbf16>, vector<8x384xf32> -> vector<8x384xf32>
    %22 = vector.broadcast %14 : vector<1x384xf32> to vector<8x384xf32>
    %23 = arith.addf %21, %22 : vector<8x384xf32>
    %24 = vector.extract_strided_slice %19 {offsets = [0, 0], sizes = [8, 128], strides = [1, 1]} : vector<8x384xf32> to vector<8x128xf32>
    %25 = vector.extract_strided_slice %23 {offsets = [0, 0], sizes = [8, 128], strides = [1, 1]} : vector<8x384xf32> to vector<8x128xf32>
    %26 = arith.addf %24, %25 : vector<8x128xf32>
    %27 = arith.negf %26 : vector<8x128xf32>
    %28 = math.exp %27 : vector<8x128xf32>
    %cst_20 = arith.constant 1.000000e+00 : f32
    %29 = vector.broadcast %cst_20 : f32 to vector<8x128xf32>
    %30 = arith.addf %29, %28 : vector<8x128xf32>
    %31 = arith.divf %29, %30 : vector<8x128xf32>
    %32 = vector.extract_strided_slice %19 {offsets = [0, 128], sizes = [8, 128], strides = [1, 1]} : vector<8x384xf32> to vector<8x128xf32>
    %33 = vector.extract_strided_slice %23 {offsets = [0, 128], sizes = [8, 128], strides = [1, 1]} : vector<8x384xf32> to vector<8x128xf32>
    %34 = arith.addf %32, %33 : vector<8x128xf32>
    %35 = arith.negf %34 : vector<8x128xf32>
    %36 = math.exp %35 : vector<8x128xf32>
    %cst_21 = arith.constant 1.000000e+00 : f32
    %37 = vector.broadcast %cst_21 : f32 to vector<8x128xf32>
    %38 = arith.addf %37, %36 : vector<8x128xf32>
    %39 = arith.divf %37, %38 : vector<8x128xf32>
    %40 = vector.extract_strided_slice %19 {offsets = [0, 256], sizes = [8, 128], strides = [1, 1]} : vector<8x384xf32> to vector<8x128xf32>
    %41 = vector.extract_strided_slice %23 {offsets = [0, 256], sizes = [8, 128], strides = [1, 1]} : vector<8x384xf32> to vector<8x128xf32>
    %42 = arith.mulf %31, %41 : vector<8x128xf32>
    %43 = arith.addf %40, %42 : vector<8x128xf32>
    %44 = math.tanh %43 : vector<8x128xf32>
    %cst_22 = arith.constant 1.000000e+00 : f32
    %45 = vector.broadcast %cst_22 : f32 to vector<8x128xf32>
    %46 = arith.subf %45, %39 : vector<8x128xf32>
    %47 = arith.mulf %46, %44 : vector<8x128xf32>
    %48 = arith.mulf %39, %15 : vector<8x128xf32>
    %49 = arith.addf %47, %48 : vector<8x128xf32>
    %c1_i32 = arith.constant 1 : i32
    %50 = arith.index_cast %c1_i32 : i32 to index
    %c0_23 = arith.constant 0 : index
    %c0_24 = arith.constant 0 : index
    %51 = vector.load %arg8[%50, %c0_23, %c0_24] : memref<6x8x384xbf16, #tpu.memory_space<vmem>>, vector<1x8x384xbf16>
    %52 = vector.shape_cast %51 : vector<1x8x384xbf16> to vector<8x384xbf16>
    %53 = arith.extf %52 : vector<8x384xbf16> to vector<8x384xf32>
    %54 = arith.truncf %49 : vector<8x128xf32> to vector<8x128xbf16>
    %cst_25 = arith.constant dense<0.000000e+00> : vector<8x384xf32>
    %55 = tpu.matmul %54, %13, %cst_25 {dimension_numbers = #tpu.dot_dimension_numbers<[1], [0], [0], [1], [0, 0, 1, 1], [], []>} : vector<8x128xbf16>, vector<128x384xbf16>, vector<8x384xf32> -> vector<8x384xf32>
    %56 = vector.broadcast %14 : vector<1x384xf32> to vector<8x384xf32>
    %57 = arith.addf %55, %56 : vector<8x384xf32>
    %58 = vector.extract_strided_slice %53 {offsets = [0, 0], sizes = [8, 128], strides = [1, 1]} : vector<8x384xf32> to vector<8x128xf32>
    %59 = vector.extract_strided_slice %57 {offsets = [0, 0], sizes = [8, 128], strides = [1, 1]} : vector<8x384xf32> to vector<8x128xf32>
    %60 = arith.addf %58, %59 : vector<8x128xf32>
    %61 = arith.negf %60 : vector<8x128xf32>
    %62 = math.exp %61 : vector<8x128xf32>
    %cst_26 = arith.constant 1.000000e+00 : f32
    %63 = vector.broadcast %cst_26 : f32 to vector<8x128xf32>
    %64 = arith.addf %63, %62 : vector<8x128xf32>
    %65 = arith.divf %63, %64 : vector<8x128xf32>
    %66 = vector.extract_strided_slice %53 {offsets = [0, 128], sizes = [8, 128], strides = [1, 1]} : vector<8x384xf32> to vector<8x128xf32>
    %67 = vector.extract_strided_slice %57 {offsets = [0, 128], sizes = [8, 128], strides = [1, 1]} : vector<8x384xf32> to vector<8x128xf32>
    %68 = arith.addf %66, %67 : vector<8x128xf32>
    %69 = arith.negf %68 : vector<8x128xf32>
    %70 = math.exp %69 : vector<8x128xf32>
    %cst_27 = arith.constant 1.000000e+00 : f32
    %71 = vector.broadcast %cst_27 : f32 to vector<8x128xf32>
    %72 = arith.addf %71, %70 : vector<8x128xf32>
    %73 = arith.divf %71, %72 : vector<8x128xf32>
    %74 = vector.extract_strided_slice %53 {offsets = [0, 256], sizes = [8, 128], strides = [1, 1]} : vector<8x384xf32> to vector<8x128xf32>
    %75 = vector.extract_strided_slice %57 {offsets = [0, 256], sizes = [8, 128], strides = [1, 1]} : vector<8x384xf32> to vector<8x128xf32>
    %76 = arith.mulf %65, %75 : vector<8x128xf32>
    %77 = arith.addf %74, %76 : vector<8x128xf32>
    %78 = math.tanh %77 : vector<8x128xf32>
    %cst_28 = arith.constant 1.000000e+00 : f32
    %79 = vector.broadcast %cst_28 : f32 to vector<8x128xf32>
    %80 = arith.subf %79, %73 : vector<8x128xf32>
    %81 = arith.mulf %80, %78 : vector<8x128xf32>
    %82 = arith.mulf %73, %49 : vector<8x128xf32>
    %83 = arith.addf %81, %82 : vector<8x128xf32>
    %c2_i32 = arith.constant 2 : i32
    %84 = arith.index_cast %c2_i32 : i32 to index
    %c0_29 = arith.constant 0 : index
    %c0_30 = arith.constant 0 : index
    %85 = vector.load %arg8[%84, %c0_29, %c0_30] : memref<6x8x384xbf16, #tpu.memory_space<vmem>>, vector<1x8x384xbf16>
    %86 = vector.shape_cast %85 : vector<1x8x384xbf16> to vector<8x384xbf16>
    %87 = arith.extf %86 : vector<8x384xbf16> to vector<8x384xf32>
    %88 = arith.truncf %83 : vector<8x128xf32> to vector<8x128xbf16>
    %cst_31 = arith.constant dense<0.000000e+00> : vector<8x384xf32>
    %89 = tpu.matmul %88, %13, %cst_31 {dimension_numbers = #tpu.dot_dimension_numbers<[1], [0], [0], [1], [0, 0, 1, 1], [], []>} : vector<8x128xbf16>, vector<128x384xbf16>, vector<8x384xf32> -> vector<8x384xf32>
    %90 = vector.broadcast %14 : vector<1x384xf32> to vector<8x384xf32>
    %91 = arith.addf %89, %90 : vector<8x384xf32>
    %92 = vector.extract_strided_slice %87 {offsets = [0, 0], sizes = [8, 128], strides = [1, 1]} : vector<8x384xf32> to vector<8x128xf32>
    %93 = vector.extract_strided_slice %91 {offsets = [0, 0], sizes = [8, 128], strides = [1, 1]} : vector<8x384xf32> to vector<8x128xf32>
    %94 = arith.addf %92, %93 : vector<8x128xf32>
    %95 = arith.negf %94 : vector<8x128xf32>
    %96 = math.exp %95 : vector<8x128xf32>
    %cst_32 = arith.constant 1.000000e+00 : f32
    %97 = vector.broadcast %cst_32 : f32 to vector<8x128xf32>
    %98 = arith.addf %97, %96 : vector<8x128xf32>
    %99 = arith.divf %97, %98 : vector<8x128xf32>
    %100 = vector.extract_strided_slice %87 {offsets = [0, 128], sizes = [8, 128], strides = [1, 1]} : vector<8x384xf32> to vector<8x128xf32>
    %101 = vector.extract_strided_slice %91 {offsets = [0, 128], sizes = [8, 128], strides = [1, 1]} : vector<8x384xf32> to vector<8x128xf32>
    %102 = arith.addf %100, %101 : vector<8x128xf32>
    %103 = arith.negf %102 : vector<8x128xf32>
    %104 = math.exp %103 : vector<8x128xf32>
    %cst_33 = arith.constant 1.000000e+00 : f32
    %105 = vector.broadcast %cst_33 : f32 to vector<8x128xf32>
    %106 = arith.addf %105, %104 : vector<8x128xf32>
    %107 = arith.divf %105, %106 : vector<8x128xf32>
    %108 = vector.extract_strided_slice %87 {offsets = [0, 256], sizes = [8, 128], strides = [1, 1]} : vector<8x384xf32> to vector<8x128xf32>
    %109 = vector.extract_strided_slice %91 {offsets = [0, 256], sizes = [8, 128], strides = [1, 1]} : vector<8x384xf32> to vector<8x128xf32>
    %110 = arith.mulf %99, %109 : vector<8x128xf32>
    %111 = arith.addf %108, %110 : vector<8x128xf32>
    %112 = math.tanh %111 : vector<8x128xf32>
    %cst_34 = arith.constant 1.000000e+00 : f32
    %113 = vector.broadcast %cst_34 : f32 to vector<8x128xf32>
    %114 = arith.subf %113, %107 : vector<8x128xf32>
    %115 = arith.mulf %114, %112 : vector<8x128xf32>
    %116 = arith.mulf %107, %83 : vector<8x128xf32>
    %117 = arith.addf %115, %116 : vector<8x128xf32>
    %c3_i32 = arith.constant 3 : i32
    %118 = arith.index_cast %c3_i32 : i32 to index
    %c0_35 = arith.constant 0 : index
    %c0_36 = arith.constant 0 : index
    %119 = vector.load %arg8[%118, %c0_35, %c0_36] : memref<6x8x384xbf16, #tpu.memory_space<vmem>>, vector<1x8x384xbf16>
    %120 = vector.shape_cast %119 : vector<1x8x384xbf16> to vector<8x384xbf16>
    %121 = arith.extf %120 : vector<8x384xbf16> to vector<8x384xf32>
    %122 = arith.truncf %117 : vector<8x128xf32> to vector<8x128xbf16>
    %cst_37 = arith.constant dense<0.000000e+00> : vector<8x384xf32>
    %123 = tpu.matmul %122, %13, %cst_37 {dimension_numbers = #tpu.dot_dimension_numbers<[1], [0], [0], [1], [0, 0, 1, 1], [], []>} : vector<8x128xbf16>, vector<128x384xbf16>, vector<8x384xf32> -> vector<8x384xf32>
    %124 = vector.broadcast %14 : vector<1x384xf32> to vector<8x384xf32>
    %125 = arith.addf %123, %124 : vector<8x384xf32>
    %126 = vector.extract_strided_slice %121 {offsets = [0, 0], sizes = [8, 128], strides = [1, 1]} : vector<8x384xf32> to vector<8x128xf32>
    %127 = vector.extract_strided_slice %125 {offsets = [0, 0], sizes = [8, 128], strides = [1, 1]} : vector<8x384xf32> to vector<8x128xf32>
    %128 = arith.addf %126, %127 : vector<8x128xf32>
    %129 = arith.negf %128 : vector<8x128xf32>
    %130 = math.exp %129 : vector<8x128xf32>
    %cst_38 = arith.constant 1.000000e+00 : f32
    %131 = vector.broadcast %cst_38 : f32 to vector<8x128xf32>
    %132 = arith.addf %131, %130 : vector<8x128xf32>
    %133 = arith.divf %131, %132 : vector<8x128xf32>
    %134 = vector.extract_strided_slice %121 {offsets = [0, 128], sizes = [8, 128], strides = [1, 1]} : vector<8x384xf32> to vector<8x128xf32>
    %135 = vector.extract_strided_slice %125 {offsets = [0, 128], sizes = [8, 128], strides = [1, 1]} : vector<8x384xf32> to vector<8x128xf32>
    %136 = arith.addf %134, %135 : vector<8x128xf32>
    %137 = arith.negf %136 : vector<8x128xf32>
    %138 = math.exp %137 : vector<8x128xf32>
    %cst_39 = arith.constant 1.000000e+00 : f32
    %139 = vector.broadcast %cst_39 : f32 to vector<8x128xf32>
    %140 = arith.addf %139, %138 : vector<8x128xf32>
    %141 = arith.divf %139, %140 : vector<8x128xf32>
    %142 = vector.extract_strided_slice %121 {offsets = [0, 256], sizes = [8, 128], strides = [1, 1]} : vector<8x384xf32> to vector<8x128xf32>
    %143 = vector.extract_strided_slice %125 {offsets = [0, 256], sizes = [8, 128], strides = [1, 1]} : vector<8x384xf32> to vector<8x128xf32>
    %144 = arith.mulf %133, %143 : vector<8x128xf32>
    %145 = arith.addf %142, %144 : vector<8x128xf32>
    %146 = math.tanh %145 : vector<8x128xf32>
    %cst_40 = arith.constant 1.000000e+00 : f32
    %147 = vector.broadcast %cst_40 : f32 to vector<8x128xf32>
    %148 = arith.subf %147, %141 : vector<8x128xf32>
    %149 = arith.mulf %148, %146 : vector<8x128xf32>
    %150 = arith.mulf %141, %117 : vector<8x128xf32>
    %151 = arith.addf %149, %150 : vector<8x128xf32>
    %c4_i32 = arith.constant 4 : i32
    %152 = arith.index_cast %c4_i32 : i32 to index
    %c0_41 = arith.constant 0 : index
    %c0_42 = arith.constant 0 : index
    %153 = vector.load %arg8[%152, %c0_41, %c0_42] : memref<6x8x384xbf16, #tpu.memory_space<vmem>>, vector<1x8x384xbf16>
    %154 = vector.shape_cast %153 : vector<1x8x384xbf16> to vector<8x384xbf16>
    %155 = arith.extf %154 : vector<8x384xbf16> to vector<8x384xf32>
    %156 = arith.truncf %151 : vector<8x128xf32> to vector<8x128xbf16>
    %cst_43 = arith.constant dense<0.000000e+00> : vector<8x384xf32>
    %157 = tpu.matmul %156, %13, %cst_43 {dimension_numbers = #tpu.dot_dimension_numbers<[1], [0], [0], [1], [0, 0, 1, 1], [], []>} : vector<8x128xbf16>, vector<128x384xbf16>, vector<8x384xf32> -> vector<8x384xf32>
    %158 = vector.broadcast %14 : vector<1x384xf32> to vector<8x384xf32>
    %159 = arith.addf %157, %158 : vector<8x384xf32>
    %160 = vector.extract_strided_slice %155 {offsets = [0, 0], sizes = [8, 128], strides = [1, 1]} : vector<8x384xf32> to vector<8x128xf32>
    %161 = vector.extract_strided_slice %159 {offsets = [0, 0], sizes = [8, 128], strides = [1, 1]} : vector<8x384xf32> to vector<8x128xf32>
    %162 = arith.addf %160, %161 : vector<8x128xf32>
    %163 = arith.negf %162 : vector<8x128xf32>
    %164 = math.exp %163 : vector<8x128xf32>
    %cst_44 = arith.constant 1.000000e+00 : f32
    %165 = vector.broadcast %cst_44 : f32 to vector<8x128xf32>
    %166 = arith.addf %165, %164 : vector<8x128xf32>
    %167 = arith.divf %165, %166 : vector<8x128xf32>
    %168 = vector.extract_strided_slice %155 {offsets = [0, 128], sizes = [8, 128], strides = [1, 1]} : vector<8x384xf32> to vector<8x128xf32>
    %169 = vector.extract_strided_slice %159 {offsets = [0, 128], sizes = [8, 128], strides = [1, 1]} : vector<8x384xf32> to vector<8x128xf32>
    %170 = arith.addf %168, %169 : vector<8x128xf32>
    %171 = arith.negf %170 : vector<8x128xf32>
    %172 = math.exp %171 : vector<8x128xf32>
    %cst_45 = arith.constant 1.000000e+00 : f32
    %173 = vector.broadcast %cst_45 : f32 to vector<8x128xf32>
    %174 = arith.addf %173, %172 : vector<8x128xf32>
    %175 = arith.divf %173, %174 : vector<8x128xf32>
    %176 = vector.extract_strided_slice %155 {offsets = [0, 256], sizes = [8, 128], strides = [1, 1]} : vector<8x384xf32> to vector<8x128xf32>
    %177 = vector.extract_strided_slice %159 {offsets = [0, 256], sizes = [8, 128], strides = [1, 1]} : vector<8x384xf32> to vector<8x128xf32>
    %178 = arith.mulf %167, %177 : vector<8x128xf32>
    %179 = arith.addf %176, %178 : vector<8x128xf32>
    %180 = math.tanh %179 : vector<8x128xf32>
    %cst_46 = arith.constant 1.000000e+00 : f32
    %181 = vector.broadcast %cst_46 : f32 to vector<8x128xf32>
    %182 = arith.subf %181, %175 : vector<8x128xf32>
    %183 = arith.mulf %182, %180 : vector<8x128xf32>
    %184 = arith.mulf %175, %151 : vector<8x128xf32>
    %185 = arith.addf %183, %184 : vector<8x128xf32>
    %c5_i32 = arith.constant 5 : i32
    %186 = arith.index_cast %c5_i32 : i32 to index
    %c0_47 = arith.constant 0 : index
    %c0_48 = arith.constant 0 : index
    %187 = vector.load %arg8[%186, %c0_47, %c0_48] : memref<6x8x384xbf16, #tpu.memory_space<vmem>>, vector<1x8x384xbf16>
    %188 = vector.shape_cast %187 : vector<1x8x384xbf16> to vector<8x384xbf16>
    %189 = arith.extf %188 : vector<8x384xbf16> to vector<8x384xf32>
    %190 = arith.truncf %185 : vector<8x128xf32> to vector<8x128xbf16>
    %cst_49 = arith.constant dense<0.000000e+00> : vector<8x384xf32>
    %191 = tpu.matmul %190, %13, %cst_49 {dimension_numbers = #tpu.dot_dimension_numbers<[1], [0], [0], [1], [0, 0, 1, 1], [], []>} : vector<8x128xbf16>, vector<128x384xbf16>, vector<8x384xf32> -> vector<8x384xf32>
    %192 = vector.broadcast %14 : vector<1x384xf32> to vector<8x384xf32>
    %193 = arith.addf %191, %192 : vector<8x384xf32>
    %194 = vector.extract_strided_slice %189 {offsets = [0, 0], sizes = [8, 128], strides = [1, 1]} : vector<8x384xf32> to vector<8x128xf32>
    %195 = vector.extract_strided_slice %193 {offsets = [0, 0], sizes = [8, 128], strides = [1, 1]} : vector<8x384xf32> to vector<8x128xf32>
    %196 = arith.addf %194, %195 : vector<8x128xf32>
    %197 = arith.negf %196 : vector<8x128xf32>
    %198 = math.exp %197 : vector<8x128xf32>
    %cst_50 = arith.constant 1.000000e+00 : f32
    %199 = vector.broadcast %cst_50 : f32 to vector<8x128xf32>
    %200 = arith.addf %199, %198 : vector<8x128xf32>
    %201 = arith.divf %199, %200 : vector<8x128xf32>
    %202 = vector.extract_strided_slice %189 {offsets = [0, 128], sizes = [8, 128], strides = [1, 1]} : vector<8x384xf32> to vector<8x128xf32>
    %203 = vector.extract_strided_slice %193 {offsets = [0, 128], sizes = [8, 128], strides = [1, 1]} : vector<8x384xf32> to vector<8x128xf32>
    %204 = arith.addf %202, %203 : vector<8x128xf32>
    %205 = arith.negf %204 : vector<8x128xf32>
    %206 = math.exp %205 : vector<8x128xf32>
    %cst_51 = arith.constant 1.000000e+00 : f32
    %207 = vector.broadcast %cst_51 : f32 to vector<8x128xf32>
    %208 = arith.addf %207, %206 : vector<8x128xf32>
    %209 = arith.divf %207, %208 : vector<8x128xf32>
    %210 = vector.extract_strided_slice %189 {offsets = [0, 256], sizes = [8, 128], strides = [1, 1]} : vector<8x384xf32> to vector<8x128xf32>
    %211 = vector.extract_strided_slice %193 {offsets = [0, 256], sizes = [8, 128], strides = [1, 1]} : vector<8x384xf32> to vector<8x128xf32>
    %212 = arith.mulf %201, %211 : vector<8x128xf32>
    %213 = arith.addf %210, %212 : vector<8x128xf32>
    %214 = math.tanh %213 : vector<8x128xf32>
    %cst_52 = arith.constant 1.000000e+00 : f32
    %215 = vector.broadcast %cst_52 : f32 to vector<8x128xf32>
    %216 = arith.subf %215, %209 : vector<8x128xf32>
    %217 = arith.mulf %216, %214 : vector<8x128xf32>
    %218 = arith.mulf %209, %185 : vector<8x128xf32>
    %219 = arith.addf %217, %218 : vector<8x128xf32>
    %c6_i32 = arith.constant 6 : i32
    %c0_53 = arith.constant 0 : index
    %c0_54 = arith.constant 0 : index
    %220 = vector.load %arg7[%c0_53, %c0_54] : memref<8x128xf32, #tpu.memory_space<vmem>>, vector<8x128xf32>
    tpu.vector_store %arg7[%c0_53, %c0_54], %219 {strides = array<i32>} : memref<8x128xf32, #tpu.memory_space<vmem>>, vector<8x128xf32>,
    return
  }
  func.func @transform_0(%arg0: i32, %arg1: i32) -> (i32, i32, i32) {
    %c0_i32 = arith.constant 0 : i32
    %c0_i32_0 = arith.constant 0 : i32
    return %arg1, %arg0, %c0_i32 : i32, i32, i32
  }
  func.func @transform_1(%arg0: i32, %arg1: i32) -> (i32, i32) {
    %c0_i32 = arith.constant 0 : i32
    %c0_i32_0 = arith.constant 0 : i32
    %c0_i32_1 = arith.constant 0 : i32
    return %c0_i32, %c0_i32_0 : i32, i32
  }
  func.func @transform_2(%arg0: i32, %arg1: i32) -> (i32, i32) {
    %c0_i32 = arith.constant 0 : i32
    %c0_i32_0 = arith.constant 0 : i32
    %c0_i32_1 = arith.constant 0 : i32
    return %c0_i32, %c0_i32_0 : i32, i32
  }
  func.func @transform_3(%arg0: i32, %arg1: i32) -> (i32, i32) {
    %c0_i32 = arith.constant 0 : i32
    %c0_i32_0 = arith.constant 0 : i32
    %c0_i32_1 = arith.constant 0 : i32
    return %c0_i32, %c0_i32_0 : i32, i32
  }
  func.func @transform_4(%arg0: i32, %arg1: i32) -> (i32, i32) {
    %c0_i32 = arith.constant 0 : i32
    %c0_i32_0 = arith.constant 0 : i32
    %c0_i32_1 = arith.constant 0 : i32
    return %c0_i32, %c0_i32_0 : i32, i32
  }
  func.func @transform_5(%arg0: i32, %arg1: i32) -> (i32, i32) {
    %c0_i32 = arith.constant 0 : i32
    %c0_i32_0 = arith.constant 0 : i32
    return %arg0, %c0_i32 : i32, i32
  }
}

module attributes {stable_mosaic.version = 11 : i64} {
  func.func @_score_kernel(%arg0: memref<8x128xf32, #tpu.memory_space<vmem>>, %arg1: memref<128x128xbf16, #tpu.memory_space<vmem>>, %arg2: memref<128x128xbf16, #tpu.memory_space<vmem>>, %arg3: memref<1xf32, #tpu.memory_space<smem>>, %arg4: memref<8x128xf32, #tpu.memory_space<vmem>>) attributes {dimension_semantics = [], scalar_prefetch = 0 : i64, scratch_operands = 0 : i64, tpu.core_type = #tpu.core_type<tc>} {
    %c0 = arith.constant 0 : index
    %c0_0 = arith.constant 0 : index
    %0 = vector.load %arg0[%c0, %c0_0] : memref<8x128xf32, #tpu.memory_space<vmem>>, vector<8x128xf32>
    %1 = arith.truncf %0 : vector<8x128xf32> to vector<8x128xbf16>
    %c0_1 = arith.constant 0 : index
    %c0_2 = arith.constant 0 : index
    %2 = vector.load %arg2[%c0_1, %c0_2] : memref<128x128xbf16, #tpu.memory_space<vmem>>, vector<128x128xbf16>
    %cst = arith.constant dense<0.000000e+00> : vector<8x128xf32>
    %3 = tpu.matmul %1, %2, %cst {dimension_numbers = #tpu.dot_dimension_numbers<[1], [0], [0], [1], [0, 0, 1, 1], [], []>} : vector<8x128xbf16>, vector<128x128xbf16>, vector<8x128xf32> -> vector<8x128xf32>
    %4 = arith.truncf %3 : vector<8x128xf32> to vector<8x128xbf16>
    %c0_3 = arith.constant 0 : index
    %c0_4 = arith.constant 0 : index
    %5 = vector.load %arg1[%c0_3, %c0_4] : memref<128x128xbf16, #tpu.memory_space<vmem>>, vector<128x128xbf16>
    %6 = tpu.transpose %5, [1, 0] : vector<128x128xbf16> -> vector<128x128xbf16>
    %cst_5 = arith.constant dense<0.000000e+00> : vector<8x128xf32>
    %7 = tpu.matmul %4, %6, %cst_5 {dimension_numbers = #tpu.dot_dimension_numbers<[1], [0], [0], [1], [0, 0, 1, 1], [], []>} : vector<8x128xbf16>, vector<128x128xbf16>, vector<8x128xf32> -> vector<8x128xf32>
    %c0_6 = arith.constant 0 : index
    %8 = memref.load %arg3[%c0_6] : memref<1xf32, #tpu.memory_space<smem>>
    %cst_7 = arith.constant 2.000000e+00 : f32
    %9 = arith.mulf %cst_7, %8 : f32
    %10 = vector.broadcast %9 : f32 to vector<8x128xf32>
    %11 = arith.addf %7, %10 : vector<8x128xf32>
    %12 = arith.negf %11 : vector<8x128xf32>
    %13 = math.exp %12 : vector<8x128xf32>
    %cst_8 = arith.constant 1.000000e+00 : f32
    %14 = vector.broadcast %cst_8 : f32 to vector<8x128xf32>
    %15 = arith.addf %14, %13 : vector<8x128xf32>
    %16 = arith.divf %14, %15 : vector<8x128xf32>
    %c0_9 = arith.constant 0 : index
    %c0_10 = arith.constant 0 : index
    %17 = vector.load %arg4[%c0_9, %c0_10] : memref<8x128xf32, #tpu.memory_space<vmem>>, vector<8x128xf32>
    tpu.vector_store %arg4[%c0_9, %c0_10], %16 {strides = array<i32>} : memref<8x128xf32, #tpu.memory_space<vmem>>, vector<8x128xf32>,
    return
  }
}

</mosaic_0001>

<llo_original>
// kernel: dual_encoder_forward.5
$region0: #{dual_encoder_forward.5}
  #allocation0 [shape = 'u32[]', space=smem, size = 0x4, offset = 0x4, fixed_abs, tag = 'smem constant byte address 0x4 - core index']
  #allocation1 [shape = 'u32[144,128]{1,0:T(1,128)}', space=vmem, size = 0x12000, scoped, tag = 'internal scratch']
  #allocation2 [shape = 'f32[1]{0:T(128)S(6)}', space=smem, size = 0x200, scoped, tag = 'scoped memory for dual_encoder_forward.5']
  %s0 = inlined_call_operand.vmem [shape: f32[8,128], index: 0, kind: input, shape index: {}]
  %s1 = inlined_call_operand.vmem [shape: bf16[128,128], index: 1, kind: input, shape index: {}]
  %s2 = inlined_call_operand.vmem [shape: bf16[128,128], index: 2, kind: input, shape index: {}]
  %s3 = inlined_call_operand.<no memory space> [shape: f32[1], index: 3, kind: input, shape index: {}]
  %s4 = inlined_call_operand.vmem [shape: f32[8,128], index: 4, kind: output, shape index: {}]
  %s5 = sld [smem:[#allocation0]]
  $region26: #{dual_encoder_forward.5} parent=0
    _
  %s7 = ssub.s32 1, %s5
  %s8 = scalar_select 0, %s7, %s5
  %9 = sst [smem:[#allocation2]] %s3
  // Predicated region
  $region2: #{dual_encoder_forward.5} parent=0 // pred_check
    _
  $region3: #{dual_encoder_forward.5} parent=0 // pred_check_branch
    %11 = sbr.rel (0) target = $region5
  $region4: #{dual_encoder_forward.5} parent=0 // pred_region
    _
  $region5: #{dual_encoder_forward.5} parent=0 // pred_fallthru
    _
  // Predicated region
  $region6: #{dual_encoder_forward.5} parent=0 // pred_check
    _
  $region7: #{dual_encoder_forward.5} parent=0 // pred_check_branch
    %13 = sbr.rel (0) target = $region9
  $region8: #{dual_encoder_forward.5} parent=0 // pred_region
    _
  $region9: #{dual_encoder_forward.5} parent=0 // pred_fallthru
    _
  // Predicated region
  $region10: #{dual_encoder_forward.5} parent=0 // pred_check
    _
  $region11: #{dual_encoder_forward.5} parent=0 // pred_check_branch
    %15 = sbr.rel (0) target = $region13
  $region12: #{dual_encoder_forward.5} parent=0 // pred_region
    _
  $region13: #{dual_encoder_forward.5} parent=0 // pred_fallthru
    _
  // Predicated region
  $region14: #{dual_encoder_forward.5} parent=0 // pred_check
    _
  $region15: #{dual_encoder_forward.5} parent=0 // pred_check_branch
    %17 = sbr.rel (0) target = $region17
  $region16: #{dual_encoder_forward.5} parent=0 // pred_region
    _
  $region17: #{dual_encoder_forward.5} parent=0 // pred_fallthru
    _
  %v19 = vld [vmem:[%s0] sm:$0xff]
  %v20 = vpack.c.bf16 %v19, %v19
  %v21 = vld [vmem:[%s2] sm:$0xf]
  %v22 = vld [vmem:[%s2 + $0x4] sm:$0xf]
  %v23 = vld [vmem:[%s2 + $0x8] sm:$0xf]
  %v24 = vld [vmem:[%s2 + $0xc] sm:$0xf]
  %v25 = vld [vmem:[%s2 + $0x10] sm:$0xf]
  %v26 = vld [vmem:[%s2 + $0x14] sm:$0xf]
  %v27 = vld [vmem:[%s2 + $0x18] sm:$0xf]
  %v28 = vld [vmem:[%s2 + $0x1c] sm:$0xf]
  %v29 = vld [vmem:[%s2 + $0x20] sm:$0xf]
  %v30 = vld [vmem:[%s2 + $0x24] sm:$0xf]
  %v31 = vld [vmem:[%s2 + $0x28] sm:$0xf]
  %v32 = vld [vmem:[%s2 + $0x2c] sm:$0xf]
  %v33 = vld [vmem:[%s2 + $0x30] sm:$0xf]
  %v34 = vld [vmem:[%s2 + $0x34] sm:$0xf]
  %v35 = vld [vmem:[%s2 + $0x38] sm:$0xf]
  %v36 = vld [vmem:[%s2 + $0x3c] sm:$0xf]
  %v53 = vunpack.c.l.b16 %v21
  %v54 = vunpack.c.l.b16 %v22
  %v55 = vunpack.c.l.b16 %v23
  %v56 = vunpack.c.l.b16 %v24
  %v57 = vunpack.c.l.b16 %v25
  %v58 = vunpack.c.l.b16 %v26
  %v59 = vunpack.c.l.b16 %v27
  %v60 = vunpack.c.l.b16 %v28
  %v61 = vunpack.c.l.b16 %v29
  %v62 = vunpack.c.l.b16 %v30
  %v63 = vunpack.c.l.b16 %v31
  %v64 = vunpack.c.l.b16 %v32
  %v65 = vunpack.c.l.b16 %v33
  %v66 = vunpack.c.l.b16 %v34
  %v67 = vunpack.c.l.b16 %v35
  %v68 = vunpack.c.l.b16 %v36
  %v69 = vpack.c.b16 %v54, %v53
  %v70 = vpack.c.b16 %v56, %v55
  %v71 = vpack.c.b16 %v58, %v57
  %v72 = vpack.c.b16 %v60, %v59
  %v73 = vpack.c.b16 %v62, %v61
  %v74 = vpack.c.b16 %v64, %v63
  %v75 = vpack.c.b16 %v66, %v65
  %v76 = vpack.c.b16 %v68, %v67
  %85 = vmatprep.subr.bf16.mxu0 0
  %86 = vmatpush1.bf16.msra.mxu0 %v69
  %87 = vmatprep.subr.bf16.mxu0 0
  %88 = vmatpush1.bf16.msra.mxu0 %v70
  %89 = vmatprep.subr.bf16.mxu0 0
  %90 = vmatpush1.bf16.msra.mxu0 %v71
  %91 = vmatprep.subr.bf16.mxu0 0
  %92 = vmatpush1.bf16.msra.mxu0 %v72
  %93 = vmatprep.subr.bf16.mxu0 0
  %94 = vmatpush1.bf16.msra.mxu0 %v73
  %95 = vmatprep.subr.bf16.mxu0 0
  %96 = vmatpush1.bf16.msra.mxu0 %v74
  %97 = vmatprep.subr.bf16.mxu0 0
  %98 = vmatpush1.bf16.msra.mxu0 %v75
  %99 = vmatprep.subr.bf16.mxu0 0
  %100 = vmatpush1.bf16.msra.mxu0 %v76
  %101 = vmatprep.subr.bf16.mxu0 0
  %102 = vmatpush1.bf16.msra.mxu0 0
  %103 = vmatprep.subr.bf16.mxu0 0
  %104 = vmatpush1.bf16.msra.mxu0 0
  %105 = vmatprep.subr.bf16.mxu0 0
  %106 = vmatpush1.bf16.msra.mxu0 0
  %107 = vmatprep.subr.bf16.mxu0 0
  %108 = vmatpush1.bf16.msra.mxu0 0
  %109 = vmatprep.subr.bf16.mxu0 0
  %110 = vmatpush1.bf16.msra.mxu0 0
  %111 = vmatprep.subr.bf16.mxu0 0
  %112 = vmatpush1.bf16.msra.mxu0 0
  %113 = vmatprep.subr.bf16.mxu0 0
  %114 = vmatpush1.bf16.msra.mxu0 0
  %115 = vmatprep.subr.bf16.mxu0 0
  %116 = vmatpush1.bf16.msra.mxu0 0
  %117 = vmatprep.mubr.bf16.mxu0 0
  %118 = vmatmul.mubr.bf16.gmra.mrb[0].mxu0 %v20
  %v119 = vpop.f32.mrb[0].mxu0
  %v120 = vadd.f32 0.0, %v119
  %v121 = vpop.f32.mrb[0].mxu0
  %v122 = vpop.f32.mrb[0].mxu0
  %v123 = vpop.f32.mrb[0].mxu0
  %124 = vdwg.mxu0
  %v125 = vpack.c.bf16 %v120, %v120
  %v126 = vld [vmem:[%s1] sm:$0xf]
  %v127 = vld [vmem:[%s1 + $0x4] sm:$0xf]
  %v128 = vld [vmem:[%s1 + $0x8] sm:$0xf]
  %v129 = vld [vmem:[%s1 + $0xc] sm:$0xf]
  %v130 = vld [vmem:[%s1 + $0x10] sm:$0xf]
  %v131 = vld [vmem:[%s1 + $0x14] sm:$0xf]
  %v132 = vld [vmem:[%s1 + $0x18] sm:$0xf]
  %v133 = vld [vmem:[%s1 + $0x1c] sm:$0xf]
  %v134 = vld [vmem:[%s1 + $0x20] sm:$0xf]
  %v135 = vld [vmem:[%s1 + $0x24] sm:$0xf]
  %v136 = vld [vmem:[%s1 + $0x28] sm:$0xf]
  %v137 = vld [vmem:[%s1 + $0x2c] sm:$0xf]
  %v138 = vld [vmem:[%s1 + $0x30] sm:$0xf]
  %v139 = vld [vmem:[%s1 + $0x34] sm:$0xf]
  %v140 = vld [vmem:[%s1 + $0x38] sm:$0xf]
  %v141 = vld [vmem:[%s1 + $0x3c] sm:$0xf]
  %s142 = sld [smem:[#allocation2]]
  %s143 = smul.f32 %s142, 2.0
  %v144 = vstv %s143
  %v161 = vunpack.c.l.b16 %v126
  %v162 = vunpack.c.l.b16 %v127
  %v163 = vunpack.c.l.b16 %v128
  %v164 = vunpack.c.l.b16 %v129
  %v165 = vunpack.c.l.b16 %v130
  %v166 = vunpack.c.l.b16 %v131
  %v167 = vunpack.c.l.b16 %v132
  %v168 = vunpack.c.l.b16 %v133
  %v169 = vunpack.c.l.b16 %v134
  %v170 = vunpack.c.l.b16 %v135
  %v171 = vunpack.c.l.b16 %v136
  %v172 = vunpack.c.l.b16 %v137
  %v173 = vunpack.c.l.b16 %v138
  %v174 = vunpack.c.l.b16 %v139
  %v175 = vunpack.c.l.b16 %v140
  %v176 = vunpack.c.l.b16 %v141
  %v177 = vpack.c.b16 %v162, %v161
  %v178 = vpack.c.b16 %v164, %v163
  %v179 = vpack.c.b16 %v166, %v165
  %v180 = vpack.c.b16 %v168, %v167
  %v181 = vpack.c.b16 %v170, %v169
  %v182 = vpack.c.b16 %v172, %v171
  %v183 = vpack.c.b16 %v174, %v173
  %v184 = vpack.c.b16 %v176, %v175
  %193 = vmatprep.subr.bf16.mxu0 0
  %194 = vmatpush1.bf16.xpose.msra.mxu0 %v177
  %195 = vmatprep.subr.bf16.mxu0 0
  %196 = vmatpush1.bf16.xpose.msra.mxu0 %v178
  %197 = vmatprep.subr.bf16.mxu0 0
  %198 = vmatpush1.bf16.xpose.msra.mxu0 %v179
  %199 = vmatprep.subr.bf16.mxu0 0
  %200 = vmatpush1.bf16.xpose.msra.mxu0 %v180
  %201 = vmatprep.subr.bf16.mxu0 0
  %202 = vmatpush1.bf16.xpose.msra.mxu0 %v181
  %203 = vmatprep.subr.bf16.mxu0 0
  %204 = vmatpush1.bf16.xpose.msra.mxu0 %v182
  %205 = vmatprep.subr.bf16.mxu0 0
  %206 = vmatpush1.bf16.xpose.msra.mxu0 %v183
  %207 = vmatprep.subr.bf16.mxu0 0
  %208 = vmatpush1.bf16.xpose.msra.mxu0 %v184
  %209 = vmatprep.subr.bf16.mxu0 0
  %210 = vmatpush1.bf16.xpose.msra.mxu0 0
  %211 = vmatprep.subr.bf16.mxu0 0
  %212 = vmatpush1.bf16.xpose.msra.mxu0 0
  %213 = vmatprep.subr.bf16.mxu0 0
  %214 = vmatpush1.bf16.xpose.msra.mxu0 0
  %215 = vmatprep.subr.bf16.mxu0 0
  %216 = vmatpush1.bf16.xpose.msra.mxu0 0
  %217 = vmatprep.subr.bf16.mxu0 0
  %218 = vmatpush1.bf16.xpose.msra.mxu0 0
  %219 = vmatprep.subr.bf16.mxu0 0
  %220 = vmatpush1.bf16.xpose.msra.mxu0 0
  %221 = vmatprep.subr.bf16.mxu0 0
  %222 = vmatpush1.bf16.xpose.msra.mxu0 0
  %223 = vmatprep.subr.bf16.mxu0 0
  %224 = vmatpush1.bf16.xpose.msra.mxu0 0
  %225 = vmatprep.mubr.bf16.mxu0 0
  %226 = vmatmul.mubr.bf16.gmra.mrb[0].mxu0 %v125
  %v227 = vpop.f32.mrb[0].mxu0
  %v228 = vadd.f32 %v144, %v227
  %v229 = vpop.f32.mrb[0].mxu0
  %v230 = vpop.f32.mrb[0].mxu0
  %v231 = vpop.f32.mrb[0].mxu0
  %232 = vdwg.mxu0
  %v233 = vxor.u32 %v228, 2147483648
  %v234 = vmul.f32 %v233, 1.442695
  %v235 = vpow.pop %v234
  %v236 = vadd.f32 %v235, 1.0
  %v237 = vrcp.pop %v236
  %v238 = vmul.f32 1.0, %v237
  %239 = vst [vmem:[%s4] sm:$0xff] %v238
  // Predicated region
  $region18: #{dual_encoder_forward.5} parent=0 // pred_check
    _
  $region19: #{dual_encoder_forward.5} parent=0 // pred_check_branch
    %241 = sbr.rel (0) target = $region21
  $region20: #{dual_encoder_forward.5} parent=0 // pred_region
    _
  $region21: #{dual_encoder_forward.5} parent=0 // pred_fallthru
    _
  // Predicated region
  $region22: #{dual_encoder_forward.5} parent=0 // pred_check
    _
  $region23: #{dual_encoder_forward.5} parent=0 // pred_check_branch
    %243 = sbr.rel (0) target = $region25
  $region24: #{dual_encoder_forward.5} parent=0 // pred_region
    _
  $region25: #{dual_encoder_forward.5} parent=0 // pred_fallthru
    _

// kernel: dual_encoder_forward.4
$region0: #{dual_encoder_forward.4}
  #allocation0 [shape = 'u32[]', space=smem, size = 0x4, offset = 0x4, fixed_abs, tag = 'smem constant byte address 0x4 - core index']
  #allocation1 [shape = 'u32[144,128]{1,0:T(1,128)}', space=vmem, size = 0x12000, scoped, tag = 'internal scratch']
  #allocation2 [shape = 'bf16[6,8,384]{2,1,0:T(8,128)(2,1)}', space=vmem, size = 0x9000, scoped, tag = 'scratch operand']
  %s0 = inlined_call_operand.vmem [shape: bf16[6,8,128], index: 0, kind: input, shape index: {}]
  %s1 = inlined_call_operand.vmem [shape: bf16[128,384], index: 1, kind: input, shape index: {}]
  %s2 = inlined_call_operand.vmem [shape: bf16[128,384], index: 2, kind: input, shape index: {}]
  %s3 = inlined_call_operand.vmem [shape: f32[1,384], index: 3, kind: input, shape index: {}]
  %s4 = inlined_call_operand.vmem [shape: f32[1,384], index: 4, kind: input, shape index: {}]
  %s5 = inlined_call_operand.vmem [shape: f32[8,128], index: 5, kind: output, shape index: {}]
  %s6 = sld [smem:[#allocation0]]
  $region34: #{dual_encoder_forward.4} parent=0
    _
  %s8 = ssub.s32 1, %s6
  %s9 = scalar_select 0, %s8, %s6
  // Predicated region
  $region2: #{dual_encoder_forward.4} parent=0 // pred_check
    _
  $region3: #{dual_encoder_forward.4} parent=0 // pred_check_branch
    %11 = sbr.rel (0) target = $region5
  $region4: #{dual_encoder_forward.4} parent=0 // pred_region
    _
  $region5: #{dual_encoder_forward.4} parent=0 // pred_fallthru
    _
  // Predicated region
  $region6: #{dual_encoder_forward.4} parent=0 // pred_check
    _
  $region7: #{dual_encoder_forward.4} parent=0 // pred_check_branch
    %13 = sbr.rel (0) target = $region9
  $region8: #{dual_encoder_forward.4} parent=0 // pred_region
    _
  $region9: #{dual_encoder_forward.4} parent=0 // pred_fallthru
    _
  // Predicated region
  $region10: #{dual_encoder_forward.4} parent=0 // pred_check
    _
  $region11: #{dual_encoder_forward.4} parent=0 // pred_check_branch
    %15 = sbr.rel (0) target = $region13
  $region12: #{dual_encoder_forward.4} parent=0 // pred_region
    _
  $region13: #{dual_encoder_forward.4} parent=0 // pred_fallthru
    _
  // Predicated region
  $region14: #{dual_encoder_forward.4} parent=0 // pred_check
    _
  $region15: #{dual_encoder_forward.4} parent=0 // pred_check_branch
    %17 = sbr.rel (0) target = $region17
  $region16: #{dual_encoder_forward.4} parent=0 // pred_region
    _
  $region17: #{dual_encoder_forward.4} parent=0 // pred_fallthru
    _
  // Predicated region
  $region18: #{dual_encoder_forward.4} parent=0 // pred_check
    _
  $region19: #{dual_encoder_forward.4} parent=0 // pred_check_branch
    %19 = sbr.rel (0) target = $region21
  $region20: #{dual_encoder_forward.4} parent=0 // pred_region
    _
  $region21: #{dual_encoder_forward.4} parent=0 // pred_fallthru
    _
  %v21 = vld [vmem:[%s0] sm:$0xf]
  %v22 = vld [vmem:[%s0 + $0x4] sm:$0xf]
  %v23 = vld [vmem:[%s0 + $0x8] sm:$0xf]
  %v24 = vld [vmem:[%s0 + $0xc] sm:$0xf]
  %v25 = vld [vmem:[%s0 + $0x10] sm:$0xf]
  %v26 = vld [vmem:[%s0 + $0x14] sm:$0xf]
  %v27 = vld [vmem:[%s1] sm:$0xff]
  %v28 = vld [vmem:[%s1 + $0x8] sm:$0xf]
  %v29 = vld [vmem:[%s1 + $0xc] sm:$0xff]
  %v30 = vld [vmem:[%s1 + $0x14] sm:$0xf]
  %v31 = vld [vmem:[%s1 + $0x18] sm:$0xff]
  %v32 = vld [vmem:[%s1 + $0x20] sm:$0xf]
  %v33 = vld [vmem:[%s1 + $0x24] sm:$0xff]
  %v34 = vld [vmem:[%s1 + $0x2c] sm:$0xf]
  %v35 = vld [vmem:[%s1 + $0x30] sm:$0xff]
  %v36 = vld [vmem:[%s1 + $0x38] sm:$0xf]
  %v37 = vld [vmem:[%s1 + $0x3c] sm:$0xff]
  %v38 = vld [vmem:[%s1 + $0x44] sm:$0xf]
  %v39 = vld [vmem:[%s1 + $0x48] sm:$0xff]
  %v40 = vld [vmem:[%s1 + $0x50] sm:$0xf]
  %v41 = vld [vmem:[%s1 + $0x54] sm:$0xff]
  %v42 = vld [vmem:[%s1 + $0x5c] sm:$0xf]
  %v43 = vld [vmem:[%s1 + $0x60] sm:$0xff]
  %v44 = vld [vmem:[%s1 + $0x68] sm:$0xf]
  %v45 = vld [vmem:[%s1 + $0x6c] sm:$0xff]
  %v46 = vld [vmem:[%s1 + $0x74] sm:$0xf]
  %v47 = vld [vmem:[%s1 + $0x78] sm:$0xff]
  %v48 = vld [vmem:[%s1 + $0x80] sm:$0xf]
  %v49 = vld [vmem:[%s1 + $0x84] sm:$0xff]
  %v50 = vld [vmem:[%s1 + $0x8c] sm:$0xf]
  %v51 = vld [vmem:[%s1 + $0x90] sm:$0xff]
  %v52 = vld [vmem:[%s1 + $0x98] sm:$0xf]
  %v53 = vld [vmem:[%s1 + $0x9c] sm:$0xff]
  %v54 = vld [vmem:[%s1 + $0xa4] sm:$0xf]
  %v55 = vld [vmem:[%s1 + $0xa8] sm:$0xff]
  %v56 = vld [vmem:[%s1 + $0xb0] sm:$0xf]
  %v57 = vld [vmem:[%s1 + $0xb4] sm:$0xff]
  %v58 = vld [vmem:[%s1 + $0xbc] sm:$0xf]
  %v59 = vld [vmem:[%s3] sm:$0x7]
  %v61 = vlaneseq
  %v62 = vshrl.u32 %v61, 7
  %v63 = vsub.s32 0, %v62
  %v64 = vrot.slane %v59, %v63
  %v65 = vlaneseq
  %v66 = vshrl.u32 %v65, 7
  %v67 = vsub.s32 1, %v66
  %v68 = vrot.slane %v59, %v67
  %v69 = vlaneseq
  %v70 = vshrl.u32 %v69, 7
  %v71 = vsub.s32 2, %v70
  %v72 = vrot.slane %v59, %v71
  %v82 = vunpack.c.l.b16 %v21
  %v83 = vunpack.c.l.b16 %v22
  %v84 = vunpack.c.l.b16 %v23
  %v85 = vunpack.c.l.b16 %v24
  %v86 = vunpack.c.l.b16 %v25
  %v87 = vunpack.c.l.b16 %v26
  %v88 = vpack.c.b16 %v83, %v82
  %v89 = vpack.c.b16 %v85, %v84
  %v90 = vpack.c.b16 %v87, %v86
  %v126 = vunpack.c.l.b16 %v27
  %v127 = vunpack.c.h.b16 %v27
  %v128 = vunpack.c.l.b16 %v28
  %v129 = vunpack.c.l.b16 %v29
  %v130 = vunpack.c.h.b16 %v29
  %v131 = vunpack.c.l.b16 %v30
  %v132 = vunpack.c.l.b16 %v31
  %v133 = vunpack.c.h.b16 %v31
  %v134 = vunpack.c.l.b16 %v32
  %v135 = vunpack.c.l.b16 %v33
  %v136 = vunpack.c.h.b16 %v33
  %v137 = vunpack.c.l.b16 %v34
  %v138 = vunpack.c.l.b16 %v35
  %v139 = vunpack.c.h.b16 %v35
  %v140 = vunpack.c.l.b16 %v36
  %v141 = vunpack.c.l.b16 %v37
  %v142 = vunpack.c.h.b16 %v37
  %v143 = vunpack.c.l.b16 %v38
  %v144 = vunpack.c.l.b16 %v39
  %v145 = vunpack.c.h.b16 %v39
  %v146 = vunpack.c.l.b16 %v40
  %v147 = vunpack.c.l.b16 %v41
  %v148 = vunpack.c.h.b16 %v41
  %v149 = vunpack.c.l.b16 %v42
  %v150 = vunpack.c.l.b16 %v43
  %v151 = vunpack.c.h.b16 %v43
  %v152 = vunpack.c.l.b16 %v44
  %v153 = vunpack.c.l.b16 %v45
  %v154 = vunpack.c.h.b16 %v45
  %v155 = vunpack.c.l.b16 %v46
  %v156 = vunpack.c.l.b16 %v47
  %v157 = vunpack.c.h.b16 %v47
  %v158 = vunpack.c.l.b16 %v48
  %v159 = vunpack.c.l.b16 %v49
  %v160 = vunpack.c.h.b16 %v49
  %v161 = vunpack.c.l.b16 %v50
  %v162 = vunpack.c.l.b16 %v51
  %v163 = vunpack.c.h.b16 %v51
  %v164 = vunpack.c.l.b16 %v52
  %v165 = vunpack.c.l.b16 %v53
  %v166 = vunpack.c.h.b16 %v53
  %v167 = vunpack.c.l.b16 %v54
  %v168 = vunpack.c.l.b16 %v55
  %v169 = vunpack.c.h.b16 %v55
  %v170 = vunpack.c.l.b16 %v56
  %v171 = vunpack.c.l.b16 %v57
  %v172 = vunpack.c.h.b16 %v57
  %v173 = vunpack.c.l.b16 %v58
  %v174 = vpack.c.b16 %v129, %v126
  %v175 = vpack.c.b16 %v130, %v127
  %v176 = vpack.c.b16 %v131, %v128
  %v177 = vpack.c.b16 %v135, %v132
  %v178 = vpack.c.b16 %v136, %v133
  %v179 = vpack.c.b16 %v137, %v134
  %v180 = vpack.c.b16 %v141, %v138
  %v181 = vpack.c.b16 %v142, %v139
  %v182 = vpack.c.b16 %v143, %v140
  %v183 = vpack.c.b16 %v147, %v144
  %v184 = vpack.c.b16 %v148, %v145
  %v185 = vpack.c.b16 %v149, %v146
  %v186 = vpack.c.b16 %v153, %v150
  %v187 = vpack.c.b16 %v154, %v151
  %v188 = vpack.c.b16 %v155, %v152
  %v189 = vpack.c.b16 %v159, %v156
  %v190 = vpack.c.b16 %v160, %v157
  %v191 = vpack.c.b16 %v161, %v158
  %v192 = vpack.c.b16 %v165, %v162
  %v193 = vpack.c.b16 %v166, %v163
  %v194 = vpack.c.b16 %v167, %v164
  %v195 = vpack.c.b16 %v171, %v168
  %v196 = vpack.c.b16 %v172, %v169
  %v197 = vpack.c.b16 %v173, %v170
  %222 = vmatprep.subr.bf16.mxu0 %v175
  %223 = vmatpush1.bf16.msra.mxu0 %v174
  %224 = vmatprep.subr.bf16.mxu0 %v178
  %225 = vmatpush1.bf16.msra.mxu0 %v177
  %226 = vmatprep.subr.bf16.mxu0 %v181
  %227 = vmatpush1.bf16.msra.mxu0 %v180
  %228 = vmatprep.subr.bf16.mxu0 %v184
  %229 = vmatpush1.bf16.msra.mxu0 %v183
  %230 = vmatprep.subr.bf16.mxu0 %v187
  %231 = vmatpush1.bf16.msra.mxu0 %v186
  %232 = vmatprep.subr.bf16.mxu0 %v190
  %233 = vmatpush1.bf16.msra.mxu0 %v189
  %234 = vmatprep.subr.bf16.mxu0 %v193
  %235 = vmatpush1.bf16.msra.mxu0 %v192
  %236 = vmatprep.subr.bf16.mxu0 %v196
  %237 = vmatpush1.bf16.msra.mxu0 %v195
  %238 = vmatprep.subr.bf16.mxu0 0
  %239 = vmatpush1.bf16.msra.mxu0 0
  %240 = vmatprep.subr.bf16.mxu0 0
  %241 = vmatpush1.bf16.msra.mxu0 0
  %242 = vmatprep.subr.bf16.mxu0 0
  %243 = vmatpush1.bf16.msra.mxu0 0
  %244 = vmatprep.subr.bf16.mxu0 0
  %245 = vmatpush1.bf16.msra.mxu0 0
  %246 = vmatprep.subr.bf16.mxu0 0
  %247 = vmatpush1.bf16.msra.mxu0 0
  %248 = vmatprep.subr.bf16.mxu0 0
  %249 = vmatpush1.bf16.msra.mxu0 0
  %250 = vmatprep.subr.bf16.mxu0 0
  %251 = vmatpush1.bf16.msra.mxu0 0
  %252 = vmatprep.subr.bf16.mxu0 0
  %253 = vmatpush1.bf16.msra.mxu0 0
  %254 = vmatprep.mubr.bf16.mxu0 0
  %255 = vmatmul.mubr.bf16.gmra.mrb[0].mxu0 %v88
  %v256 = vpop.f32.mrb[0].mxu0
  %v257 = vadd.f32 %v64, %v256
  %v258 = vpop.f32.mrb[0].mxu0
  %v259 = vadd.f32 %v68, %v258
  %v260 = vpop.f32.mrb[0].mxu0
  %v261 = vadd.f32 %v64, %v260
  %v262 = vpop.f32.mrb[0].mxu0
  %v263 = vadd.f32 %v68, %v262
  %264 = vmatprep.mubr.bf16.mxu0 0
  %265 = vmatmul.mubr.bf16.gmra.mrb[0].mxu0 %v89
  %v266 = vpop.f32.mrb[0].mxu0
  %v267 = vadd.f32 %v64, %v266
  %v268 = vpop.f32.mrb[0].mxu0
  %v269 = vadd.f32 %v68, %v268
  %v270 = vpop.f32.mrb[0].mxu0
  %v271 = vadd.f32 %v64, %v270
  %v272 = vpop.f32.mrb[0].mxu0
  %v273 = vadd.f32 %v68, %v272
  %274 = vmatprep.mubr.bf16.mxu0 0
  %275 = vmatmul.mubr.bf16.gmra.mrb[0].mxu0 %v90
  %v276 = vpop.f32.mrb[0].mxu0
  %v277 = vadd.f32 %v64, %v276
  %v278 = vpop.f32.mrb[0].mxu0
  %v279 = vadd.f32 %v68, %v278
  %v280 = vpop.f32.mrb[0].mxu0
  %v281 = vadd.f32 %v64, %v280
  %v282 = vpop.f32.mrb[0].mxu0
  %v283 = vadd.f32 %v68, %v282
  %284 = vdwg.mxu0
  %285 = vmatprep.subr.bf16.mxu0 0
  %286 = vmatpush1.bf16.msra.mxu0 %v176
  %287 = vmatprep.subr.bf16.mxu0 0
  %288 = vmatpush1.bf16.msra.mxu0 %v179
  %289 = vmatprep.subr.bf16.mxu0 0
  %290 = vmatpush1.bf16.msra.mxu0 %v182
  %291 = vmatprep.subr.bf16.mxu0 0
  %292 = vmatpush1.bf16.msra.mxu0 %v185
  %293 = vmatprep.subr.bf16.mxu0 0
  %294 = vmatpush1.bf16.msra.mxu0 %v188
  %295 = vmatprep.subr.bf16.mxu0 0
  %296 = vmatpush1.bf16.msra.mxu0 %v191
  %297 = vmatprep.subr.bf16.mxu0 0
  %298 = vmatpush1.bf16.msra.mxu0 %v194
  %299 = vmatprep.subr.bf16.mxu0 0
  %300 = vmatpush1.bf16.msra.mxu0 %v197
  %301 = vmatprep.subr.bf16.mxu0 0
  %302 = vmatpush1.bf16.msra.mxu0 0
  %303 = vmatprep.subr.bf16.mxu0 0
  %304 = vmatpush1.bf16.msra.mxu0 0
  %305 = vmatprep.subr.bf16.mxu0 0
  %306 = vmatpush1.bf16.msra.mxu0 0
  %307 = vmatprep.subr.bf16.mxu0 0
  %308 = vmatpush1.bf16.msra.mxu0 0
  %309 = vmatprep.subr.bf16.mxu0 0
  %310 = vmatpush1.bf16.msra.mxu0 0
  %311 = vmatprep.subr.bf16.mxu0 0
  %312 = vmatpush1.bf16.msra.mxu0 0
  %313 = vmatprep.subr.bf16.mxu0 0
  %314 = vmatpush1.bf16.msra.mxu0 0
  %315 = vmatprep.subr.bf16.mxu0 0
  %316 = vmatpush1.bf16.msra.mxu0 0
  %317 = vmatprep.mubr.bf16.mxu0 0
  %318 = vmatmul.mubr.bf16.gmra.mrb[0].mxu0 %v88
  %v319 = vpop.f32.mrb[0].mxu0
  %v320 = vadd.f32 %v72, %v319
  %v321 = vpop.f32.mrb[0].mxu0
  %v322 = vpop.f32.mrb[0].mxu0
  %v323 = vadd.f32 %v72, %v322
  %v324 = vpop.f32.mrb[0].mxu0
  %325 = vmatprep.mubr.bf16.mxu0 0
  %326 = vmatmul.mubr.bf16.gmra.mrb[0].mxu0 %v89
  %v327 = vpop.f32.mrb[0].mxu0
  %v328 = vadd.f32 %v72, %v327
  %v329 = vpop.f32.mrb[0].mxu0
  %v330 = vpop.f32.mrb[0].mxu0
  %v331 = vadd.f32 %v72, %v330
  %v332 = vpop.f32.mrb[0].mxu0
  %333 = vmatprep.mubr.bf16.mxu0 0
  %334 = vmatmul.mubr.bf16.gmra.mrb[0].mxu0 %v90
  %v335 = vpop.f32.mrb[0].mxu0
  %v336 = vadd.f32 %v72, %v335
  %v337 = vpop.f32.mrb[0].mxu0
  %v338 = vpop.f32.mrb[0].mxu0
  %v339 = vadd.f32 %v72, %v338
  %v340 = vpop.f32.mrb[0].mxu0
  %341 = vdwg.mxu0
  %v342 = vpack.c.bf16 %v257, %v257
  %v343 = vpack.c.bf16 %v259, %v259
  %v344 = vpack.c.bf16 %v320, %v320
  %v345 = vpack.c.bf16 %v261, %v261
  %v346 = vpack.c.bf16 %v263, %v263
  %v347 = vpack.c.bf16 %v323, %v323
  %v348 = vpack.c.bf16 %v267, %v267
  %v349 = vpack.c.bf16 %v269, %v269
  %v350 = vpack.c.bf16 %v328, %v328
  %v351 = vpack.c.bf16 %v271, %v271
  %v352 = vpack.c.bf16 %v273, %v273
  %v353 = vpack.c.bf16 %v331, %v331
  %v354 = vpack.c.bf16 %v277, %v277
  %v355 = vpack.c.bf16 %v279, %v279
  %v356 = vpack.c.bf16 %v336, %v336
  %v357 = vpack.c.bf16 %v281, %v281
  %v358 = vpack.c.bf16 %v283, %v283
  %v359 = vpack.c.bf16 %v339, %v339
  %v378 = vunpack.c.l.b16 %v342
  %v379 = vunpack.c.l.b16 %v343
  %v380 = vunpack.c.l.b16 %v344
  %v381 = vunpack.c.l.b16 %v345
  %v382 = vunpack.c.l.b16 %v346
  %v383 = vunpack.c.l.b16 %v347
  %v384 = vunpack.c.l.b16 %v348
  %v385 = vunpack.c.l.b16 %v349
  %v386 = vunpack.c.l.b16 %v350
  %v387 = vunpack.c.l.b16 %v351
  %v388 = vunpack.c.l.b16 %v352
  %v389 = vunpack.c.l.b16 %v353
  %v390 = vunpack.c.l.b16 %v354
  %v391 = vunpack.c.l.b16 %v355
  %v392 = vunpack.c.l.b16 %v356
  %v393 = vunpack.c.l.b16 %v357
  %v394 = vunpack.c.l.b16 %v358
  %v395 = vunpack.c.l.b16 %v359
  %v396 = vpack.c.b16 %v379, %v378
  %v397 = vpack.c.b16 %v380, %v380
  %v398 = vpack.c.b16 %v382, %v381
  %v399 = vpack.c.b16 %v383, %v383
  %v400 = vpack.c.b16 %v385, %v384
  %v401 = vpack.c.b16 %v386, %v386
  %v402 = vpack.c.b16 %v388, %v387
  %v403 = vpack.c.b16 %v389, %v389
  %v404 = vpack.c.b16 %v391, %v390
  %v405 = vpack.c.b16 %v392, %v392
  %v406 = vpack.c.b16 %v394, %v393
  %v407 = vpack.c.b16 %v395, %v395
  %420 = vst [vmem:[#allocation2] sm:$0xff] %v396
  %421 = vst [vmem:[#allocation2 + $0x8] sm:$0xf] %v397
  %422 = vst [vmem:[#allocation2 + $0xc] sm:$0xff] %v398
  %423 = vst [vmem:[#allocation2 + $0x14] sm:$0xf] %v399
  %424 = vst [vmem:[#allocation2 + $0x18] sm:$0xff] %v400
  %425 = vst [vmem:[#allocation2 + $0x20] sm:$0xf] %v401
  %426 = vst [vmem:[#allocation2 + $0x24] sm:$0xff] %v402
  %427 = vst [vmem:[#allocation2 + $0x2c] sm:$0xf] %v403
  %428 = vst [vmem:[#allocation2 + $0x30] sm:$0xff] %v404
  %429 = vst [vmem:[#allocation2 + $0x38] sm:$0xf] %v405
  %430 = vst [vmem:[#allocation2 + $0x3c] sm:$0xff] %v406
  %431 = vst [vmem:[#allocation2 + $0x44] sm:$0xf] %v407
  %p432 = scmp.eq.s32.totalorder 0, 0
  // Predicated region
  $region22: #{dual_encoder_forward.4} parent=0 // pred_check
    %p433 = pneg %p432
  $region23: #{dual_encoder_forward.4} parent=0 // pred_check_branch
    %435 = sbr.rel (%p433) target = $region25
  $region24: #{dual_encoder_forward.4} parent=0 // pred_region
    %436 = vst [vmem:[%s5] sm:$0xff] 0.0
  $region25: #{dual_encoder_forward.4} parent=0 // pred_fallthru
    _
  %v437 = vld [vmem:[%s2] sm:$0xff]
  %v438 = vld [vmem:[%s2 + $0x8] sm:$0xf]
  %v439 = vld [vmem:[%s2 + $0xc] sm:$0xff]
  %v440 = vld [vmem:[%s2 + $0x14] sm:$0xf]
  %v441 = vld [vmem:[%s2 + $0x18] sm:$0xff]
  %v442 = vld [vmem:[%s2 + $0x20] sm:$0xf]
  %v443 = vld [vmem:[%s2 + $0x24] sm:$0xff]
  %v444 = vld [vmem:[%s2 + $0x2c] sm:$0xf]
  %v445 = vld [vmem:[%s2 + $0x30] sm:$0xff]
  %v446 = vld [vmem:[%s2 + $0x38] sm:$0xf]
  %v447 = vld [vmem:[%s2 + $0x3c] sm:$0xff]
  %v448 = vld [vmem:[%s2 + $0x44] sm:$0xf]
  %v449 = vld [vmem:[%s2 + $0x48] sm:$0xff]
  %v450 = vld [vmem:[%s2 + $0x50] sm:$0xf]
  %v451 = vld [vmem:[%s2 + $0x54] sm:$0xff]
  %v452 = vld [vmem:[%s2 + $0x5c] sm:$0xf]
  %v453 = vld [vmem:[%s2 + $0x60] sm:$0xff]
  %v454 = vld [vmem:[%s2 + $0x68] sm:$0xf]
  %v455 = vld [vmem:[%s2 + $0x6c] sm:$0xff]
  %v456 = vld [vmem:[%s2 + $0x74] sm:$0xf]
  %v457 = vld [vmem:[%s2 + $0x78] sm:$0xff]
  %v458 = vld [vmem:[%s2 + $0x80] sm:$0xf]
  %v459 = vld [vmem:[%s2 + $0x84] sm:$0xff]
  %v460 = vld [vmem:[%s2 + $0x8c] sm:$0xf]
  %v461 = vld [vmem:[%s2 + $0x90] sm:$0xff]
  %v462 = vld [vmem:[%s2 + $0x98] sm:$0xf]
  %v463 = vld [vmem:[%s2 + $0x9c] sm:$0xff]
  %v464 = vld [vmem:[%s2 + $0xa4] sm:$0xf]
  %v465 = vld [vmem:[%s2 + $0xa8] sm:$0xff]
  %v466 = vld [vmem:[%s2 + $0xb0] sm:$0xf]
  %v467 = vld [vmem:[%s2 + $0xb4] sm:$0xff]
  %v468 = vld [vmem:[%s2 + $0xbc] sm:$0xf]
  %v469 = vld [vmem:[%s4] sm:$0x7]
  %v470 = vld [vmem:[%s5] sm:$0xff]
  %v471 = vld [vmem:[#allocation2] sm:$0xff]
  %v472 = vld [vmem:[#allocation2 + $0x8] sm:$0xf]
  %v473 = vunpack.c.l.bf16 %v471
  %v474 = vunpack.c.h.bf16 %v471
  %v475 = vunpack.c.l.bf16 %v472
  %v476 = vpack.c.bf16 %v470, %v470
  %v478 = vlaneseq
  %v479 = vshrl.u32 %v478, 7
  %v480 = vsub.s32 0, %v479
  %v481 = vrot.slane %v469, %v480
  %v482 = vlaneseq
  %v483 = vshrl.u32 %v482, 7
  %v484 = vsub.s32 1, %v483
  %v485 = vrot.slane %v469, %v484
  %v486 = vlaneseq
  %v487 = vshrl.u32 %v486, 7
  %v488 = vsub.s32 2, %v487
  %v489 = vrot.slane %v469, %v488
  %v525 = vunpack.c.l.b16 %v437
  %v526 = vunpack.c.h.b16 %v437
  %v527 = vunpack.c.l.b16 %v438
  %v528 = vunpack.c.l.b16 %v439
  %v529 = vunpack.c.h.b16 %v439
  %v530 = vunpack.c.l.b16 %v440
  %v531 = vunpack.c.l.b16 %v441
  %v532 = vunpack.c.h.b16 %v441
  %v533 = vunpack.c.l.b16 %v442
  %v534 = vunpack.c.l.b16 %v443
  %v535 = vunpack.c.h.b16 %v443
  %v536 = vunpack.c.l.b16 %v444
  %v537 = vunpack.c.l.b16 %v445
  %v538 = vunpack.c.h.b16 %v445
  %v539 = vunpack.c.l.b16 %v446
  %v540 = vunpack.c.l.b16 %v447
  %v541 = vunpack.c.h.b16 %v447
  %v542 = vunpack.c.l.b16 %v448
  %v543 = vunpack.c.l.b16 %v449
  %v544 = vunpack.c.h.b16 %v449
  %v545 = vunpack.c.l.b16 %v450
  %v546 = vunpack.c.l.b16 %v451
  %v547 = vunpack.c.h.b16 %v451
  %v548 = vunpack.c.l.b16 %v452
  %v549 = vunpack.c.l.b16 %v453
  %v550 = vunpack.c.h.b16 %v453
  %v551 = vunpack.c.l.b16 %v454
  %v552 = vunpack.c.l.b16 %v455
  %v553 = vunpack.c.h.b16 %v455
  %v554 = vunpack.c.l.b16 %v456
  %v555 = vunpack.c.l.b16 %v457
  %v556 = vunpack.c.h.b16 %v457
  %v557 = vunpack.c.l.b16 %v458
  %v558 = vunpack.c.l.b16 %v459
  %v559 = vunpack.c.h.b16 %v459
  %v560 = vunpack.c.l.b16 %v460
  %v561 = vunpack.c.l.b16 %v461
  %v562 = vunpack.c.h.b16 %v461
  %v563 = vunpack.c.l.b16 %v462
  %v564 = vunpack.c.l.b16 %v463
  %v565 = vunpack.c.h.b16 %v463
  %v566 = vunpack.c.l.b16 %v464
  %v567 = vunpack.c.l.b16 %v465
  %v568 = vunpack.c.h.b16 %v465
  %v569 = vunpack.c.l.b16 %v466
  %v570 = vunpack.c.l.b16 %v467
  %v571 = vunpack.c.h.b16 %v467
  %v572 = vunpack.c.l.b16 %v468
  %v573 = vpack.c.b16 %v528, %v525
  %v574 = vpack.c.b16 %v529, %v526
  %v575 = vpack.c.b16 %v530, %v527
  %v576 = vpack.c.b16 %v534, %v531
  %v577 = vpack.c.b16 %v535, %v532
  %v578 = vpack.c.b16 %v536, %v533
  %v579 = vpack.c.b16 %v540, %v537
  %v580 = vpack.c.b16 %v541, %v538
  %v581 = vpack.c.b16 %v542, %v539
  %v582 = vpack.c.b16 %v546, %v543
  %v583 = vpack.c.b16 %v547, %v544
  %v584 = vpack.c.b16 %v548, %v545
  %v585 = vpack.c.b16 %v552, %v549
  %v586 = vpack.c.b16 %v553, %v550
  %v587 = vpack.c.b16 %v554, %v551
  %v588 = vpack.c.b16 %v558, %v555
  %v589 = vpack.c.b16 %v559, %v556
  %v590 = vpack.c.b16 %v560, %v557
  %v591 = vpack.c.b16 %v564, %v561
  %v592 = vpack.c.b16 %v565, %v562
  %v593 = vpack.c.b16 %v566, %v563
  %v594 = vpack.c.b16 %v570, %v567
  %v595 = vpack.c.b16 %v571, %v568
  %v596 = vpack.c.b16 %v572, %v569
  %621 = vmatprep.subr.bf16.mxu0 %v574
  %622 = vmatpush1.bf16.msra.mxu0 %v573
  %623 = vmatprep.subr.bf16.mxu0 %v577
  %624 = vmatpush1.bf16.msra.mxu0 %v576
  %625 = vmatprep.subr.bf16.mxu0 %v580
  %626 = vmatpush1.bf16.msra.mxu0 %v579
  %627 = vmatprep.subr.bf16.mxu0 %v583
  %628 = vmatpush1.bf16.msra.mxu0 %v582
  %629 = vmatprep.subr.bf16.mxu0 %v586
  %630 = vmatpush1.bf16.msra.mxu0 %v585
  %631 = vmatprep.subr.bf16.mxu0 %v589
  %632 = vmatpush1.bf16.msra.mxu0 %v588
  %633 = vmatprep.subr.bf16.mxu0 %v592
  %634 = vmatpush1.bf16.msra.mxu0 %v591
  %635 = vmatprep.subr.bf16.mxu0 %v595
  %636 = vmatpush1.bf16.msra.mxu0 %v594
  %637 = vmatprep.subr.bf16.mxu0 0
  %638 = vmatpush1.bf16.msra.mxu0 0
  %639 = vmatprep.subr.bf16.mxu0 0
  %640 = vmatpush1.bf16.msra.mxu0 0
  %641 = vmatprep.subr.bf16.mxu0 0
  %642 = vmatpush1.bf16.msra.mxu0 0
  %643 = vmatprep.subr.bf16.mxu0 0
  %644 = vmatpush1.bf16.msra.mxu0 0
  %645 = vmatprep.subr.bf16.mxu0 0
  %646 = vmatpush1.bf16.msra.mxu0 0
  %647 = vmatprep.subr.bf16.mxu0 0
  %648 = vmatpush1.bf16.msra.mxu0 0
  %649 = vmatprep.subr.bf16.mxu0 0
  %650 = vmatpush1.bf16.msra.mxu0 0
  %651 = vmatprep.subr.bf16.mxu0 0
  %652 = vmatpush1.bf16.msra.mxu0 0
  %653 = vmatprep.mubr.bf16.mxu0 0
  %654 = vmatmul.mubr.bf16.gmra.mrb[0].mxu0 %v476
  %v655 = vpop.f32.mrb[0].mxu0
  %v656 = vadd.f32 %v481, %v655
  %v657 = vpop.f32.mrb[0].mxu0
  %v658 = vadd.f32 %v485, %v657
  %v659 = vpop.f32.mrb[0].mxu0
  %v660 = vpop.f32.mrb[0].mxu0
  %661 = vdwg.mxu0
  %662 = vmatprep.subr.bf16.mxu0 0
  %663 = vmatpush1.bf16.msra.mxu0 %v575
  %664 = vmatprep.subr.bf16.mxu0 0
  %665 = vmatpush1.bf16.msra.mxu0 %v578
  %666 = vmatprep.subr.bf16.mxu0 0
  %667 = vmatpush1.bf16.msra.mxu0 %v581
  %668 = vmatprep.subr.bf16.mxu0 0
  %669 = vmatpush1.bf16.msra.mxu0 %v584
  %670 = vmatprep.subr.bf16.mxu0 0
  %671 = vmatpush1.bf16.msra.mxu0 %v587
  %672 = vmatprep.subr.bf16.mxu0 0
  %673 = vmatpush1.bf16.msra.mxu0 %v590
  %674 = vmatprep.subr.bf16.mxu0 0
  %675 = vmatpush1.bf16.msra.mxu0 %v593
  %676 = vmatprep.subr.bf16.mxu0 0
  %677 = vmatpush1.bf16.msra.mxu0 %v596
  %678 = vmatprep.subr.bf16.mxu0 0
  %679 = vmatpush1.bf16.msra.mxu0 0
  %680 = vmatprep.subr.bf16.mxu0 0
  %681 = vmatpush1.bf16.msra.mxu0 0
  %682 = vmatprep.subr.bf16.mxu0 0
  %683 = vmatpush1.bf16.msra.mxu0 0
  %684 = vmatprep.subr.bf16.mxu0 0
  %685 = vmatpush1.bf16.msra.mxu0 0
  %686 = vmatprep.subr.bf16.mxu0 0
  %687 = vmatpush1.bf16.msra.mxu0 0
  %688 = vmatprep.subr.bf16.mxu0 0
  %689 = vmatpush1.bf16.msra.mxu0 0
  %690 = vmatprep.subr.bf16.mxu0 0
  %691 = vmatpush1.bf16.msra.mxu0 0
  %692 = vmatprep.subr.bf16.mxu0 0
  %693 = vmatpush1.bf16.msra.mxu0 0
  %694 = vmatprep.mubr.bf16.mxu0 0
  %695 = vmatmul.mubr.bf16.gmra.mrb[0].mxu0 %v476
  %v696 = vpop.f32.mrb[0].mxu0
  %v697 = vadd.f32 %v489, %v696
  %v698 = vpop.f32.mrb[0].mxu0
  %v699 = vpop.f32.mrb[0].mxu0
  %v700 = vpop.f32.mrb[0].mxu0
  %701 = vdwg.mxu0
  %v702 = vadd.f32 %v473, %v656
  %v703 = vxor.u32 %v702, 2147483648
  %v704 = vmul.f32 %v703, 1.442695
  %v705 = vpow.pop %v704
  %v706 = vadd.f32 %v705, 1.0
  %v707 = vrcp.pop %v706
  %v708 = vmul.f32 1.0, %v707
  %v709 = vadd.f32 %v474, %v658
  %v710 = vxor.u32 %v709, 2147483648
  %v711 = vmul.f32 %v710, 1.442695
  %v712 = vpow.pop %v711
  %v713 = vadd.f32 %v712, 1.0
  %v714 = vrcp.pop %v713
  %v715 = vmul.f32 1.0, %v714
  %v716 = vmul.f32 %v708, %v697
  %v717 = vadd.f32 %v475, %v716
  %v718 = vtanh.pop %v717
  %v719 = vsub.f32 1.0, %v715
  %v720 = vmul.f32 %v719, %v718
  %v721 = vmul.f32 %v715, %v470
  %v722 = vadd.f32 %v720, %v721
  %s723 = scalar_lea.vmem [#allocation2], 12
  %v724 = vld [vmem:[%s723] sm:$0xff]
  %v725 = vld [vmem:[%s723 + $0x8] sm:$0xf]
  %v726 = vunpack.c.l.bf16 %v724
  %v727 = vunpack.c.h.bf16 %v724
  %v728 = vunpack.c.l.bf16 %v725
  %v729 = vpack.c.bf16 %v722, %v722
  %730 = vmatprep.subr.bf16.mxu0 %v574
  %731 = vmatpush1.bf16.msra.mxu0 %v573
  %732 = vmatprep.subr.bf16.mxu0 %v577
  %733 = vmatpush1.bf16.msra.mxu0 %v576
  %734 = vmatprep.subr.bf16.mxu0 %v580
  %735 = vmatpush1.bf16.msra.mxu0 %v579
  %736 = vmatprep.subr.bf16.mxu0 %v583
  %737 = vmatpush1.bf16.msra.mxu0 %v582
  %738 = vmatprep.subr.bf16.mxu0 %v586
  %739 = vmatpush1.bf16.msra.mxu0 %v585
  %740 = vmatprep.subr.bf16.mxu0 %v589
  %741 = vmatpush1.bf16.msra.mxu0 %v588
  %742 = vmatprep.subr.bf16.mxu0 %v592
  %743 = vmatpush1.bf16.msra.mxu0 %v591
  %744 = vmatprep.subr.bf16.mxu0 %v595
  %745 = vmatpush1.bf16.msra.mxu0 %v594
  %746 = vmatprep.subr.bf16.mxu0 0
  %747 = vmatpush1.bf16.msra.mxu0 0
  %748 = vmatprep.subr.bf16.mxu0 0
  %749 = vmatpush1.bf16.msra.mxu0 0
  %750 = vmatprep.subr.bf16.mxu0 0
  %751 = vmatpush1.bf16.msra.mxu0 0
  %752 = vmatprep.subr.bf16.mxu0 0
  %753 = vmatpush1.bf16.msra.mxu0 0
  %754 = vmatprep.subr.bf16.mxu0 0
  %755 = vmatpush1.bf16.msra.mxu0 0
  %756 = vmatprep.subr.bf16.mxu0 0
  %757 = vmatpush1.bf16.msra.mxu0 0
  %758 = vmatprep.subr.bf16.mxu0 0
  %759 = vmatpush1.bf16.msra.mxu0 0
  %760 = vmatprep.subr.bf16.mxu0 0
  %761 = vmatpush1.bf16.msra.mxu0 0
  %762 = vmatprep.mubr.bf16.mxu0 0
  %763 = vmatmul.mubr.bf16.gmra.mrb[0].mxu0 %v729
  %v764 = vpop.f32.mrb[0].mxu0
  %v765 = vadd.f32 %v481, %v764
  %v766 = vpop.f32.mrb[0].mxu0
  %v767 = vadd.f32 %v485, %v766
  %v768 = vpop.f32.mrb[0].mxu0
  %v769 = vpop.f32.mrb[0].mxu0
  %770 = vdwg.mxu0
  %771 = vmatprep.subr.bf16.mxu0 0
  %772 = vmatpush1.bf16.msra.mxu0 %v575
  %773 = vmatprep.subr.bf16.mxu0 0
  %774 = vmatpush1.bf16.msra.mxu0 %v578
  %775 = vmatprep.subr.bf16.mxu0 0
  %776 = vmatpush1.bf16.msra.mxu0 %v581
  %777 = vmatprep.subr.bf16.mxu0 0
  %778 = vmatpush1.bf16.msra.mxu0 %v584
  %779 = vmatprep.subr.bf16.mxu0 0
  %780 = vmatpush1.bf16.msra.mxu0 %v587
  %781 = vmatprep.subr.bf16.mxu0 0
  %782 = vmatpush1.bf16.msra.mxu0 %v590
  %783 = vmatprep.subr.bf16.mxu0 0
  %784 = vmatpush1.bf16.msra.mxu0 %v593
  %785 = vmatprep.subr.bf16.mxu0 0
  %786 = vmatpush1.bf16.msra.mxu0 %v596
  %787 = vmatprep.subr.bf16.mxu0 0
  %788 = vmatpush1.bf16.msra.mxu0 0
  %789 = vmatprep.subr.bf16.mxu0 0
  %790 = vmatpush1.bf16.msra.mxu0 0
  %791 = vmatprep.subr.bf16.mxu0 0
  %792 = vmatpush1.bf16.msra.mxu0 0
  %793 = vmatprep.subr.bf16.mxu0 0
  %794 = vmatpush1.bf16.msra.mxu0 0
  %795 = vmatprep.subr.bf16.mxu0 0
  %796 = vmatpush1.bf16.msra.mxu0 0
  %797 = vmatprep.subr.bf16.mxu0 0
  %798 = vmatpush1.bf16.msra.mxu0 0
  %799 = vmatprep.subr.bf16.mxu0 0
  %800 = vmatpush1.bf16.msra.mxu0 0
  %801 = vmatprep.subr.bf16.mxu0 0
  %802 = vmatpush1.bf16.msra.mxu0 0
  %803 = vmatprep.mubr.bf16.mxu0 0
  %804 = vmatmul.mubr.bf16.gmra.mrb[0].mxu0 %v729
  %v805 = vpop.f32.mrb[0].mxu0
  %v806 = vadd.f32 %v489, %v805
  %v807 = vpop.f32.mrb[0].mxu0
  %v808 = vpop.f32.mrb[0].mxu0
  %v809 = vpop.f32.mrb[0].mxu0
  %810 = vdwg.mxu0
  %v811 = vadd.f32 %v726, %v765
  %v812 = vxor.u32 %v811, 2147483648
  %v813 = vmul.f32 %v812, 1.442695
  %v814 = vpow.pop %v813
  %v815 = vadd.f32 %v814, 1.0
  %v816 = vrcp.pop %v815
  %v817 = vmul.f32 1.0, %v816
  %v818 = vadd.f32 %v727, %v767
  %v819 = vxor.u32 %v818, 2147483648
  %v820 = vmul.f32 %v819, 1.442695
  %v821 = vpow.pop %v820
  %v822 = vadd.f32 %v821, 1.0
  %v823 = vrcp.pop %v822
  %v824 = vmul.f32 1.0, %v823
  %v825 = vmul.f32 %v817, %v806
  %v826 = vadd.f32 %v728, %v825
  %v827 = vtanh.pop %v826
  %v828 = vsub.f32 1.0, %v824
  %v829 = vmul.f32 %v828, %v827
  %v830 = vmul.f32 %v824, %v722
  %v831 = vadd.f32 %v829, %v830
  %s832 = scalar_lea.vmem [#allocation2], 24
  %v833 = vld [vmem:[%s832] sm:$0xff]
  %v834 = vld [vmem:[%s832 + $0x8] sm:$0xf]
  %v835 = vunpack.c.l.bf16 %v833
  %v836 = vunpack.c.h.bf16 %v833
  %v837 = vunpack.c.l.bf16 %v834
  %v838 = vpack.c.bf16 %v831, %v831
  %839 = vmatprep.subr.bf16.mxu0 %v574
  %840 = vmatpush1.bf16.msra.mxu0 %v573
  %841 = vmatprep.subr.bf16.mxu0 %v577
  %842 = vmatpush1.bf16.msra.mxu0 %v576
  %843 = vmatprep.subr.bf16.mxu0 %v580
  %844 = vmatpush1.bf16.msra.mxu0 %v579
  %845 = vmatprep.subr.bf16.mxu0 %v583
  %846 = vmatpush1.bf16.msra.mxu0 %v582
  %847 = vmatprep.subr.bf16.mxu0 %v586
  %848 = vmatpush1.bf16.msra.mxu0 %v585
  %849 = vmatprep.subr.bf16.mxu0 %v589
  %850 = vmatpush1.bf16.msra.mxu0 %v588
  %851 = vmatprep.subr.bf16.mxu0 %v592
  %852 = vmatpush1.bf16.msra.mxu0 %v591
  %853 = vmatprep.subr.bf16.mxu0 %v595
  %854 = vmatpush1.bf16.msra.mxu0 %v594
  %855 = vmatprep.subr.bf16.mxu0 0
  %856 = vmatpush1.bf16.msra.mxu0 0
  %857 = vmatprep.subr.bf16.mxu0 0
  %858 = vmatpush1.bf16.msra.mxu0 0
  %859 = vmatprep.subr.bf16.mxu0 0
  %860 = vmatpush1.bf16.msra.mxu0 0
  %861 = vmatprep.subr.bf16.mxu0 0
  %862 = vmatpush1.bf16.msra.mxu0 0
  %863 = vmatprep.subr.bf16.mxu0 0
  %864 = vmatpush1.bf16.msra.mxu0 0
  %865 = vmatprep.subr.bf16.mxu0 0
  %866 = vmatpush1.bf16.msra.mxu0 0
  %867 = vmatprep.subr.bf16.mxu0 0
  %868 = vmatpush1.bf16.msra.mxu0 0
  %869 = vmatprep.subr.bf16.mxu0 0
  %870 = vmatpush1.bf16.msra.mxu0 0
  %871 = vmatprep.mubr.bf16.mxu0 0
  %872 = vmatmul.mubr.bf16.gmra.mrb[0].mxu0 %v838
  %v873 = vpop.f32.mrb[0].mxu0
  %v874 = vadd.f32 %v481, %v873
  %v875 = vpop.f32.mrb[0].mxu0
  %v876 = vadd.f32 %v485, %v875
  %v877 = vpop.f32.mrb[0].mxu0
  %v878 = vpop.f32.mrb[0].mxu0
  %879 = vdwg.mxu0
  %880 = vmatprep.subr.bf16.mxu0 0
  %881 = vmatpush1.bf16.msra.mxu0 %v575
  %882 = vmatprep.subr.bf16.mxu0 0
  %883 = vmatpush1.bf16.msra.mxu0 %v578
  %884 = vmatprep.subr.bf16.mxu0 0
  %885 = vmatpush1.bf16.msra.mxu0 %v581
  %886 = vmatprep.subr.bf16.mxu0 0
  %887 = vmatpush1.bf16.msra.mxu0 %v584
  %888 = vmatprep.subr.bf16.mxu0 0
  %889 = vmatpush1.bf16.msra.mxu0 %v587
  %890 = vmatprep.subr.bf16.mxu0 0
  %891 = vmatpush1.bf16.msra.mxu0 %v590
  %892 = vmatprep.subr.bf16.mxu0 0
  %893 = vmatpush1.bf16.msra.mxu0 %v593
  %894 = vmatprep.subr.bf16.mxu0 0
  %895 = vmatpush1.bf16.msra.mxu0 %v596
  %896 = vmatprep.subr.bf16.mxu0 0
  %897 = vmatpush1.bf16.msra.mxu0 0
  %898 = vmatprep.subr.bf16.mxu0 0
  %899 = vmatpush1.bf16.msra.mxu0 0
  %900 = vmatprep.subr.bf16.mxu0 0
  %901 = vmatpush1.bf16.msra.mxu0 0
  %902 = vmatprep.subr.bf16.mxu0 0
  %903 = vmatpush1.bf16.msra.mxu0 0
  %904 = vmatprep.subr.bf16.mxu0 0
  %905 = vmatpush1.bf16.msra.mxu0 0
  %906 = vmatprep.subr.bf16.mxu0 0
  %907 = vmatpush1.bf16.msra.mxu0 0
  %908 = vmatprep.subr.bf16.mxu0 0
  %909 = vmatpush1.bf16.msra.mxu0 0
  %910 = vmatprep.subr.bf16.mxu0 0
  %911 = vmatpush1.bf16.msra.mxu0 0
  %912 = vmatprep.mubr.bf16.mxu0 0
  %913 = vmatmul.mubr.bf16.gmra.mrb[0].mxu0 %v838
  %v914 = vpop.f32.mrb[0].mxu0
  %v915 = vadd.f32 %v489, %v914
  %v916 = vpop.f32.mrb[0].mxu0
  %v917 = vpop.f32.mrb[0].mxu0
  %v918 = vpop.f32.mrb[0].mxu0
  %919 = vdwg.mxu0
  %v920 = vadd.f32 %v835, %v874
  %v921 = vxor.u32 %v920, 2147483648
  %v922 = vmul.f32 %v921, 1.442695
  %v923 = vpow.pop %v922
  %v924 = vadd.f32 %v923, 1.0
  %v925 = vrcp.pop %v924
  %v926 = vmul.f32 1.0, %v925
  %v927 = vadd.f32 %v836, %v876
  %v928 = vxor.u32 %v927, 2147483648
  %v929 = vmul.f32 %v928, 1.442695
  %v930 = vpow.pop %v929
  %v931 = vadd.f32 %v930, 1.0
  %v932 = vrcp.pop %v931
  %v933 = vmul.f32 1.0, %v932
  %v934 = vmul.f32 %v926, %v915
  %v935 = vadd.f32 %v837, %v934
  %v936 = vtanh.pop %v935
  %v937 = vsub.f32 1.0, %v933
  %v938 = vmul.f32 %v937, %v936
  %v939 = vmul.f32 %v933, %v831
  %v940 = vadd.f32 %v938, %v939
  %s941 = scalar_lea.vmem [#allocation2], 36
  %v942 = vld [vmem:[%s941] sm:$0xff]
  %v943 = vld [vmem:[%s941 + $0x8] sm:$0xf]
  %v944 = vunpack.c.l.bf16 %v942
  %v945 = vunpack.c.h.bf16 %v942
  %v946 = vunpack.c.l.bf16 %v943
  %v947 = vpack.c.bf16 %v940, %v940
  %948 = vmatprep.subr.bf16.mxu0 %v574
  %949 = vmatpush1.bf16.msra.mxu0 %v573
  %950 = vmatprep.subr.bf16.mxu0 %v577
  %951 = vmatpush1.bf16.msra.mxu0 %v576
  %952 = vmatprep.subr.bf16.mxu0 %v580
  %953 = vmatpush1.bf16.msra.mxu0 %v579
  %954 = vmatprep.subr.bf16.mxu0 %v583
  %955 = vmatpush1.bf16.msra.mxu0 %v582
  %956 = vmatprep.subr.bf16.mxu0 %v586
  %957 = vmatpush1.bf16.msra.mxu0 %v585
  %958 = vmatprep.subr.bf16.mxu0 %v589
  %959 = vmatpush1.bf16.msra.mxu0 %v588
  %960 = vmatprep.subr.bf16.mxu0 %v592
  %961 = vmatpush1.bf16.msra.mxu0 %v591
  %962 = vmatprep.subr.bf16.mxu0 %v595
  %963 = vmatpush1.bf16.msra.mxu0 %v594
  %964 = vmatprep.subr.bf16.mxu0 0
  %965 = vmatpush1.bf16.msra.mxu0 0
  %966 = vmatprep.subr.bf16.mxu0 0
  %967 = vmatpush1.bf16.msra.mxu0 0
  %968 = vmatprep.subr.bf16.mxu0 0
  %969 = vmatpush1.bf16.msra.mxu0 0
  %970 = vmatprep.subr.bf16.mxu0 0
  %971 = vmatpush1.bf16.msra.mxu0 0
  %972 = vmatprep.subr.bf16.mxu0 0
  %973 = vmatpush1.bf16.msra.mxu0 0
  %974 = vmatprep.subr.bf16.mxu0 0
  %975 = vmatpush1.bf16.msra.mxu0 0
  %976 = vmatprep.subr.bf16.mxu0 0
  %977 = vmatpush1.bf16.msra.mxu0 0
  %978 = vmatprep.subr.bf16.mxu0 0
  %979 = vmatpush1.bf16.msra.mxu0 0
  %980 = vmatprep.mubr.bf16.mxu0 0
  %981 = vmatmul.mubr.bf16.gmra.mrb[0].mxu0 %v947
  %v982 = vpop.f32.mrb[0].mxu0
  %v983 = vadd.f32 %v481, %v982
  %v984 = vpop.f32.mrb[0].mxu0
  %v985 = vadd.f32 %v485, %v984
  %v986 = vpop.f32.mrb[0].mxu0
  %v987 = vpop.f32.mrb[0].mxu0
  %988 = vdwg.mxu0
  %989 = vmatprep.subr.bf16.mxu0 0
  %990 = vmatpush1.bf16.msra.mxu0 %v575
  %991 = vmatprep.subr.bf16.mxu0 0
  %992 = vmatpush1.bf16.msra.mxu0 %v578
  %993 = vmatprep.subr.bf16.mxu0 0
  %994 = vmatpush1.bf16.msra.mxu0 %v581
  %995 = vmatprep.subr.bf16.mxu0 0
  %996 = vmatpush1.bf16.msra.mxu0 %v584
  %997 = vmatprep.subr.bf16.mxu0 0
  %998 = vmatpush1.bf16.msra.mxu0 %v587
  %999 = vmatprep.subr.bf16.mxu0 0
  %1000 = vmatpush1.bf16.msra.mxu0 %v590
  %1001 = vmatprep.subr.bf16.mxu0 0
  %1002 = vmatpush1.bf16.msra.mxu0 %v593
  %1003 = vmatprep.subr.bf16.mxu0 0
  %1004 = vmatpush1.bf16.msra.mxu0 %v596
  %1005 = vmatprep.subr.bf16.mxu0 0
  %1006 = vmatpush1.bf16.msra.mxu0 0
  %1007 = vmatprep.subr.bf16.mxu0 0
  %1008 = vmatpush1.bf16.msra.mxu0 0
  %1009 = vmatprep.subr.bf16.mxu0 0
  %1010 = vmatpush1.bf16.msra.mxu0 0
  %1011 = vmatprep.subr.bf16.mxu0 0
  %1012 = vmatpush1.bf16.msra.mxu0 0
  %1013 = vmatprep.subr.bf16.mxu0 0
  %1014 = vmatpush1.bf16.msra.mxu0 0
  %1015 = vmatprep.subr.bf16.mxu0 0
  %1016 = vmatpush1.bf16.msra.mxu0 0
  %1017 = vmatprep.subr.bf16.mxu0 0
  %1018 = vmatpush1.bf16.msra.mxu0 0
  %1019 = vmatprep.subr.bf16.mxu0 0
  %1020 = vmatpush1.bf16.msra.mxu0 0
  %1021 = vmatprep.mubr.bf16.mxu0 0
  %1022 = vmatmul.mubr.bf16.gmra.mrb[0].mxu0 %v947
  %v1023 = vpop.f32.mrb[0].mxu0
  %v1024 = vadd.f32 %v489, %v1023
  %v1025 = vpop.f32.mrb[0].mxu0
  %v1026 = vpop.f32.mrb[0].mxu0
  %v1027 = vpop.f32.mrb[0].mxu0
  %1028 = vdwg.mxu0
  %v1029 = vadd.f32 %v944, %v983
  %v1030 = vxor.u32 %v1029, 2147483648
  %v1031 = vmul.f32 %v1030, 1.442695
  %v1032 = vpow.pop %v1031
  %v1033 = vadd.f32 %v1032, 1.0
  %v1034 = vrcp.pop %v1033
  %v1035 = vmul.f32 1.0, %v1034
  %v1036 = vadd.f32 %v945, %v985
  %v1037 = vxor.u32 %v1036, 2147483648
  %v1038 = vmul.f32 %v1037, 1.442695
  %v1039 = vpow.pop %v1038
  %v1040 = vadd.f32 %v1039, 1.0
  %v1041 = vrcp.pop %v1040
  %v1042 = vmul.f32 1.0, %v1041
  %v1043 = vmul.f32 %v1035, %v1024
  %v1044 = vadd.f32 %v946, %v1043
  %v1045 = vtanh.pop %v1044
  %v1046 = vsub.f32 1.0, %v1042
  %v1047 = vmul.f32 %v1046, %v1045
  %v1048 = vmul.f32 %v1042, %v940
  %v1049 = vadd.f32 %v1047, %v1048
  %s1050 = scalar_lea.vmem [#allocation2], 48
  %v1051 = vld [vmem:[%s1050] sm:$0xff]
  %v1052 = vld [vmem:[%s1050 + $0x8] sm:$0xf]
  %v1053 = vunpack.c.l.bf16 %v1051
  %v1054 = vunpack.c.h.bf16 %v1051
  %v1055 = vunpack.c.l.bf16 %v1052
  %v1056 = vpack.c.bf16 %v1049, %v1049
  %1057 = vmatprep.subr.bf16.mxu0 %v574
  %1058 = vmatpush1.bf16.msra.mxu0 %v573
  %1059 = vmatprep.subr.bf16.mxu0 %v577
  %1060 = vmatpush1.bf16.msra.mxu0 %v576
  %1061 = vmatprep.subr.bf16.mxu0 %v580
  %1062 = vmatpush1.bf16.msra.mxu0 %v579
  %1063 = vmatprep.subr.bf16.mxu0 %v583
  %1064 = vmatpush1.bf16.msra.mxu0 %v582
  %1065 = vmatprep.subr.bf16.mxu0 %v586
  %1066 = vmatpush1.bf16.msra.mxu0 %v585
  %1067 = vmatprep.subr.bf16.mxu0 %v589
  %1068 = vmatpush1.bf16.msra.mxu0 %v588
  %1069 = vmatprep.subr.bf16.mxu0 %v592
  %1070 = vmatpush1.bf16.msra.mxu0 %v591
  %1071 = vmatprep.subr.bf16.mxu0 %v595
  %1072 = vmatpush1.bf16.msra.mxu0 %v594
  %1073 = vmatprep.subr.bf16.mxu0 0
  %1074 = vmatpush1.bf16.msra.mxu0 0
  %1075 = vmatprep.subr.bf16.mxu0 0
  %1076 = vmatpush1.bf16.msra.mxu0 0
  %1077 = vmatprep.subr.bf16.mxu0 0
  %1078 = vmatpush1.bf16.msra.mxu0 0
  %1079 = vmatprep.subr.bf16.mxu0 0
  %1080 = vmatpush1.bf16.msra.mxu0 0
  %1081 = vmatprep.subr.bf16.mxu0 0
  %1082 = vmatpush1.bf16.msra.mxu0 0
  %1083 = vmatprep.subr.bf16.mxu0 0
  %1084 = vmatpush1.bf16.msra.mxu0 0
  %1085 = vmatprep.subr.bf16.mxu0 0
  %1086 = vmatpush1.bf16.msra.mxu0 0
  %1087 = vmatprep.subr.bf16.mxu0 0
  %1088 = vmatpush1.bf16.msra.mxu0 0
  %1089 = vmatprep.mubr.bf16.mxu0 0
  %1090 = vmatmul.mubr.bf16.gmra.mrb[0].mxu0 %v1056
  %v1091 = vpop.f32.mrb[0].mxu0
  %v1092 = vadd.f32 %v481, %v1091
  %v1093 = vpop.f32.mrb[0].mxu0
  %v1094 = vadd.f32 %v485, %v1093
  %v1095 = vpop.f32.mrb[0].mxu0
  %v1096 = vpop.f32.mrb[0].mxu0
  %1097 = vdwg.mxu0
  %1098 = vmatprep.subr.bf16.mxu0 0
  %1099 = vmatpush1.bf16.msra.mxu0 %v575
  %1100 = vmatprep.subr.bf16.mxu0 0
  %1101 = vmatpush1.bf16.msra.mxu0 %v578
  %1102 = vmatprep.subr.bf16.mxu0 0
  %1103 = vmatpush1.bf16.msra.mxu0 %v581
  %1104 = vmatprep.subr.bf16.mxu0 0
  %1105 = vmatpush1.bf16.msra.mxu0 %v584
  %1106 = vmatprep.subr.bf16.mxu0 0
  %1107 = vmatpush1.bf16.msra.mxu0 %v587
  %1108 = vmatprep.subr.bf16.mxu0 0
  %1109 = vmatpush1.bf16.msra.mxu0 %v590
  %1110 = vmatprep.subr.bf16.mxu0 0
  %1111 = vmatpush1.bf16.msra.mxu0 %v593
  %1112 = vmatprep.subr.bf16.mxu0 0
  %1113 = vmatpush1.bf16.msra.mxu0 %v596
  %1114 = vmatprep.subr.bf16.mxu0 0
  %1115 = vmatpush1.bf16.msra.mxu0 0
  %1116 = vmatprep.subr.bf16.mxu0 0
  %1117 = vmatpush1.bf16.msra.mxu0 0
  %1118 = vmatprep.subr.bf16.mxu0 0
  %1119 = vmatpush1.bf16.msra.mxu0 0
  %1120 = vmatprep.subr.bf16.mxu0 0
  %1121 = vmatpush1.bf16.msra.mxu0 0
  %1122 = vmatprep.subr.bf16.mxu0 0
  %1123 = vmatpush1.bf16.msra.mxu0 0
  %1124 = vmatprep.subr.bf16.mxu0 0
  %1125 = vmatpush1.bf16.msra.mxu0 0
  %1126 = vmatprep.subr.bf16.mxu0 0
  %1127 = vmatpush1.bf16.msra.mxu0 0
  %1128 = vmatprep.subr.bf16.mxu0 0
  %1129 = vmatpush1.bf16.msra.mxu0 0
  %1130 = vmatprep.mubr.bf16.mxu0 0
  %1131 = vmatmul.mubr.bf16.gmra.mrb[0].mxu0 %v1056
  %v1132 = vpop.f32.mrb[0].mxu0
  %v1133 = vadd.f32 %v489, %v1132
  %v1134 = vpop.f32.mrb[0].mxu0
  %v1135 = vpop.f32.mrb[0].mxu0
  %v1136 = vpop.f32.mrb[0].mxu0
  %1137 = vdwg.mxu0
  %v1138 = vadd.f32 %v1053, %v1092
  %v1139 = vxor.u32 %v1138, 2147483648
  %v1140 = vmul.f32 %v1139, 1.442695
  %v1141 = vpow.pop %v1140
  %v1142 = vadd.f32 %v1141, 1.0
  %v1143 = vrcp.pop %v1142
  %v1144 = vmul.f32 1.0, %v1143
  %v1145 = vadd.f32 %v1054, %v1094
  %v1146 = vxor.u32 %v1145, 2147483648
  %v1147 = vmul.f32 %v1146, 1.442695
  %v1148 = vpow.pop %v1147
  %v1149 = vadd.f32 %v1148, 1.0
  %v1150 = vrcp.pop %v1149
  %v1151 = vmul.f32 1.0, %v1150
  %v1152 = vmul.f32 %v1144, %v1133
  %v1153 = vadd.f32 %v1055, %v1152
  %v1154 = vtanh.pop %v1153
  %v1155 = vsub.f32 1.0, %v1151
  %v1156 = vmul.f32 %v1155, %v1154
  %v1157 = vmul.f32 %v1151, %v1049
  %v1158 = vadd.f32 %v1156, %v1157
  %s1159 = scalar_lea.vmem [#allocation2], 60
  %v1160 = vld [vmem:[%s1159] sm:$0xff]
  %v1161 = vld [vmem:[%s1159 + $0x8] sm:$0xf]
  %v1162 = vunpack.c.l.bf16 %v1160
  %v1163 = vunpack.c.h.bf16 %v1160
  %v1164 = vunpack.c.l.bf16 %v1161
  %v1165 = vpack.c.bf16 %v1158, %v1158
  %1166 = vmatprep.subr.bf16.mxu0 %v574
  %1167 = vmatpush1.bf16.msra.mxu0 %v573
  %1168 = vmatprep.subr.bf16.mxu0 %v577
  %1169 = vmatpush1.bf16.msra.mxu0 %v576
  %1170 = vmatprep.subr.bf16.mxu0 %v580
  %1171 = vmatpush1.bf16.msra.mxu0 %v579
  %1172 = vmatprep.subr.bf16.mxu0 %v583
  %1173 = vmatpush1.bf16.msra.mxu0 %v582
  %1174 = vmatprep.subr.bf16.mxu0 %v586
  %1175 = vmatpush1.bf16.msra.mxu0 %v585
  %1176 = vmatprep.subr.bf16.mxu0 %v589
  %1177 = vmatpush1.bf16.msra.mxu0 %v588
  %1178 = vmatprep.subr.bf16.mxu0 %v592
  %1179 = vmatpush1.bf16.msra.mxu0 %v591
  %1180 = vmatprep.subr.bf16.mxu0 %v595
  %1181 = vmatpush1.bf16.msra.mxu0 %v594
  %1182 = vmatprep.subr.bf16.mxu0 0
  %1183 = vmatpush1.bf16.msra.mxu0 0
  %1184 = vmatprep.subr.bf16.mxu0 0
  %1185 = vmatpush1.bf16.msra.mxu0 0
  %1186 = vmatprep.subr.bf16.mxu0 0
  %1187 = vmatpush1.bf16.msra.mxu0 0
  %1188 = vmatprep.subr.bf16.mxu0 0
  %1189 = vmatpush1.bf16.msra.mxu0 0
  %1190 = vmatprep.subr.bf16.mxu0 0
  %1191 = vmatpush1.bf16.msra.mxu0 0
  %1192 = vmatprep.subr.bf16.mxu0 0
  %1193 = vmatpush1.bf16.msra.mxu0 0
  %1194 = vmatprep.subr.bf16.mxu0 0
  %1195 = vmatpush1.bf16.msra.mxu0 0
  %1196 = vmatprep.subr.bf16.mxu0 0
  %1197 = vmatpush1.bf16.msra.mxu0 0
  %1198 = vmatprep.mubr.bf16.mxu0 0
  %1199 = vmatmul.mubr.bf16.gmra.mrb[0].mxu0 %v1165
  %v1200 = vpop.f32.mrb[0].mxu0
  %v1201 = vadd.f32 %v481, %v1200
  %v1202 = vpop.f32.mrb[0].mxu0
  %v1203 = vadd.f32 %v485, %v1202
  %v1204 = vpop.f32.mrb[0].mxu0
  %v1205 = vpop.f32.mrb[0].mxu0
  %1206 = vdwg.mxu0
  %1207 = vmatprep.subr.bf16.mxu0 0
  %1208 = vmatpush1.bf16.msra.mxu0 %v575
  %1209 = vmatprep.subr.bf16.mxu0 0
  %1210 = vmatpush1.bf16.msra.mxu0 %v578
  %1211 = vmatprep.subr.bf16.mxu0 0
  %1212 = vmatpush1.bf16.msra.mxu0 %v581
  %1213 = vmatprep.subr.bf16.mxu0 0
  %1214 = vmatpush1.bf16.msra.mxu0 %v584
  %1215 = vmatprep.subr.bf16.mxu0 0
  %1216 = vmatpush1.bf16.msra.mxu0 %v587
  %1217 = vmatprep.subr.bf16.mxu0 0
  %1218 = vmatpush1.bf16.msra.mxu0 %v590
  %1219 = vmatprep.subr.bf16.mxu0 0
  %1220 = vmatpush1.bf16.msra.mxu0 %v593
  %1221 = vmatprep.subr.bf16.mxu0 0
  %1222 = vmatpush1.bf16.msra.mxu0 %v596
  %1223 = vmatprep.subr.bf16.mxu0 0
  %1224 = vmatpush1.bf16.msra.mxu0 0
  %1225 = vmatprep.subr.bf16.mxu0 0
  %1226 = vmatpush1.bf16.msra.mxu0 0
  %1227 = vmatprep.subr.bf16.mxu0 0
  %1228 = vmatpush1.bf16.msra.mxu0 0
  %1229 = vmatprep.subr.bf16.mxu0 0
  %1230 = vmatpush1.bf16.msra.mxu0 0
  %1231 = vmatprep.subr.bf16.mxu0 0
  %1232 = vmatpush1.bf16.msra.mxu0 0
  %1233 = vmatprep.subr.bf16.mxu0 0
  %1234 = vmatpush1.bf16.msra.mxu0 0
  %1235 = vmatprep.subr.bf16.mxu0 0
  %1236 = vmatpush1.bf16.msra.mxu0 0
  %1237 = vmatprep.subr.bf16.mxu0 0
  %1238 = vmatpush1.bf16.msra.mxu0 0
  %1239 = vmatprep.mubr.bf16.mxu0 0
  %1240 = vmatmul.mubr.bf16.gmra.mrb[0].mxu0 %v1165
  %v1241 = vpop.f32.mrb[0].mxu0
  %v1242 = vadd.f32 %v489, %v1241
  %v1243 = vpop.f32.mrb[0].mxu0
  %v1244 = vpop.f32.mrb[0].mxu0
  %v1245 = vpop.f32.mrb[0].mxu0
  %1246 = vdwg.mxu0
  %v1247 = vadd.f32 %v1162, %v1201
  %v1248 = vxor.u32 %v1247, 2147483648
  %v1249 = vmul.f32 %v1248, 1.442695
  %v1250 = vpow.pop %v1249
  %v1251 = vadd.f32 %v1250, 1.0
  %v1252 = vrcp.pop %v1251
  %v1253 = vmul.f32 1.0, %v1252
  %v1254 = vadd.f32 %v1163, %v1203
  %v1255 = vxor.u32 %v1254, 2147483648
  %v1256 = vmul.f32 %v1255, 1.442695
  %v1257 = vpow.pop %v1256
  %v1258 = vadd.f32 %v1257, 1.0
  %v1259 = vrcp.pop %v1258
  %v1260 = vmul.f32 1.0, %v1259
  %v1261 = vmul.f32 %v1253, %v1242
  %v1262 = vadd.f32 %v1164, %v1261
  %v1263 = vtanh.pop %v1262
  %v1264 = vsub.f32 1.0, %v1260
  %v1265 = vmul.f32 %v1264, %v1263
  %v1266 = vmul.f32 %v1260, %v1158
  %v1267 = vadd.f32 %v1265, %v1266
  %1268 = vst [vmem:[%s5] sm:$0xff] %v1267
  // Predicated region
  $region26: #{dual_encoder_forward.4} parent=0 // pred_check
    _
  $region27: #{dual_encoder_forward.4} parent=0 // pred_check_branch
    %1270 = sbr.rel (0) target = $region29
  $region28: #{dual_encoder_forward.4} parent=0 // pred_region
    _
  $region29: #{dual_encoder_forward.4} parent=0 // pred_fallthru
    _
  // Predicated region
  $region30: #{dual_encoder_forward.4} parent=0 // pred_check
    _
  $region31: #{dual_encoder_forward.4} parent=0 // pred_check_branch
    %1272 = sbr.rel (0) target = $region33
  $region32: #{dual_encoder_forward.4} parent=0 // pred_region
    _
  $region33: #{dual_encoder_forward.4} parent=0 // pred_fallthru
    _

// kernel: dual_encoder_forward.3
$region0: #{dual_encoder_forward.3}
  #allocation0 [shape = 'u32[]', space=smem, size = 0x4, offset = 0x4, fixed_abs, tag = 'smem constant byte address 0x4 - core index']
  #allocation1 [shape = 'u32[144,128]{1,0:T(1,128)}', space=vmem, size = 0x12000, scoped, tag = 'internal scratch']
  #allocation2 [shape = 'bf16[8,8,384]{2,1,0:T(8,128)(2,1)}', space=vmem, size = 0xc000, scoped, tag = 'scratch operand']
  %s0 = inlined_call_operand.vmem [shape: bf16[8,8,128], index: 0, kind: input, shape index: {}]
  %s1 = inlined_call_operand.vmem [shape: bf16[128,384], index: 1, kind: input, shape index: {}]
  %s2 = inlined_call_operand.vmem [shape: bf16[128,384], index: 2, kind: input, shape index: {}]
  %s3 = inlined_call_operand.vmem [shape: f32[1,384], index: 3, kind: input, shape index: {}]
  %s4 = inlined_call_operand.vmem [shape: f32[1,384], index: 4, kind: input, shape index: {}]
  %s5 = inlined_call_operand.vmem [shape: f32[8,128], index: 5, kind: output, shape index: {}]
  %s6 = sld [smem:[#allocation0]]
  $region34: #{dual_encoder_forward.3} parent=0
    _
  %s8 = ssub.s32 1, %s6
  %s9 = scalar_select 0, %s8, %s6
  // Predicated region
  $region2: #{dual_encoder_forward.3} parent=0 // pred_check
    _
  $region3: #{dual_encoder_forward.3} parent=0 // pred_check_branch
    %11 = sbr.rel (0) target = $region5
  $region4: #{dual_encoder_forward.3} parent=0 // pred_region
    _
  $region5: #{dual_encoder_forward.3} parent=0 // pred_fallthru
    _
  // Predicated region
  $region6: #{dual_encoder_forward.3} parent=0 // pred_check
    _
  $region7: #{dual_encoder_forward.3} parent=0 // pred_check_branch
    %13 = sbr.rel (0) target = $region9
  $region8: #{dual_encoder_forward.3} parent=0 // pred_region
    _
  $region9: #{dual_encoder_forward.3} parent=0 // pred_fallthru
    _
  // Predicated region
  $region10: #{dual_encoder_forward.3} parent=0 // pred_check
    _
  $region11: #{dual_encoder_forward.3} parent=0 // pred_check_branch
    %15 = sbr.rel (0) target = $region13
  $region12: #{dual_encoder_forward.3} parent=0 // pred_region
    _
  $region13: #{dual_encoder_forward.3} parent=0 // pred_fallthru
    _
  // Predicated region
  $region14: #{dual_encoder_forward.3} parent=0 // pred_check
    _
  $region15: #{dual_encoder_forward.3} parent=0 // pred_check_branch
    %17 = sbr.rel (0) target = $region17
  $region16: #{dual_encoder_forward.3} parent=0 // pred_region
    _
  $region17: #{dual_encoder_forward.3} parent=0 // pred_fallthru
    _
  // Predicated region
  $region18: #{dual_encoder_forward.3} parent=0 // pred_check
    _
  $region19: #{dual_encoder_forward.3} parent=0 // pred_check_branch
    %19 = sbr.rel (0) target = $region21
  $region20: #{dual_encoder_forward.3} parent=0 // pred_region
    _
  $region21: #{dual_encoder_forward.3} parent=0 // pred_fallthru
    _
  %v21 = vld [vmem:[%s0] sm:$0xf]
  %v22 = vld [vmem:[%s0 + $0x4] sm:$0xf]
  %v23 = vld [vmem:[%s0 + $0x8] sm:$0xf]
  %v24 = vld [vmem:[%s0 + $0xc] sm:$0xf]
  %v25 = vld [vmem:[%s0 + $0x10] sm:$0xf]
  %v26 = vld [vmem:[%s0 + $0x14] sm:$0xf]
  %v27 = vld [vmem:[%s0 + $0x18] sm:$0xf]
  %v28 = vld [vmem:[%s0 + $0x1c] sm:$0xf]
  %v29 = vld [vmem:[%s1] sm:$0xff]
  %v30 = vld [vmem:[%s1 + $0x8] sm:$0xf]
  %v31 = vld [vmem:[%s1 + $0xc] sm:$0xff]
  %v32 = vld [vmem:[%s1 + $0x14] sm:$0xf]
  %v33 = vld [vmem:[%s1 + $0x18] sm:$0xff]
  %v34 = vld [vmem:[%s1 + $0x20] sm:$0xf]
  %v35 = vld [vmem:[%s1 + $0x24] sm:$0xff]
  %v36 = vld [vmem:[%s1 + $0x2c] sm:$0xf]
  %v37 = vld [vmem:[%s1 + $0x30] sm:$0xff]
  %v38 = vld [vmem:[%s1 + $0x38] sm:$0xf]
  %v39 = vld [vmem:[%s1 + $0x3c] sm:$0xff]
  %v40 = vld [vmem:[%s1 + $0x44] sm:$0xf]
  %v41 = vld [vmem:[%s1 + $0x48] sm:$0xff]
  %v42 = vld [vmem:[%s1 + $0x50] sm:$0xf]
  %v43 = vld [vmem:[%s1 + $0x54] sm:$0xff]
  %v44 = vld [vmem:[%s1 + $0x5c] sm:$0xf]
  %v45 = vld [vmem:[%s1 + $0x60] sm:$0xff]
  %v46 = vld [vmem:[%s1 + $0x68] sm:$0xf]
  %v47 = vld [vmem:[%s1 + $0x6c] sm:$0xff]
  %v48 = vld [vmem:[%s1 + $0x74] sm:$0xf]
  %v49 = vld [vmem:[%s1 + $0x78] sm:$0xff]
  %v50 = vld [vmem:[%s1 + $0x80] sm:$0xf]
  %v51 = vld [vmem:[%s1 + $0x84] sm:$0xff]
  %v52 = vld [vmem:[%s1 + $0x8c] sm:$0xf]
  %v53 = vld [vmem:[%s1 + $0x90] sm:$0xff]
  %v54 = vld [vmem:[%s1 + $0x98] sm:$0xf]
  %v55 = vld [vmem:[%s1 + $0x9c] sm:$0xff]
  %v56 = vld [vmem:[%s1 + $0xa4] sm:$0xf]
  %v57 = vld [vmem:[%s1 + $0xa8] sm:$0xff]
  %v58 = vld [vmem:[%s1 + $0xb0] sm:$0xf]
  %v59 = vld [vmem:[%s1 + $0xb4] sm:$0xff]
  %v60 = vld [vmem:[%s1 + $0xbc] sm:$0xf]
  %v61 = vld [vmem:[%s3] sm:$0x7]
  %v63 = vlaneseq
  %v64 = vshrl.u32 %v63, 7
  %v65 = vsub.s32 0, %v64
  %v66 = vrot.slane %v61, %v65
  %v67 = vlaneseq
  %v68 = vshrl.u32 %v67, 7
  %v69 = vsub.s32 1, %v68
  %v70 = vrot.slane %v61, %v69
  %v71 = vlaneseq
  %v72 = vshrl.u32 %v71, 7
  %v73 = vsub.s32 2, %v72
  %v74 = vrot.slane %v61, %v73
  %v86 = vunpack.c.l.b16 %v21
  %v87 = vunpack.c.l.b16 %v22
  %v88 = vunpack.c.l.b16 %v23
  %v89 = vunpack.c.l.b16 %v24
  %v90 = vunpack.c.l.b16 %v25
  %v91 = vunpack.c.l.b16 %v26
  %v92 = vunpack.c.l.b16 %v27
  %v93 = vunpack.c.l.b16 %v28
  %v94 = vpack.c.b16 %v87, %v86
  %v95 = vpack.c.b16 %v89, %v88
  %v96 = vpack.c.b16 %v91, %v90
  %v97 = vpack.c.b16 %v93, %v92
  %v134 = vunpack.c.l.b16 %v29
  %v135 = vunpack.c.h.b16 %v29
  %v136 = vunpack.c.l.b16 %v30
  %v137 = vunpack.c.l.b16 %v31
  %v138 = vunpack.c.h.b16 %v31
  %v139 = vunpack.c.l.b16 %v32
  %v140 = vunpack.c.l.b16 %v33
  %v141 = vunpack.c.h.b16 %v33
  %v142 = vunpack.c.l.b16 %v34
  %v143 = vunpack.c.l.b16 %v35
  %v144 = vunpack.c.h.b16 %v35
  %v145 = vunpack.c.l.b16 %v36
  %v146 = vunpack.c.l.b16 %v37
  %v147 = vunpack.c.h.b16 %v37
  %v148 = vunpack.c.l.b16 %v38
  %v149 = vunpack.c.l.b16 %v39
  %v150 = vunpack.c.h.b16 %v39
  %v151 = vunpack.c.l.b16 %v40
  %v152 = vunpack.c.l.b16 %v41
  %v153 = vunpack.c.h.b16 %v41
  %v154 = vunpack.c.l.b16 %v42
  %v155 = vunpack.c.l.b16 %v43
  %v156 = vunpack.c.h.b16 %v43
  %v157 = vunpack.c.l.b16 %v44
  %v158 = vunpack.c.l.b16 %v45
  %v159 = vunpack.c.h.b16 %v45
  %v160 = vunpack.c.l.b16 %v46
  %v161 = vunpack.c.l.b16 %v47
  %v162 = vunpack.c.h.b16 %v47
  %v163 = vunpack.c.l.b16 %v48
  %v164 = vunpack.c.l.b16 %v49
  %v165 = vunpack.c.h.b16 %v49
  %v166 = vunpack.c.l.b16 %v50
  %v167 = vunpack.c.l.b16 %v51
  %v168 = vunpack.c.h.b16 %v51
  %v169 = vunpack.c.l.b16 %v52
  %v170 = vunpack.c.l.b16 %v53
  %v171 = vunpack.c.h.b16 %v53
  %v172 = vunpack.c.l.b16 %v54
  %v173 = vunpack.c.l.b16 %v55
  %v174 = vunpack.c.h.b16 %v55
  %v175 = vunpack.c.l.b16 %v56
  %v176 = vunpack.c.l.b16 %v57
  %v177 = vunpack.c.h.b16 %v57
  %v178 = vunpack.c.l.b16 %v58
  %v179 = vunpack.c.l.b16 %v59
  %v180 = vunpack.c.h.b16 %v59
  %v181 = vunpack.c.l.b16 %v60
  %v182 = vpack.c.b16 %v137, %v134
  %v183 = vpack.c.b16 %v138, %v135
  %v184 = vpack.c.b16 %v139, %v136
  %v185 = vpack.c.b16 %v143, %v140
  %v186 = vpack.c.b16 %v144, %v141
  %v187 = vpack.c.b16 %v145, %v142
  %v188 = vpack.c.b16 %v149, %v146
  %v189 = vpack.c.b16 %v150, %v147
  %v190 = vpack.c.b16 %v151, %v148
  %v191 = vpack.c.b16 %v155, %v152
  %v192 = vpack.c.b16 %v156, %v153
  %v193 = vpack.c.b16 %v157, %v154
  %v194 = vpack.c.b16 %v161, %v158
  %v195 = vpack.c.b16 %v162, %v159
  %v196 = vpack.c.b16 %v163, %v160
  %v197 = vpack.c.b16 %v167, %v164
  %v198 = vpack.c.b16 %v168, %v165
  %v199 = vpack.c.b16 %v169, %v166
  %v200 = vpack.c.b16 %v173, %v170
  %v201 = vpack.c.b16 %v174, %v171
  %v202 = vpack.c.b16 %v175, %v172
  %v203 = vpack.c.b16 %v179, %v176
  %v204 = vpack.c.b16 %v180, %v177
  %v205 = vpack.c.b16 %v181, %v178
  %230 = vmatprep.subr.bf16.mxu0 %v183
  %231 = vmatpush1.bf16.msra.mxu0 %v182
  %232 = vmatprep.subr.bf16.mxu0 %v186
  %233 = vmatpush1.bf16.msra.mxu0 %v185
  %234 = vmatprep.subr.bf16.mxu0 %v189
  %235 = vmatpush1.bf16.msra.mxu0 %v188
  %236 = vmatprep.subr.bf16.mxu0 %v192
  %237 = vmatpush1.bf16.msra.mxu0 %v191
  %238 = vmatprep.subr.bf16.mxu0 %v195
  %239 = vmatpush1.bf16.msra.mxu0 %v194
  %240 = vmatprep.subr.bf16.mxu0 %v198
  %241 = vmatpush1.bf16.msra.mxu0 %v197
  %242 = vmatprep.subr.bf16.mxu0 %v201
  %243 = vmatpush1.bf16.msra.mxu0 %v200
  %244 = vmatprep.subr.bf16.mxu0 %v204
  %245 = vmatpush1.bf16.msra.mxu0 %v203
  %246 = vmatprep.subr.bf16.mxu0 0
  %247 = vmatpush1.bf16.msra.mxu0 0
  %248 = vmatprep.subr.bf16.mxu0 0
  %249 = vmatpush1.bf16.msra.mxu0 0
  %250 = vmatprep.subr.bf16.mxu0 0
  %251 = vmatpush1.bf16.msra.mxu0 0
  %252 = vmatprep.subr.bf16.mxu0 0
  %253 = vmatpush1.bf16.msra.mxu0 0
  %254 = vmatprep.subr.bf16.mxu0 0
  %255 = vmatpush1.bf16.msra.mxu0 0
  %256 = vmatprep.subr.bf16.mxu0 0
  %257 = vmatpush1.bf16.msra.mxu0 0
  %258 = vmatprep.subr.bf16.mxu0 0
  %259 = vmatpush1.bf16.msra.mxu0 0
  %260 = vmatprep.subr.bf16.mxu0 0
  %261 = vmatpush1.bf16.msra.mxu0 0
  %262 = vmatprep.mubr.bf16.mxu0 0
  %263 = vmatmul.mubr.bf16.gmra.mrb[0].mxu0 %v94
  %v264 = vpop.f32.mrb[0].mxu0
  %v265 = vadd.f32 %v66, %v264
  %v266 = vpop.f32.mrb[0].mxu0
  %v267 = vadd.f32 %v70, %v266
  %v268 = vpop.f32.mrb[0].mxu0
  %v269 = vadd.f32 %v66, %v268
  %v270 = vpop.f32.mrb[0].mxu0
  %v271 = vadd.f32 %v70, %v270
  %272 = vmatprep.mubr.bf16.mxu0 0
  %273 = vmatmul.mubr.bf16.gmra.mrb[0].mxu0 %v95
  %v274 = vpop.f32.mrb[0].mxu0
  %v275 = vadd.f32 %v66, %v274
  %v276 = vpop.f32.mrb[0].mxu0
  %v277 = vadd.f32 %v70, %v276
  %v278 = vpop.f32.mrb[0].mxu0
  %v279 = vadd.f32 %v66, %v278
  %v280 = vpop.f32.mrb[0].mxu0
  %v281 = vadd.f32 %v70, %v280
  %282 = vmatprep.mubr.bf16.mxu0 0
  %283 = vmatmul.mubr.bf16.gmra.mrb[0].mxu0 %v96
  %v284 = vpop.f32.mrb[0].mxu0
  %v285 = vadd.f32 %v66, %v284
  %v286 = vpop.f32.mrb[0].mxu0
  %v287 = vadd.f32 %v70, %v286
  %v288 = vpop.f32.mrb[0].mxu0
  %v289 = vadd.f32 %v66, %v288
  %v290 = vpop.f32.mrb[0].mxu0
  %v291 = vadd.f32 %v70, %v290
  %292 = vmatprep.mubr.bf16.mxu0 0
  %293 = vmatmul.mubr.bf16.gmra.mrb[0].mxu0 %v97
  %v294 = vpop.f32.mrb[0].mxu0
  %v295 = vadd.f32 %v66, %v294
  %v296 = vpop.f32.mrb[0].mxu0
  %v297 = vadd.f32 %v70, %v296
  %v298 = vpop.f32.mrb[0].mxu0
  %v299 = vadd.f32 %v66, %v298
  %v300 = vpop.f32.mrb[0].mxu0
  %v301 = vadd.f32 %v70, %v300
  %302 = vdwg.mxu0
  %303 = vmatprep.subr.bf16.mxu0 0
  %304 = vmatpush1.bf16.msra.mxu0 %v184
  %305 = vmatprep.subr.bf16.mxu0 0
  %306 = vmatpush1.bf16.msra.mxu0 %v187
  %307 = vmatprep.subr.bf16.mxu0 0
  %308 = vmatpush1.bf16.msra.mxu0 %v190
  %309 = vmatprep.subr.bf16.mxu0 0
  %310 = vmatpush1.bf16.msra.mxu0 %v193
  %311 = vmatprep.subr.bf16.mxu0 0
  %312 = vmatpush1.bf16.msra.mxu0 %v196
  %313 = vmatprep.subr.bf16.mxu0 0
  %314 = vmatpush1.bf16.msra.mxu0 %v199
  %315 = vmatprep.subr.bf16.mxu0 0
  %316 = vmatpush1.bf16.msra.mxu0 %v202
  %317 = vmatprep.subr.bf16.mxu0 0
  %318 = vmatpush1.bf16.msra.mxu0 %v205
  %319 = vmatprep.subr.bf16.mxu0 0
  %320 = vmatpush1.bf16.msra.mxu0 0
  %321 = vmatprep.subr.bf16.mxu0 0
  %322 = vmatpush1.bf16.msra.mxu0 0
  %323 = vmatprep.subr.bf16.mxu0 0
  %324 = vmatpush1.bf16.msra.mxu0 0
  %325 = vmatprep.subr.bf16.mxu0 0
  %326 = vmatpush1.bf16.msra.mxu0 0
  %327 = vmatprep.subr.bf16.mxu0 0
  %328 = vmatpush1.bf16.msra.mxu0 0
  %329 = vmatprep.subr.bf16.mxu0 0
  %330 = vmatpush1.bf16.msra.mxu0 0
  %331 = vmatprep.subr.bf16.mxu0 0
  %332 = vmatpush1.bf16.msra.mxu0 0
  %333 = vmatprep.subr.bf16.mxu0 0
  %334 = vmatpush1.bf16.msra.mxu0 0
  %335 = vmatprep.mubr.bf16.mxu0 0
  %336 = vmatmul.mubr.bf16.gmra.mrb[0].mxu0 %v94
  %v337 = vpop.f32.mrb[0].mxu0
  %v338 = vadd.f32 %v74, %v337
  %v339 = vpop.f32.mrb[0].mxu0
  %v340 = vpop.f32.mrb[0].mxu0
  %v341 = vadd.f32 %v74, %v340
  %v342 = vpop.f32.mrb[0].mxu0
  %343 = vmatprep.mubr.bf16.mxu0 0
  %344 = vmatmul.mubr.bf16.gmra.mrb[0].mxu0 %v95
  %v345 = vpop.f32.mrb[0].mxu0
  %v346 = vadd.f32 %v74, %v345
  %v347 = vpop.f32.mrb[0].mxu0
  %v348 = vpop.f32.mrb[0].mxu0
  %v349 = vadd.f32 %v74, %v348
  %v350 = vpop.f32.mrb[0].mxu0
  %351 = vmatprep.mubr.bf16.mxu0 0
  %352 = vmatmul.mubr.bf16.gmra.mrb[0].mxu0 %v96
  %v353 = vpop.f32.mrb[0].mxu0
  %v354 = vadd.f32 %v74, %v353
  %v355 = vpop.f32.mrb[0].mxu0
  %v356 = vpop.f32.mrb[0].mxu0
  %v357 = vadd.f32 %v74, %v356
  %v358 = vpop.f32.mrb[0].mxu0
  %359 = vmatprep.mubr.bf16.mxu0 0
  %360 = vmatmul.mubr.bf16.gmra.mrb[0].mxu0 %v97
  %v361 = vpop.f32.mrb[0].mxu0
  %v362 = vadd.f32 %v74, %v361
  %v363 = vpop.f32.mrb[0].mxu0
  %v364 = vpop.f32.mrb[0].mxu0
  %v365 = vadd.f32 %v74, %v364
  %v366 = vpop.f32.mrb[0].mxu0
  %367 = vdwg.mxu0
  %v368 = vpack.c.bf16 %v265, %v265
  %v369 = vpack.c.bf16 %v267, %v267
  %v370 = vpack.c.bf16 %v338, %v338
  %v371 = vpack.c.bf16 %v269, %v269
  %v372 = vpack.c.bf16 %v271, %v271
  %v373 = vpack.c.bf16 %v341, %v341
  %v374 = vpack.c.bf16 %v275, %v275
  %v375 = vpack.c.bf16 %v277, %v277
  %v376 = vpack.c.bf16 %v346, %v346
  %v377 = vpack.c.bf16 %v279, %v279
  %v378 = vpack.c.bf16 %v281, %v281
  %v379 = vpack.c.bf16 %v349, %v349
  %v380 = vpack.c.bf16 %v285, %v285
  %v381 = vpack.c.bf16 %v287, %v287
  %v382 = vpack.c.bf16 %v354, %v354
  %v383 = vpack.c.bf16 %v289, %v289
  %v384 = vpack.c.bf16 %v291, %v291
  %v385 = vpack.c.bf16 %v357, %v357
  %v386 = vpack.c.bf16 %v295, %v295
  %v387 = vpack.c.bf16 %v297, %v297
  %v388 = vpack.c.bf16 %v362, %v362
  %v389 = vpack.c.bf16 %v299, %v299
  %v390 = vpack.c.bf16 %v301, %v301
  %v391 = vpack.c.bf16 %v365, %v365
  %v416 = vunpack.c.l.b16 %v368
  %v417 = vunpack.c.l.b16 %v369
  %v418 = vunpack.c.l.b16 %v370
  %v419 = vunpack.c.l.b16 %v371
  %v420 = vunpack.c.l.b16 %v372
  %v421 = vunpack.c.l.b16 %v373
  %v422 = vunpack.c.l.b16 %v374
  %v423 = vunpack.c.l.b16 %v375
  %v424 = vunpack.c.l.b16 %v376
  %v425 = vunpack.c.l.b16 %v377
  %v426 = vunpack.c.l.b16 %v378
  %v427 = vunpack.c.l.b16 %v379
  %v428 = vunpack.c.l.b16 %v380
  %v429 = vunpack.c.l.b16 %v381
  %v430 = vunpack.c.l.b16 %v382
  %v431 = vunpack.c.l.b16 %v383
  %v432 = vunpack.c.l.b16 %v384
  %v433 = vunpack.c.l.b16 %v385
  %v434 = vunpack.c.l.b16 %v386
  %v435 = vunpack.c.l.b16 %v387
  %v436 = vunpack.c.l.b16 %v388
  %v437 = vunpack.c.l.b16 %v389
  %v438 = vunpack.c.l.b16 %v390
  %v439 = vunpack.c.l.b16 %v391
  %v440 = vpack.c.b16 %v417, %v416
  %v441 = vpack.c.b16 %v418, %v418
  %v442 = vpack.c.b16 %v420, %v419
  %v443 = vpack.c.b16 %v421, %v421
  %v444 = vpack.c.b16 %v423, %v422
  %v445 = vpack.c.b16 %v424, %v424
  %v446 = vpack.c.b16 %v426, %v425
  %v447 = vpack.c.b16 %v427, %v427
  %v448 = vpack.c.b16 %v429, %v428
  %v449 = vpack.c.b16 %v430, %v430
  %v450 = vpack.c.b16 %v432, %v431
  %v451 = vpack.c.b16 %v433, %v433
  %v452 = vpack.c.b16 %v435, %v434
  %v453 = vpack.c.b16 %v436, %v436
  %v454 = vpack.c.b16 %v438, %v437
  %v455 = vpack.c.b16 %v439, %v439
  %472 = vst [vmem:[#allocation2] sm:$0xff] %v440
  %473 = vst [vmem:[#allocation2 + $0x8] sm:$0xf] %v441
  %474 = vst [vmem:[#allocation2 + $0xc] sm:$0xff] %v442
  %475 = vst [vmem:[#allocation2 + $0x14] sm:$0xf] %v443
  %476 = vst [vmem:[#allocation2 + $0x18] sm:$0xff] %v444
  %477 = vst [vmem:[#allocation2 + $0x20] sm:$0xf] %v445
  %478 = vst [vmem:[#allocation2 + $0x24] sm:$0xff] %v446
  %479 = vst [vmem:[#allocation2 + $0x2c] sm:$0xf] %v447
  %480 = vst [vmem:[#allocation2 + $0x30] sm:$0xff] %v448
  %481 = vst [vmem:[#allocation2 + $0x38] sm:$0xf] %v449
  %482 = vst [vmem:[#allocation2 + $0x3c] sm:$0xff] %v450
  %483 = vst [vmem:[#allocation2 + $0x44] sm:$0xf] %v451
  %484 = vst [vmem:[#allocation2 + $0x48] sm:$0xff] %v452
  %485 = vst [vmem:[#allocation2 + $0x50] sm:$0xf] %v453
  %486 = vst [vmem:[#allocation2 + $0x54] sm:$0xff] %v454
  %487 = vst [vmem:[#allocation2 + $0x5c] sm:$0xf] %v455
  %p488 = scmp.eq.s32.totalorder 0, 0
  // Predicated region
  $region22: #{dual_encoder_forward.3} parent=0 // pred_check
    %p489 = pneg %p488
  $region23: #{dual_encoder_forward.3} parent=0 // pred_check_branch
    %491 = sbr.rel (%p489) target = $region25
  $region24: #{dual_encoder_forward.3} parent=0 // pred_region
    %492 = vst [vmem:[%s5] sm:$0xff] 0.0
  $region25: #{dual_encoder_forward.3} parent=0 // pred_fallthru
    _
  %v493 = vld [vmem:[%s2] sm:$0xff]
  %v494 = vld [vmem:[%s2 + $0x8] sm:$0xf]
  %v495 = vld [vmem:[%s2 + $0xc] sm:$0xff]
  %v496 = vld [vmem:[%s2 + $0x14] sm:$0xf]
  %v497 = vld [vmem:[%s2 + $0x18] sm:$0xff]
  %v498 = vld [vmem:[%s2 + $0x20] sm:$0xf]
  %v499 = vld [vmem:[%s2 + $0x24] sm:$0xff]
  %v500 = vld [vmem:[%s2 + $0x2c] sm:$0xf]
  %v501 = vld [vmem:[%s2 + $0x30] sm:$0xff]
  %v502 = vld [vmem:[%s2 + $0x38] sm:$0xf]
  %v503 = vld [vmem:[%s2 + $0x3c] sm:$0xff]
  %v504 = vld [vmem:[%s2 + $0x44] sm:$0xf]
  %v505 = vld [vmem:[%s2 + $0x48] sm:$0xff]
  %v506 = vld [vmem:[%s2 + $0x50] sm:$0xf]
  %v507 = vld [vmem:[%s2 + $0x54] sm:$0xff]
  %v508 = vld [vmem:[%s2 + $0x5c] sm:$0xf]
  %v509 = vld [vmem:[%s2 + $0x60] sm:$0xff]
  %v510 = vld [vmem:[%s2 + $0x68] sm:$0xf]
  %v511 = vld [vmem:[%s2 + $0x6c] sm:$0xff]
  %v512 = vld [vmem:[%s2 + $0x74] sm:$0xf]
  %v513 = vld [vmem:[%s2 + $0x78] sm:$0xff]
  %v514 = vld [vmem:[%s2 + $0x80] sm:$0xf]
  %v515 = vld [vmem:[%s2 + $0x84] sm:$0xff]
  %v516 = vld [vmem:[%s2 + $0x8c] sm:$0xf]
  %v517 = vld [vmem:[%s2 + $0x90] sm:$0xff]
  %v518 = vld [vmem:[%s2 + $0x98] sm:$0xf]
  %v519 = vld [vmem:[%s2 + $0x9c] sm:$0xff]
  %v520 = vld [vmem:[%s2 + $0xa4] sm:$0xf]
  %v521 = vld [vmem:[%s2 + $0xa8] sm:$0xff]
  %v522 = vld [vmem:[%s2 + $0xb0] sm:$0xf]
  %v523 = vld [vmem:[%s2 + $0xb4] sm:$0xff]
  %v524 = vld [vmem:[%s2 + $0xbc] sm:$0xf]
  %v525 = vld [vmem:[%s4] sm:$0x7]
  %v526 = vld [vmem:[%s5] sm:$0xff]
  %v527 = vld [vmem:[#allocation2] sm:$0xff]
  %v528 = vld [vmem:[#allocation2 + $0x8] sm:$0xf]
  %v529 = vunpack.c.l.bf16 %v527
  %v530 = vunpack.c.h.bf16 %v527
  %v531 = vunpack.c.l.bf16 %v528
  %v532 = vpack.c.bf16 %v526, %v526
  %v534 = vlaneseq
  %v535 = vshrl.u32 %v534, 7
  %v536 = vsub.s32 0, %v535
  %v537 = vrot.slane %v525, %v536
  %v538 = vlaneseq
  %v539 = vshrl.u32 %v538, 7
  %v540 = vsub.s32 1, %v539
  %v541 = vrot.slane %v525, %v540
  %v542 = vlaneseq
  %v543 = vshrl.u32 %v542, 7
  %v544 = vsub.s32 2, %v543
  %v545 = vrot.slane %v525, %v544
  %v581 = vunpack.c.l.b16 %v493
  %v582 = vunpack.c.h.b16 %v493
  %v583 = vunpack.c.l.b16 %v494
  %v584 = vunpack.c.l.b16 %v495
  %v585 = vunpack.c.h.b16 %v495
  %v586 = vunpack.c.l.b16 %v496
  %v587 = vunpack.c.l.b16 %v497
  %v588 = vunpack.c.h.b16 %v497
  %v589 = vunpack.c.l.b16 %v498
  %v590 = vunpack.c.l.b16 %v499
  %v591 = vunpack.c.h.b16 %v499
  %v592 = vunpack.c.l.b16 %v500
  %v593 = vunpack.c.l.b16 %v501
  %v594 = vunpack.c.h.b16 %v501
  %v595 = vunpack.c.l.b16 %v502
  %v596 = vunpack.c.l.b16 %v503
  %v597 = vunpack.c.h.b16 %v503
  %v598 = vunpack.c.l.b16 %v504
  %v599 = vunpack.c.l.b16 %v505
  %v600 = vunpack.c.h.b16 %v505
  %v601 = vunpack.c.l.b16 %v506
  %v602 = vunpack.c.l.b16 %v507
  %v603 = vunpack.c.h.b16 %v507
  %v604 = vunpack.c.l.b16 %v508
  %v605 = vunpack.c.l.b16 %v509
  %v606 = vunpack.c.h.b16 %v509
  %v607 = vunpack.c.l.b16 %v510
  %v608 = vunpack.c.l.b16 %v511
  %v609 = vunpack.c.h.b16 %v511
  %v610 = vunpack.c.l.b16 %v512
  %v611 = vunpack.c.l.b16 %v513
  %v612 = vunpack.c.h.b16 %v513
  %v613 = vunpack.c.l.b16 %v514
  %v614 = vunpack.c.l.b16 %v515
  %v615 = vunpack.c.h.b16 %v515
  %v616 = vunpack.c.l.b16 %v516
  %v617 = vunpack.c.l.b16 %v517
  %v618 = vunpack.c.h.b16 %v517
  %v619 = vunpack.c.l.b16 %v518
  %v620 = vunpack.c.l.b16 %v519
  %v621 = vunpack.c.h.b16 %v519
  %v622 = vunpack.c.l.b16 %v520
  %v623 = vunpack.c.l.b16 %v521
  %v624 = vunpack.c.h.b16 %v521
  %v625 = vunpack.c.l.b16 %v522
  %v626 = vunpack.c.l.b16 %v523
  %v627 = vunpack.c.h.b16 %v523
  %v628 = vunpack.c.l.b16 %v524
  %v629 = vpack.c.b16 %v584, %v581
  %v630 = vpack.c.b16 %v585, %v582
  %v631 = vpack.c.b16 %v586, %v583
  %v632 = vpack.c.b16 %v590, %v587
  %v633 = vpack.c.b16 %v591, %v588
  %v634 = vpack.c.b16 %v592, %v589
  %v635 = vpack.c.b16 %v596, %v593
  %v636 = vpack.c.b16 %v597, %v594
  %v637 = vpack.c.b16 %v598, %v595
  %v638 = vpack.c.b16 %v602, %v599
  %v639 = vpack.c.b16 %v603, %v600
  %v640 = vpack.c.b16 %v604, %v601
  %v641 = vpack.c.b16 %v608, %v605
  %v642 = vpack.c.b16 %v609, %v606
  %v643 = vpack.c.b16 %v610, %v607
  %v644 = vpack.c.b16 %v614, %v611
  %v645 = vpack.c.b16 %v615, %v612
  %v646 = vpack.c.b16 %v616, %v613
  %v647 = vpack.c.b16 %v620, %v617
  %v648 = vpack.c.b16 %v621, %v618
  %v649 = vpack.c.b16 %v622, %v619
  %v650 = vpack.c.b16 %v626, %v623
  %v651 = vpack.c.b16 %v627, %v624
  %v652 = vpack.c.b16 %v628, %v625
  %677 = vmatprep.subr.bf16.mxu0 %v630
  %678 = vmatpush1.bf16.msra.mxu0 %v629
  %679 = vmatprep.subr.bf16.mxu0 %v633
  %680 = vmatpush1.bf16.msra.mxu0 %v632
  %681 = vmatprep.subr.bf16.mxu0 %v636
  %682 = vmatpush1.bf16.msra.mxu0 %v635
  %683 = vmatprep.subr.bf16.mxu0 %v639
  %684 = vmatpush1.bf16.msra.mxu0 %v638
  %685 = vmatprep.subr.bf16.mxu0 %v642
  %686 = vmatpush1.bf16.msra.mxu0 %v641
  %687 = vmatprep.subr.bf16.mxu0 %v645
  %688 = vmatpush1.bf16.msra.mxu0 %v644
  %689 = vmatprep.subr.bf16.mxu0 %v648
  %690 = vmatpush1.bf16.msra.mxu0 %v647
  %691 = vmatprep.subr.bf16.mxu0 %v651
  %692 = vmatpush1.bf16.msra.mxu0 %v650
  %693 = vmatprep.subr.bf16.mxu0 0
  %694 = vmatpush1.bf16.msra.mxu0 0
  %695 = vmatprep.subr.bf16.mxu0 0
  %696 = vmatpush1.bf16.msra.mxu0 0
  %697 = vmatprep.subr.bf16.mxu0 0
  %698 = vmatpush1.bf16.msra.mxu0 0
  %699 = vmatprep.subr.bf16.mxu0 0
  %700 = vmatpush1.bf16.msra.mxu0 0
  %701 = vmatprep.subr.bf16.mxu0 0
  %702 = vmatpush1.bf16.msra.mxu0 0
  %703 = vmatprep.subr.bf16.mxu0 0
  %704 = vmatpush1.bf16.msra.mxu0 0
  %705 = vmatprep.subr.bf16.mxu0 0
  %706 = vmatpush1.bf16.msra.mxu0 0
  %707 = vmatprep.subr.bf16.mxu0 0
  %708 = vmatpush1.bf16.msra.mxu0 0
  %709 = vmatprep.mubr.bf16.mxu0 0
  %710 = vmatmul.mubr.bf16.gmra.mrb[0].mxu0 %v532
  %v711 = vpop.f32.mrb[0].mxu0
  %v712 = vadd.f32 %v537, %v711
  %v713 = vpop.f32.mrb[0].mxu0
  %v714 = vadd.f32 %v541, %v713
  %v715 = vpop.f32.mrb[0].mxu0
  %v716 = vpop.f32.mrb[0].mxu0
  %717 = vdwg.mxu0
  %718 = vmatprep.subr.bf16.mxu0 0
  %719 = vmatpush1.bf16.msra.mxu0 %v631
  %720 = vmatprep.subr.bf16.mxu0 0
  %721 = vmatpush1.bf16.msra.mxu0 %v634
  %722 = vmatprep.subr.bf16.mxu0 0
  %723 = vmatpush1.bf16.msra.mxu0 %v637
  %724 = vmatprep.subr.bf16.mxu0 0
  %725 = vmatpush1.bf16.msra.mxu0 %v640
  %726 = vmatprep.subr.bf16.mxu0 0
  %727 = vmatpush1.bf16.msra.mxu0 %v643
  %728 = vmatprep.subr.bf16.mxu0 0
  %729 = vmatpush1.bf16.msra.mxu0 %v646
  %730 = vmatprep.subr.bf16.mxu0 0
  %731 = vmatpush1.bf16.msra.mxu0 %v649
  %732 = vmatprep.subr.bf16.mxu0 0
  %733 = vmatpush1.bf16.msra.mxu0 %v652
  %734 = vmatprep.subr.bf16.mxu0 0
  %735 = vmatpush1.bf16.msra.mxu0 0
  %736 = vmatprep.subr.bf16.mxu0 0
  %737 = vmatpush1.bf16.msra.mxu0 0
  %738 = vmatprep.subr.bf16.mxu0 0
  %739 = vmatpush1.bf16.msra.mxu0 0
  %740 = vmatprep.subr.bf16.mxu0 0
  %741 = vmatpush1.bf16.msra.mxu0 0
  %742 = vmatprep.subr.bf16.mxu0 0
  %743 = vmatpush1.bf16.msra.mxu0 0
  %744 = vmatprep.subr.bf16.mxu0 0
  %745 = vmatpush1.bf16.msra.mxu0 0
  %746 = vmatprep.subr.bf16.mxu0 0
  %747 = vmatpush1.bf16.msra.mxu0 0
  %748 = vmatprep.subr.bf16.mxu0 0
  %749 = vmatpush1.bf16.msra.mxu0 0
  %750 = vmatprep.mubr.bf16.mxu0 0
  %751 = vmatmul.mubr.bf16.gmra.mrb[0].mxu0 %v532
  %v752 = vpop.f32.mrb[0].mxu0
  %v753 = vadd.f32 %v545, %v752
  %v754 = vpop.f32.mrb[0].mxu0
  %v755 = vpop.f32.mrb[0].mxu0
  %v756 = vpop.f32.mrb[0].mxu0
  %757 = vdwg.mxu0
  %v758 = vadd.f32 %v529, %v712
  %v759 = vxor.u32 %v758, 2147483648
  %v760 = vmul.f32 %v759, 1.442695
  %v761 = vpow.pop %v760
  %v762 = vadd.f32 %v761, 1.0
  %v763 = vrcp.pop %v762
  %v764 = vmul.f32 1.0, %v763
  %v765 = vadd.f32 %v530, %v714
  %v766 = vxor.u32 %v765, 2147483648
  %v767 = vmul.f32 %v766, 1.442695
  %v768 = vpow.pop %v767
  %v769 = vadd.f32 %v768, 1.0
  %v770 = vrcp.pop %v769
  %v771 = vmul.f32 1.0, %v770
  %v772 = vmul.f32 %v764, %v753
  %v773 = vadd.f32 %v531, %v772
  %v774 = vtanh.pop %v773
  %v775 = vsub.f32 1.0, %v771
  %v776 = vmul.f32 %v775, %v774
  %v777 = vmul.f32 %v771, %v526
  %v778 = vadd.f32 %v776, %v777
  %s779 = scalar_lea.vmem [#allocation2], 12
  %v780 = vld [vmem:[%s779] sm:$0xff]
  %v781 = vld [vmem:[%s779 + $0x8] sm:$0xf]
  %v782 = vunpack.c.l.bf16 %v780
  %v783 = vunpack.c.h.bf16 %v780
  %v784 = vunpack.c.l.bf16 %v781
  %v785 = vpack.c.bf16 %v778, %v778
  %786 = vmatprep.subr.bf16.mxu0 %v630
  %787 = vmatpush1.bf16.msra.mxu0 %v629
  %788 = vmatprep.subr.bf16.mxu0 %v633
  %789 = vmatpush1.bf16.msra.mxu0 %v632
  %790 = vmatprep.subr.bf16.mxu0 %v636
  %791 = vmatpush1.bf16.msra.mxu0 %v635
  %792 = vmatprep.subr.bf16.mxu0 %v639
  %793 = vmatpush1.bf16.msra.mxu0 %v638
  %794 = vmatprep.subr.bf16.mxu0 %v642
  %795 = vmatpush1.bf16.msra.mxu0 %v641
  %796 = vmatprep.subr.bf16.mxu0 %v645
  %797 = vmatpush1.bf16.msra.mxu0 %v644
  %798 = vmatprep.subr.bf16.mxu0 %v648
  %799 = vmatpush1.bf16.msra.mxu0 %v647
  %800 = vmatprep.subr.bf16.mxu0 %v651
  %801 = vmatpush1.bf16.msra.mxu0 %v650
  %802 = vmatprep.subr.bf16.mxu0 0
  %803 = vmatpush1.bf16.msra.mxu0 0
  %804 = vmatprep.subr.bf16.mxu0 0
  %805 = vmatpush1.bf16.msra.mxu0 0
  %806 = vmatprep.subr.bf16.mxu0 0
  %807 = vmatpush1.bf16.msra.mxu0 0
  %808 = vmatprep.subr.bf16.mxu0 0
  %809 = vmatpush1.bf16.msra.mxu0 0
  %810 = vmatprep.subr.bf16.mxu0 0
  %811 = vmatpush1.bf16.msra.mxu0 0
  %812 = vmatprep.subr.bf16.mxu0 0
  %813 = vmatpush1.bf16.msra.mxu0 0
  %814 = vmatprep.subr.bf16.mxu0 0
  %815 = vmatpush1.bf16.msra.mxu0 0
  %816 = vmatprep.subr.bf16.mxu0 0
  %817 = vmatpush1.bf16.msra.mxu0 0
  %818 = vmatprep.mubr.bf16.mxu0 0
  %819 = vmatmul.mubr.bf16.gmra.mrb[0].mxu0 %v785
  %v820 = vpop.f32.mrb[0].mxu0
  %v821 = vadd.f32 %v537, %v820
  %v822 = vpop.f32.mrb[0].mxu0
  %v823 = vadd.f32 %v541, %v822
  %v824 = vpop.f32.mrb[0].mxu0
  %v825 = vpop.f32.mrb[0].mxu0
  %826 = vdwg.mxu0
  %827 = vmatprep.subr.bf16.mxu0 0
  %828 = vmatpush1.bf16.msra.mxu0 %v631
  %829 = vmatprep.subr.bf16.mxu0 0
  %830 = vmatpush1.bf16.msra.mxu0 %v634
  %831 = vmatprep.subr.bf16.mxu0 0
  %832 = vmatpush1.bf16.msra.mxu0 %v637
  %833 = vmatprep.subr.bf16.mxu0 0
  %834 = vmatpush1.bf16.msra.mxu0 %v640
  %835 = vmatprep.subr.bf16.mxu0 0
  %836 = vmatpush1.bf16.msra.mxu0 %v643
  %837 = vmatprep.subr.bf16.mxu0 0
  %838 = vmatpush1.bf16.msra.mxu0 %v646
  %839 = vmatprep.subr.bf16.mxu0 0
  %840 = vmatpush1.bf16.msra.mxu0 %v649
  %841 = vmatprep.subr.bf16.mxu0 0
  %842 = vmatpush1.bf16.msra.mxu0 %v652
  %843 = vmatprep.subr.bf16.mxu0 0
  %844 = vmatpush1.bf16.msra.mxu0 0
  %845 = vmatprep.subr.bf16.mxu0 0
  %846 = vmatpush1.bf16.msra.mxu0 0
  %847 = vmatprep.subr.bf16.mxu0 0
  %848 = vmatpush1.bf16.msra.mxu0 0
  %849 = vmatprep.subr.bf16.mxu0 0
  %850 = vmatpush1.bf16.msra.mxu0 0
  %851 = vmatprep.subr.bf16.mxu0 0
  %852 = vmatpush1.bf16.msra.mxu0 0
  %853 = vmatprep.subr.bf16.mxu0 0
  %854 = vmatpush1.bf16.msra.mxu0 0
  %855 = vmatprep.subr.bf16.mxu0 0
  %856 = vmatpush1.bf16.msra.mxu0 0
  %857 = vmatprep.subr.bf16.mxu0 0
  %858 = vmatpush1.bf16.msra.mxu0 0
  %859 = vmatprep.mubr.bf16.mxu0 0
  %860 = vmatmul.mubr.bf16.gmra.mrb[0].mxu0 %v785
  %v861 = vpop.f32.mrb[0].mxu0
  %v862 = vadd.f32 %v545, %v861
  %v863 = vpop.f32.mrb[0].mxu0
  %v864 = vpop.f32.mrb[0].mxu0
  %v865 = vpop.f32.mrb[0].mxu0
  %866 = vdwg.mxu0
  %v867 = vadd.f32 %v782, %v821
  %v868 = vxor.u32 %v867, 2147483648
  %v869 = vmul.f32 %v868, 1.442695
  %v870 = vpow.pop %v869
  %v871 = vadd.f32 %v870, 1.0
  %v872 = vrcp.pop %v871
  %v873 = vmul.f32 1.0, %v872
  %v874 = vadd.f32 %v783, %v823
  %v875 = vxor.u32 %v874, 2147483648
  %v876 = vmul.f32 %v875, 1.442695
  %v877 = vpow.pop %v876
  %v878 = vadd.f32 %v877, 1.0
  %v879 = vrcp.pop %v878
  %v880 = vmul.f32 1.0, %v879
  %v881 = vmul.f32 %v873, %v862
  %v882 = vadd.f32 %v784, %v881
  %v883 = vtanh.pop %v882
  %v884 = vsub.f32 1.0, %v880
  %v885 = vmul.f32 %v884, %v883
  %v886 = vmul.f32 %v880, %v778
  %v887 = vadd.f32 %v885, %v886
  %s888 = scalar_lea.vmem [#allocation2], 24
  %v889 = vld [vmem:[%s888] sm:$0xff]
  %v890 = vld [vmem:[%s888 + $0x8] sm:$0xf]
  %v891 = vunpack.c.l.bf16 %v889
  %v892 = vunpack.c.h.bf16 %v889
  %v893 = vunpack.c.l.bf16 %v890
  %v894 = vpack.c.bf16 %v887, %v887
  %895 = vmatprep.subr.bf16.mxu0 %v630
  %896 = vmatpush1.bf16.msra.mxu0 %v629
  %897 = vmatprep.subr.bf16.mxu0 %v633
  %898 = vmatpush1.bf16.msra.mxu0 %v632
  %899 = vmatprep.subr.bf16.mxu0 %v636
  %900 = vmatpush1.bf16.msra.mxu0 %v635
  %901 = vmatprep.subr.bf16.mxu0 %v639
  %902 = vmatpush1.bf16.msra.mxu0 %v638
  %903 = vmatprep.subr.bf16.mxu0 %v642
  %904 = vmatpush1.bf16.msra.mxu0 %v641
  %905 = vmatprep.subr.bf16.mxu0 %v645
  %906 = vmatpush1.bf16.msra.mxu0 %v644
  %907 = vmatprep.subr.bf16.mxu0 %v648
  %908 = vmatpush1.bf16.msra.mxu0 %v647
  %909 = vmatprep.subr.bf16.mxu0 %v651
  %910 = vmatpush1.bf16.msra.mxu0 %v650
  %911 = vmatprep.subr.bf16.mxu0 0
  %912 = vmatpush1.bf16.msra.mxu0 0
  %913 = vmatprep.subr.bf16.mxu0 0
  %914 = vmatpush1.bf16.msra.mxu0 0
  %915 = vmatprep.subr.bf16.mxu0 0
  %916 = vmatpush1.bf16.msra.mxu0 0
  %917 = vmatprep.subr.bf16.mxu0 0
  %918 = vmatpush1.bf16.msra.mxu0 0
  %919 = vmatprep.subr.bf16.mxu0 0
  %920 = vmatpush1.bf16.msra.mxu0 0
  %921 = vmatprep.subr.bf16.mxu0 0
  %922 = vmatpush1.bf16.msra.mxu0 0
  %923 = vmatprep.subr.bf16.mxu0 0
  %924 = vmatpush1.bf16.msra.mxu0 0
  %925 = vmatprep.subr.bf16.mxu0 0
  %926 = vmatpush1.bf16.msra.mxu0 0
  %927 = vmatprep.mubr.bf16.mxu0 0
  %928 = vmatmul.mubr.bf16.gmra.mrb[0].mxu0 %v894
  %v929 = vpop.f32.mrb[0].mxu0
  %v930 = vadd.f32 %v537, %v929
  %v931 = vpop.f32.mrb[0].mxu0
  %v932 = vadd.f32 %v541, %v931
  %v933 = vpop.f32.mrb[0].mxu0
  %v934 = vpop.f32.mrb[0].mxu0
  %935 = vdwg.mxu0
  %936 = vmatprep.subr.bf16.mxu0 0
  %937 = vmatpush1.bf16.msra.mxu0 %v631
  %938 = vmatprep.subr.bf16.mxu0 0
  %939 = vmatpush1.bf16.msra.mxu0 %v634
  %940 = vmatprep.subr.bf16.mxu0 0
  %941 = vmatpush1.bf16.msra.mxu0 %v637
  %942 = vmatprep.subr.bf16.mxu0 0
  %943 = vmatpush1.bf16.msra.mxu0 %v640
  %944 = vmatprep.subr.bf16.mxu0 0
  %945 = vmatpush1.bf16.msra.mxu0 %v643
  %946 = vmatprep.subr.bf16.mxu0 0
  %947 = vmatpush1.bf16.msra.mxu0 %v646
  %948 = vmatprep.subr.bf16.mxu0 0
  %949 = vmatpush1.bf16.msra.mxu0 %v649
  %950 = vmatprep.subr.bf16.mxu0 0
  %951 = vmatpush1.bf16.msra.mxu0 %v652
  %952 = vmatprep.subr.bf16.mxu0 0
  %953 = vmatpush1.bf16.msra.mxu0 0
  %954 = vmatprep.subr.bf16.mxu0 0
  %955 = vmatpush1.bf16.msra.mxu0 0
  %956 = vmatprep.subr.bf16.mxu0 0
  %957 = vmatpush1.bf16.msra.mxu0 0
  %958 = vmatprep.subr.bf16.mxu0 0
  %959 = vmatpush1.bf16.msra.mxu0 0
  %960 = vmatprep.subr.bf16.mxu0 0
  %961 = vmatpush1.bf16.msra.mxu0 0
  %962 = vmatprep.subr.bf16.mxu0 0
  %963 = vmatpush1.bf16.msra.mxu0 0
  %964 = vmatprep.subr.bf16.mxu0 0
  %965 = vmatpush1.bf16.msra.mxu0 0
  %966 = vmatprep.subr.bf16.mxu0 0
  %967 = vmatpush1.bf16.msra.mxu0 0
  %968 = vmatprep.mubr.bf16.mxu0 0
  %969 = vmatmul.mubr.bf16.gmra.mrb[0].mxu0 %v894
  %v970 = vpop.f32.mrb[0].mxu0
  %v971 = vadd.f32 %v545, %v970
  %v972 = vpop.f32.mrb[0].mxu0
  %v973 = vpop.f32.mrb[0].mxu0
  %v974 = vpop.f32.mrb[0].mxu0
  %975 = vdwg.mxu0
  %v976 = vadd.f32 %v891, %v930
  %v977 = vxor.u32 %v976, 2147483648
  %v978 = vmul.f32 %v977, 1.442695
  %v979 = vpow.pop %v978
  %v980 = vadd.f32 %v979, 1.0
  %v981 = vrcp.pop %v980
  %v982 = vmul.f32 1.0, %v981
  %v983 = vadd.f32 %v892, %v932
  %v984 = vxor.u32 %v983, 2147483648
  %v985 = vmul.f32 %v984, 1.442695
  %v986 = vpow.pop %v985
  %v987 = vadd.f32 %v986, 1.0
  %v988 = vrcp.pop %v987
  %v989 = vmul.f32 1.0, %v988
  %v990 = vmul.f32 %v982, %v971
  %v991 = vadd.f32 %v893, %v990
  %v992 = vtanh.pop %v991
  %v993 = vsub.f32 1.0, %v989
  %v994 = vmul.f32 %v993, %v992
  %v995 = vmul.f32 %v989, %v887
  %v996 = vadd.f32 %v994, %v995
  %s997 = scalar_lea.vmem [#allocation2], 36
  %v998 = vld [vmem:[%s997] sm:$0xff]
  %v999 = vld [vmem:[%s997 + $0x8] sm:$0xf]
  %v1000 = vunpack.c.l.bf16 %v998
  %v1001 = vunpack.c.h.bf16 %v998
  %v1002 = vunpack.c.l.bf16 %v999
  %v1003 = vpack.c.bf16 %v996, %v996
  %1004 = vmatprep.subr.bf16.mxu0 %v630
  %1005 = vmatpush1.bf16.msra.mxu0 %v629
  %1006 = vmatprep.subr.bf16.mxu0 %v633
  %1007 = vmatpush1.bf16.msra.mxu0 %v632
  %1008 = vmatprep.subr.bf16.mxu0 %v636
  %1009 = vmatpush1.bf16.msra.mxu0 %v635
  %1010 = vmatprep.subr.bf16.mxu0 %v639
  %1011 = vmatpush1.bf16.msra.mxu0 %v638
  %1012 = vmatprep.subr.bf16.mxu0 %v642
  %1013 = vmatpush1.bf16.msra.mxu0 %v641
  %1014 = vmatprep.subr.bf16.mxu0 %v645
  %1015 = vmatpush1.bf16.msra.mxu0 %v644
  %1016 = vmatprep.subr.bf16.mxu0 %v648
  %1017 = vmatpush1.bf16.msra.mxu0 %v647
  %1018 = vmatprep.subr.bf16.mxu0 %v651
  %1019 = vmatpush1.bf16.msra.mxu0 %v650
  %1020 = vmatprep.subr.bf16.mxu0 0
  %1021 = vmatpush1.bf16.msra.mxu0 0
  %1022 = vmatprep.subr.bf16.mxu0 0
  %1023 = vmatpush1.bf16.msra.mxu0 0
  %1024 = vmatprep.subr.bf16.mxu0 0
  %1025 = vmatpush1.bf16.msra.mxu0 0
  %1026 = vmatprep.subr.bf16.mxu0 0
  %1027 = vmatpush1.bf16.msra.mxu0 0
  %1028 = vmatprep.subr.bf16.mxu0 0
  %1029 = vmatpush1.bf16.msra.mxu0 0
  %1030 = vmatprep.subr.bf16.mxu0 0
  %1031 = vmatpush1.bf16.msra.mxu0 0
  %1032 = vmatprep.subr.bf16.mxu0 0
  %1033 = vmatpush1.bf16.msra.mxu0 0
  %1034 = vmatprep.subr.bf16.mxu0 0
  %1035 = vmatpush1.bf16.msra.mxu0 0
  %1036 = vmatprep.mubr.bf16.mxu0 0
  %1037 = vmatmul.mubr.bf16.gmra.mrb[0].mxu0 %v1003
  %v1038 = vpop.f32.mrb[0].mxu0
  %v1039 = vadd.f32 %v537, %v1038
  %v1040 = vpop.f32.mrb[0].mxu0
  %v1041 = vadd.f32 %v541, %v1040
  %v1042 = vpop.f32.mrb[0].mxu0
  %v1043 = vpop.f32.mrb[0].mxu0
  %1044 = vdwg.mxu0
  %1045 = vmatprep.subr.bf16.mxu0 0
  %1046 = vmatpush1.bf16.msra.mxu0 %v631
  %1047 = vmatprep.subr.bf16.mxu0 0
  %1048 = vmatpush1.bf16.msra.mxu0 %v634
  %1049 = vmatprep.subr.bf16.mxu0 0
  %1050 = vmatpush1.bf16.msra.mxu0 %v637
  %1051 = vmatprep.subr.bf16.mxu0 0
  %1052 = vmatpush1.bf16.msra.mxu0 %v640
  %1053 = vmatprep.subr.bf16.mxu0 0
  %1054 = vmatpush1.bf16.msra.mxu0 %v643
  %1055 = vmatprep.subr.bf16.mxu0 0
  %1056 = vmatpush1.bf16.msra.mxu0 %v646
  %1057 = vmatprep.subr.bf16.mxu0 0
  %1058 = vmatpush1.bf16.msra.mxu0 %v649
  %1059 = vmatprep.subr.bf16.mxu0 0
  %1060 = vmatpush1.bf16.msra.mxu0 %v652
  %1061 = vmatprep.subr.bf16.mxu0 0
  %1062 = vmatpush1.bf16.msra.mxu0 0
  %1063 = vmatprep.subr.bf16.mxu0 0
  %1064 = vmatpush1.bf16.msra.mxu0 0
  %1065 = vmatprep.subr.bf16.mxu0 0
  %1066 = vmatpush1.bf16.msra.mxu0 0
  %1067 = vmatprep.subr.bf16.mxu0 0
  %1068 = vmatpush1.bf16.msra.mxu0 0
  %1069 = vmatprep.subr.bf16.mxu0 0
  %1070 = vmatpush1.bf16.msra.mxu0 0
  %1071 = vmatprep.subr.bf16.mxu0 0
  %1072 = vmatpush1.bf16.msra.mxu0 0
  %1073 = vmatprep.subr.bf16.mxu0 0
  %1074 = vmatpush1.bf16.msra.mxu0 0
  %1075 = vmatprep.subr.bf16.mxu0 0
  %1076 = vmatpush1.bf16.msra.mxu0 0
  %1077 = vmatprep.mubr.bf16.mxu0 0
  %1078 = vmatmul.mubr.bf16.gmra.mrb[0].mxu0 %v1003
  %v1079 = vpop.f32.mrb[0].mxu0
  %v1080 = vadd.f32 %v545, %v1079
  %v1081 = vpop.f32.mrb[0].mxu0
  %v1082 = vpop.f32.mrb[0].mxu0
  %v1083 = vpop.f32.mrb[0].mxu0
  %1084 = vdwg.mxu0
  %v1085 = vadd.f32 %v1000, %v1039
  %v1086 = vxor.u32 %v1085, 2147483648
  %v1087 = vmul.f32 %v1086, 1.442695
  %v1088 = vpow.pop %v1087
  %v1089 = vadd.f32 %v1088, 1.0
  %v1090 = vrcp.pop %v1089
  %v1091 = vmul.f32 1.0, %v1090
  %v1092 = vadd.f32 %v1001, %v1041
  %v1093 = vxor.u32 %v1092, 2147483648
  %v1094 = vmul.f32 %v1093, 1.442695
  %v1095 = vpow.pop %v1094
  %v1096 = vadd.f32 %v1095, 1.0
  %v1097 = vrcp.pop %v1096
  %v1098 = vmul.f32 1.0, %v1097
  %v1099 = vmul.f32 %v1091, %v1080
  %v1100 = vadd.f32 %v1002, %v1099
  %v1101 = vtanh.pop %v1100
  %v1102 = vsub.f32 1.0, %v1098
  %v1103 = vmul.f32 %v1102, %v1101
  %v1104 = vmul.f32 %v1098, %v996
  %v1105 = vadd.f32 %v1103, %v1104
  %s1106 = scalar_lea.vmem [#allocation2], 48
  %v1107 = vld [vmem:[%s1106] sm:$0xff]
  %v1108 = vld [vmem:[%s1106 + $0x8] sm:$0xf]
  %v1109 = vunpack.c.l.bf16 %v1107
  %v1110 = vunpack.c.h.bf16 %v1107
  %v1111 = vunpack.c.l.bf16 %v1108
  %v1112 = vpack.c.bf16 %v1105, %v1105
  %1113 = vmatprep.subr.bf16.mxu0 %v630
  %1114 = vmatpush1.bf16.msra.mxu0 %v629
  %1115 = vmatprep.subr.bf16.mxu0 %v633
  %1116 = vmatpush1.bf16.msra.mxu0 %v632
  %1117 = vmatprep.subr.bf16.mxu0 %v636
  %1118 = vmatpush1.bf16.msra.mxu0 %v635
  %1119 = vmatprep.subr.bf16.mxu0 %v639
  %1120 = vmatpush1.bf16.msra.mxu0 %v638
  %1121 = vmatprep.subr.bf16.mxu0 %v642
  %1122 = vmatpush1.bf16.msra.mxu0 %v641
  %1123 = vmatprep.subr.bf16.mxu0 %v645
  %1124 = vmatpush1.bf16.msra.mxu0 %v644
  %1125 = vmatprep.subr.bf16.mxu0 %v648
  %1126 = vmatpush1.bf16.msra.mxu0 %v647
  %1127 = vmatprep.subr.bf16.mxu0 %v651
  %1128 = vmatpush1.bf16.msra.mxu0 %v650
  %1129 = vmatprep.subr.bf16.mxu0 0
  %1130 = vmatpush1.bf16.msra.mxu0 0
  %1131 = vmatprep.subr.bf16.mxu0 0
  %1132 = vmatpush1.bf16.msra.mxu0 0
  %1133 = vmatprep.subr.bf16.mxu0 0
  %1134 = vmatpush1.bf16.msra.mxu0 0
  %1135 = vmatprep.subr.bf16.mxu0 0
  %1136 = vmatpush1.bf16.msra.mxu0 0
  %1137 = vmatprep.subr.bf16.mxu0 0
  %1138 = vmatpush1.bf16.msra.mxu0 0
  %1139 = vmatprep.subr.bf16.mxu0 0
  %1140 = vmatpush1.bf16.msra.mxu0 0
  %1141 = vmatprep.subr.bf16.mxu0 0
  %1142 = vmatpush1.bf16.msra.mxu0 0
  %1143 = vmatprep.subr.bf16.mxu0 0
  %1144 = vmatpush1.bf16.msra.mxu0 0
  %1145 = vmatprep.mubr.bf16.mxu0 0
  %1146 = vmatmul.mubr.bf16.gmra.mrb[0].mxu0 %v1112
  %v1147 = vpop.f32.mrb[0].mxu0
  %v1148 = vadd.f32 %v537, %v1147
  %v1149 = vpop.f32.mrb[0].mxu0
  %v1150 = vadd.f32 %v541, %v1149
  %v1151 = vpop.f32.mrb[0].mxu0
  %v1152 = vpop.f32.mrb[0].mxu0
  %1153 = vdwg.mxu0
  %1154 = vmatprep.subr.bf16.mxu0 0
  %1155 = vmatpush1.bf16.msra.mxu0 %v631
  %1156 = vmatprep.subr.bf16.mxu0 0
  %1157 = vmatpush1.bf16.msra.mxu0 %v634
  %1158 = vmatprep.subr.bf16.mxu0 0
  %1159 = vmatpush1.bf16.msra.mxu0 %v637
  %1160 = vmatprep.subr.bf16.mxu0 0
  %1161 = vmatpush1.bf16.msra.mxu0 %v640
  %1162 = vmatprep.subr.bf16.mxu0 0
  %1163 = vmatpush1.bf16.msra.mxu0 %v643
  %1164 = vmatprep.subr.bf16.mxu0 0
  %1165 = vmatpush1.bf16.msra.mxu0 %v646
  %1166 = vmatprep.subr.bf16.mxu0 0
  %1167 = vmatpush1.bf16.msra.mxu0 %v649
  %1168 = vmatprep.subr.bf16.mxu0 0
  %1169 = vmatpush1.bf16.msra.mxu0 %v652
  %1170 = vmatprep.subr.bf16.mxu0 0
  %1171 = vmatpush1.bf16.msra.mxu0 0
  %1172 = vmatprep.subr.bf16.mxu0 0
  %1173 = vmatpush1.bf16.msra.mxu0 0
  %1174 = vmatprep.subr.bf16.mxu0 0
  %1175 = vmatpush1.bf16.msra.mxu0 0
  %1176 = vmatprep.subr.bf16.mxu0 0
  %1177 = vmatpush1.bf16.msra.mxu0 0
  %1178 = vmatprep.subr.bf16.mxu0 0
  %1179 = vmatpush1.bf16.msra.mxu0 0
  %1180 = vmatprep.subr.bf16.mxu0 0
  %1181 = vmatpush1.bf16.msra.mxu0 0
  %1182 = vmatprep.subr.bf16.mxu0 0
  %1183 = vmatpush1.bf16.msra.mxu0 0
  %1184 = vmatprep.subr.bf16.mxu0 0
  %1185 = vmatpush1.bf16.msra.mxu0 0
  %1186 = vmatprep.mubr.bf16.mxu0 0
  %1187 = vmatmul.mubr.bf16.gmra.mrb[0].mxu0 %v1112
  %v1188 = vpop.f32.mrb[0].mxu0
  %v1189 = vadd.f32 %v545, %v1188
  %v1190 = vpop.f32.mrb[0].mxu0
  %v1191 = vpop.f32.mrb[0].mxu0
  %v1192 = vpop.f32.mrb[0].mxu0
  %1193 = vdwg.mxu0
  %v1194 = vadd.f32 %v1109, %v1148
  %v1195 = vxor.u32 %v1194, 2147483648
  %v1196 = vmul.f32 %v1195, 1.442695
  %v1197 = vpow.pop %v1196
  %v1198 = vadd.f32 %v1197, 1.0
  %v1199 = vrcp.pop %v1198
  %v1200 = vmul.f32 1.0, %v1199
  %v1201 = vadd.f32 %v1110, %v1150
  %v1202 = vxor.u32 %v1201, 2147483648
  %v1203 = vmul.f32 %v1202, 1.442695
  %v1204 = vpow.pop %v1203
  %v1205 = vadd.f32 %v1204, 1.0
  %v1206 = vrcp.pop %v1205
  %v1207 = vmul.f32 1.0, %v1206
  %v1208 = vmul.f32 %v1200, %v1189
  %v1209 = vadd.f32 %v1111, %v1208
  %v1210 = vtanh.pop %v1209
  %v1211 = vsub.f32 1.0, %v1207
  %v1212 = vmul.f32 %v1211, %v1210
  %v1213 = vmul.f32 %v1207, %v1105
  %v1214 = vadd.f32 %v1212, %v1213
  %s1215 = scalar_lea.vmem [#allocation2], 60
  %v1216 = vld [vmem:[%s1215] sm:$0xff]
  %v1217 = vld [vmem:[%s1215 + $0x8] sm:$0xf]
  %v1218 = vunpack.c.l.bf16 %v1216
  %v1219 = vunpack.c.h.bf16 %v1216
  %v1220 = vunpack.c.l.bf16 %v1217
  %v1221 = vpack.c.bf16 %v1214, %v1214
  %1222 = vmatprep.subr.bf16.mxu0 %v630
  %1223 = vmatpush1.bf16.msra.mxu0 %v629
  %1224 = vmatprep.subr.bf16.mxu0 %v633
  %1225 = vmatpush1.bf16.msra.mxu0 %v632
  %1226 = vmatprep.subr.bf16.mxu0 %v636
  %1227 = vmatpush1.bf16.msra.mxu0 %v635
  %1228 = vmatprep.subr.bf16.mxu0 %v639
  %1229 = vmatpush1.bf16.msra.mxu0 %v638
  %1230 = vmatprep.subr.bf16.mxu0 %v642
  %1231 = vmatpush1.bf16.msra.mxu0 %v641
  %1232 = vmatprep.subr.bf16.mxu0 %v645
  %1233 = vmatpush1.bf16.msra.mxu0 %v644
  %1234 = vmatprep.subr.bf16.mxu0 %v648
  %1235 = vmatpush1.bf16.msra.mxu0 %v647
  %1236 = vmatprep.subr.bf16.mxu0 %v651
  %1237 = vmatpush1.bf16.msra.mxu0 %v650
  %1238 = vmatprep.subr.bf16.mxu0 0
  %1239 = vmatpush1.bf16.msra.mxu0 0
  %1240 = vmatprep.subr.bf16.mxu0 0
  %1241 = vmatpush1.bf16.msra.mxu0 0
  %1242 = vmatprep.subr.bf16.mxu0 0
  %1243 = vmatpush1.bf16.msra.mxu0 0
  %1244 = vmatprep.subr.bf16.mxu0 0
  %1245 = vmatpush1.bf16.msra.mxu0 0
  %1246 = vmatprep.subr.bf16.mxu0 0
  %1247 = vmatpush1.bf16.msra.mxu0 0
  %1248 = vmatprep.subr.bf16.mxu0 0
  %1249 = vmatpush1.bf16.msra.mxu0 0
  %1250 = vmatprep.subr.bf16.mxu0 0
  %1251 = vmatpush1.bf16.msra.mxu0 0
  %1252 = vmatprep.subr.bf16.mxu0 0
  %1253 = vmatpush1.bf16.msra.mxu0 0
  %1254 = vmatprep.mubr.bf16.mxu0 0
  %1255 = vmatmul.mubr.bf16.gmra.mrb[0].mxu0 %v1221
  %v1256 = vpop.f32.mrb[0].mxu0
  %v1257 = vadd.f32 %v537, %v1256
  %v1258 = vpop.f32.mrb[0].mxu0
  %v1259 = vadd.f32 %v541, %v1258
  %v1260 = vpop.f32.mrb[0].mxu0
  %v1261 = vpop.f32.mrb[0].mxu0
  %1262 = vdwg.mxu0
  %1263 = vmatprep.subr.bf16.mxu0 0
  %1264 = vmatpush1.bf16.msra.mxu0 %v631
  %1265 = vmatprep.subr.bf16.mxu0 0
  %1266 = vmatpush1.bf16.msra.mxu0 %v634
  %1267 = vmatprep.subr.bf16.mxu0 0
  %1268 = vmatpush1.bf16.msra.mxu0 %v637
  %1269 = vmatprep.subr.bf16.mxu0 0
  %1270 = vmatpush1.bf16.msra.mxu0 %v640
  %1271 = vmatprep.subr.bf16.mxu0 0
  %1272 = vmatpush1.bf16.msra.mxu0 %v643
  %1273 = vmatprep.subr.bf16.mxu0 0
  %1274 = vmatpush1.bf16.msra.mxu0 %v646
  %1275 = vmatprep.subr.bf16.mxu0 0
  %1276 = vmatpush1.bf16.msra.mxu0 %v649
  %1277 = vmatprep.subr.bf16.mxu0 0
  %1278 = vmatpush1.bf16.msra.mxu0 %v652
  %1279 = vmatprep.subr.bf16.mxu0 0
  %1280 = vmatpush1.bf16.msra.mxu0 0
  %1281 = vmatprep.subr.bf16.mxu0 0
  %1282 = vmatpush1.bf16.msra.mxu0 0
  %1283 = vmatprep.subr.bf16.mxu0 0
  %1284 = vmatpush1.bf16.msra.mxu0 0
  %1285 = vmatprep.subr.bf16.mxu0 0
  %1286 = vmatpush1.bf16.msra.mxu0 0
  %1287 = vmatprep.subr.bf16.mxu0 0
  %1288 = vmatpush1.bf16.msra.mxu0 0
  %1289 = vmatprep.subr.bf16.mxu0 0
  %1290 = vmatpush1.bf16.msra.mxu0 0
  %1291 = vmatprep.subr.bf16.mxu0 0
  %1292 = vmatpush1.bf16.msra.mxu0 0
  %1293 = vmatprep.subr.bf16.mxu0 0
  %1294 = vmatpush1.bf16.msra.mxu0 0
  %1295 = vmatprep.mubr.bf16.mxu0 0
  %1296 = vmatmul.mubr.bf16.gmra.mrb[0].mxu0 %v1221
  %v1297 = vpop.f32.mrb[0].mxu0
  %v1298 = vadd.f32 %v545, %v1297
  %v1299 = vpop.f32.mrb[0].mxu0
  %v1300 = vpop.f32.mrb[0].mxu0
  %v1301 = vpop.f32.mrb[0].mxu0
  %1302 = vdwg.mxu0
  %v1303 = vadd.f32 %v1218, %v1257
  %v1304 = vxor.u32 %v1303, 2147483648
  %v1305 = vmul.f32 %v1304, 1.442695
  %v1306 = vpow.pop %v1305
  %v1307 = vadd.f32 %v1306, 1.0
  %v1308 = vrcp.pop %v1307
  %v1309 = vmul.f32 1.0, %v1308
  %v1310 = vadd.f32 %v1219, %v1259
  %v1311 = vxor.u32 %v1310, 2147483648
  %v1312 = vmul.f32 %v1311, 1.442695
  %v1313 = vpow.pop %v1312
  %v1314 = vadd.f32 %v1313, 1.0
  %v1315 = vrcp.pop %v1314
  %v1316 = vmul.f32 1.0, %v1315
  %v1317 = vmul.f32 %v1309, %v1298
  %v1318 = vadd.f32 %v1220, %v1317
  %v1319 = vtanh.pop %v1318
  %v1320 = vsub.f32 1.0, %v1316
  %v1321 = vmul.f32 %v1320, %v1319
  %v1322 = vmul.f32 %v1316, %v1214
  %v1323 = vadd.f32 %v1321, %v1322
  %s1324 = scalar_lea.vmem [#allocation2], 72
  %v1325 = vld [vmem:[%s1324] sm:$0xff]
  %v1326 = vld [vmem:[%s1324 + $0x8] sm:$0xf]
  %v1327 = vunpack.c.l.bf16 %v1325
  %v1328 = vunpack.c.h.bf16 %v1325
  %v1329 = vunpack.c.l.bf16 %v1326
  %v1330 = vpack.c.bf16 %v1323, %v1323
  %1331 = vmatprep.subr.bf16.mxu0 %v630
  %1332 = vmatpush1.bf16.msra.mxu0 %v629
  %1333 = vmatprep.subr.bf16.mxu0 %v633
  %1334 = vmatpush1.bf16.msra.mxu0 %v632
  %1335 = vmatprep.subr.bf16.mxu0 %v636
  %1336 = vmatpush1.bf16.msra.mxu0 %v635
  %1337 = vmatprep.subr.bf16.mxu0 %v639
  %1338 = vmatpush1.bf16.msra.mxu0 %v638
  %1339 = vmatprep.subr.bf16.mxu0 %v642
  %1340 = vmatpush1.bf16.msra.mxu0 %v641
  %1341 = vmatprep.subr.bf16.mxu0 %v645
  %1342 = vmatpush1.bf16.msra.mxu0 %v644
  %1343 = vmatprep.subr.bf16.mxu0 %v648
  %1344 = vmatpush1.bf16.msra.mxu0 %v647
  %1345 = vmatprep.subr.bf16.mxu0 %v651
  %1346 = vmatpush1.bf16.msra.mxu0 %v650
  %1347 = vmatprep.subr.bf16.mxu0 0
  %1348 = vmatpush1.bf16.msra.mxu0 0
  %1349 = vmatprep.subr.bf16.mxu0 0
  %1350 = vmatpush1.bf16.msra.mxu0 0
  %1351 = vmatprep.subr.bf16.mxu0 0
  %1352 = vmatpush1.bf16.msra.mxu0 0
  %1353 = vmatprep.subr.bf16.mxu0 0
  %1354 = vmatpush1.bf16.msra.mxu0 0
  %1355 = vmatprep.subr.bf16.mxu0 0
  %1356 = vmatpush1.bf16.msra.mxu0 0
  %1357 = vmatprep.subr.bf16.mxu0 0
  %1358 = vmatpush1.bf16.msra.mxu0 0
  %1359 = vmatprep.subr.bf16.mxu0 0
  %1360 = vmatpush1.bf16.msra.mxu0 0
  %1361 = vmatprep.subr.bf16.mxu0 0
  %1362 = vmatpush1.bf16.msra.mxu0 0
  %1363 = vmatprep.mubr.bf16.mxu0 0
  %1364 = vmatmul.mubr.bf16.gmra.mrb[0].mxu0 %v1330
  %v1365 = vpop.f32.mrb[0].mxu0
  %v1366 = vadd.f32 %v537, %v1365
  %v1367 = vpop.f32.mrb[0].mxu0
  %v1368 = vadd.f32 %v541, %v1367
  %v1369 = vpop.f32.mrb[0].mxu0
  %v1370 = vpop.f32.mrb[0].mxu0
  %1371 = vdwg.mxu0
  %1372 = vmatprep.subr.bf16.mxu0 0
  %1373 = vmatpush1.bf16.msra.mxu0 %v631
  %1374 = vmatprep.subr.bf16.mxu0 0
  %1375 = vmatpush1.bf16.msra.mxu0 %v634
  %1376 = vmatprep.subr.bf16.mxu0 0
  %1377 = vmatpush1.bf16.msra.mxu0 %v637
  %1378 = vmatprep.subr.bf16.mxu0 0
  %1379 = vmatpush1.bf16.msra.mxu0 %v640
  %1380 = vmatprep.subr.bf16.mxu0 0
  %1381 = vmatpush1.bf16.msra.mxu0 %v643
  %1382 = vmatprep.subr.bf16.mxu0 0
  %1383 = vmatpush1.bf16.msra.mxu0 %v646
  %1384 = vmatprep.subr.bf16.mxu0 0
  %1385 = vmatpush1.bf16.msra.mxu0 %v649
  %1386 = vmatprep.subr.bf16.mxu0 0
  %1387 = vmatpush1.bf16.msra.mxu0 %v652
  %1388 = vmatprep.subr.bf16.mxu0 0
  %1389 = vmatpush1.bf16.msra.mxu0 0
  %1390 = vmatprep.subr.bf16.mxu0 0
  %1391 = vmatpush1.bf16.msra.mxu0 0
  %1392 = vmatprep.subr.bf16.mxu0 0
  %1393 = vmatpush1.bf16.msra.mxu0 0
  %1394 = vmatprep.subr.bf16.mxu0 0
  %1395 = vmatpush1.bf16.msra.mxu0 0
  %1396 = vmatprep.subr.bf16.mxu0 0
  %1397 = vmatpush1.bf16.msra.mxu0 0
  %1398 = vmatprep.subr.bf16.mxu0 0
  %1399 = vmatpush1.bf16.msra.mxu0 0
  %1400 = vmatprep.subr.bf16.mxu0 0
  %1401 = vmatpush1.bf16.msra.mxu0 0
  %1402 = vmatprep.subr.bf16.mxu0 0
  %1403 = vmatpush1.bf16.msra.mxu0 0
  %1404 = vmatprep.mubr.bf16.mxu0 0
  %1405 = vmatmul.mubr.bf16.gmra.mrb[0].mxu0 %v1330
  %v1406 = vpop.f32.mrb[0].mxu0
  %v1407 = vadd.f32 %v545, %v1406
  %v1408 = vpop.f32.mrb[0].mxu0
  %v1409 = vpop.f32.mrb[0].mxu0
  %v1410 = vpop.f32.mrb[0].mxu0
  %1411 = vdwg.mxu0
  %v1412 = vadd.f32 %v1327, %v1366
  %v1413 = vxor.u32 %v1412, 2147483648
  %v1414 = vmul.f32 %v1413, 1.442695
  %v1415 = vpow.pop %v1414
  %v1416 = vadd.f32 %v1415, 1.0
  %v1417 = vrcp.pop %v1416
  %v1418 = vmul.f32 1.0, %v1417
  %v1419 = vadd.f32 %v1328, %v1368
  %v1420 = vxor.u32 %v1419, 2147483648
  %v1421 = vmul.f32 %v1420, 1.442695
  %v1422 = vpow.pop %v1421
  %v1423 = vadd.f32 %v1422, 1.0
  %v1424 = vrcp.pop %v1423
  %v1425 = vmul.f32 1.0, %v1424
  %v1426 = vmul.f32 %v1418, %v1407
  %v1427 = vadd.f32 %v1329, %v1426
  %v1428 = vtanh.pop %v1427
  %v1429 = vsub.f32 1.0, %v1425
  %v1430 = vmul.f32 %v1429, %v1428
  %v1431 = vmul.f32 %v1425, %v1323
  %v1432 = vadd.f32 %v1430, %v1431
  %s1433 = scalar_lea.vmem [#allocation2], 84
  %v1434 = vld [vmem:[%s1433] sm:$0xff]
  %v1435 = vld [vmem:[%s1433 + $0x8] sm:$0xf]
  %v1436 = vunpack.c.l.bf16 %v1434
  %v1437 = vunpack.c.h.bf16 %v1434
  %v1438 = vunpack.c.l.bf16 %v1435
  %v1439 = vpack.c.bf16 %v1432, %v1432
  %1440 = vmatprep.subr.bf16.mxu0 %v630
  %1441 = vmatpush1.bf16.msra.mxu0 %v629
  %1442 = vmatprep.subr.bf16.mxu0 %v633
  %1443 = vmatpush1.bf16.msra.mxu0 %v632
  %1444 = vmatprep.subr.bf16.mxu0 %v636
  %1445 = vmatpush1.bf16.msra.mxu0 %v635
  %1446 = vmatprep.subr.bf16.mxu0 %v639
  %1447 = vmatpush1.bf16.msra.mxu0 %v638
  %1448 = vmatprep.subr.bf16.mxu0 %v642
  %1449 = vmatpush1.bf16.msra.mxu0 %v641
  %1450 = vmatprep.subr.bf16.mxu0 %v645
  %1451 = vmatpush1.bf16.msra.mxu0 %v644
  %1452 = vmatprep.subr.bf16.mxu0 %v648
  %1453 = vmatpush1.bf16.msra.mxu0 %v647
  %1454 = vmatprep.subr.bf16.mxu0 %v651
  %1455 = vmatpush1.bf16.msra.mxu0 %v650
  %1456 = vmatprep.subr.bf16.mxu0 0
  %1457 = vmatpush1.bf16.msra.mxu0 0
  %1458 = vmatprep.subr.bf16.mxu0 0
  %1459 = vmatpush1.bf16.msra.mxu0 0
  %1460 = vmatprep.subr.bf16.mxu0 0
  %1461 = vmatpush1.bf16.msra.mxu0 0
  %1462 = vmatprep.subr.bf16.mxu0 0
  %1463 = vmatpush1.bf16.msra.mxu0 0
  %1464 = vmatprep.subr.bf16.mxu0 0
  %1465 = vmatpush1.bf16.msra.mxu0 0
  %1466 = vmatprep.subr.bf16.mxu0 0
  %1467 = vmatpush1.bf16.msra.mxu0 0
  %1468 = vmatprep.subr.bf16.mxu0 0
  %1469 = vmatpush1.bf16.msra.mxu0 0
  %1470 = vmatprep.subr.bf16.mxu0 0
  %1471 = vmatpush1.bf16.msra.mxu0 0
  %1472 = vmatprep.mubr.bf16.mxu0 0
  %1473 = vmatmul.mubr.bf16.gmra.mrb[0].mxu0 %v1439
  %v1474 = vpop.f32.mrb[0].mxu0
  %v1475 = vadd.f32 %v537, %v1474
  %v1476 = vpop.f32.mrb[0].mxu0
  %v1477 = vadd.f32 %v541, %v1476
  %v1478 = vpop.f32.mrb[0].mxu0
  %v1479 = vpop.f32.mrb[0].mxu0
  %1480 = vdwg.mxu0
  %1481 = vmatprep.subr.bf16.mxu0 0
  %1482 = vmatpush1.bf16.msra.mxu0 %v631
  %1483 = vmatprep.subr.bf16.mxu0 0
  %1484 = vmatpush1.bf16.msra.mxu0 %v634
  %1485 = vmatprep.subr.bf16.mxu0 0
  %1486 = vmatpush1.bf16.msra.mxu0 %v637
  %1487 = vmatprep.subr.bf16.mxu0 0
  %1488 = vmatpush1.bf16.msra.mxu0 %v640
  %1489 = vmatprep.subr.bf16.mxu0 0
  %1490 = vmatpush1.bf16.msra.mxu0 %v643
  %1491 = vmatprep.subr.bf16.mxu0 0
  %1492 = vmatpush1.bf16.msra.mxu0 %v646
  %1493 = vmatprep.subr.bf16.mxu0 0
  %1494 = vmatpush1.bf16.msra.mxu0 %v649
  %1495 = vmatprep.subr.bf16.mxu0 0
  %1496 = vmatpush1.bf16.msra.mxu0 %v652
  %1497 = vmatprep.subr.bf16.mxu0 0
  %1498 = vmatpush1.bf16.msra.mxu0 0
  %1499 = vmatprep.subr.bf16.mxu0 0
  %1500 = vmatpush1.bf16.msra.mxu0 0
  %1501 = vmatprep.subr.bf16.mxu0 0
  %1502 = vmatpush1.bf16.msra.mxu0 0
  %1503 = vmatprep.subr.bf16.mxu0 0
  %1504 = vmatpush1.bf16.msra.mxu0 0
  %1505 = vmatprep.subr.bf16.mxu0 0
  %1506 = vmatpush1.bf16.msra.mxu0 0
  %1507 = vmatprep.subr.bf16.mxu0 0
  %1508 = vmatpush1.bf16.msra.mxu0 0
  %1509 = vmatprep.subr.bf16.mxu0 0
  %1510 = vmatpush1.bf16.msra.mxu0 0
  %1511 = vmatprep.subr.bf16.mxu0 0
  %1512 = vmatpush1.bf16.msra.mxu0 0
  %1513 = vmatprep.mubr.bf16.mxu0 0
  %1514 = vmatmul.mubr.bf16.gmra.mrb[0].mxu0 %v1439
  %v1515 = vpop.f32.mrb[0].mxu0
  %v1516 = vadd.f32 %v545, %v1515
  %v1517 = vpop.f32.mrb[0].mxu0
  %v1518 = vpop.f32.mrb[0].mxu0
  %v1519 = vpop.f32.mrb[0].mxu0
  %1520 = vdwg.mxu0
  %v1521 = vadd.f32 %v1436, %v1475
  %v1522 = vxor.u32 %v1521, 2147483648
  %v1523 = vmul.f32 %v1522, 1.442695
  %v1524 = vpow.pop %v1523
  %v1525 = vadd.f32 %v1524, 1.0
  %v1526 = vrcp.pop %v1525
  %v1527 = vmul.f32 1.0, %v1526
  %v1528 = vadd.f32 %v1437, %v1477
  %v1529 = vxor.u32 %v1528, 2147483648
  %v1530 = vmul.f32 %v1529, 1.442695
  %v1531 = vpow.pop %v1530
  %v1532 = vadd.f32 %v1531, 1.0
  %v1533 = vrcp.pop %v1532
  %v1534 = vmul.f32 1.0, %v1533
  %v1535 = vmul.f32 %v1527, %v1516
  %v1536 = vadd.f32 %v1438, %v1535
  %v1537 = vtanh.pop %v1536
  %v1538 = vsub.f32 1.0, %v1534
  %v1539 = vmul.f32 %v1538, %v1537
  %v1540 = vmul.f32 %v1534, %v1432
  %v1541 = vadd.f32 %v1539, %v1540
  %1542 = vst [vmem:[%s5] sm:$0xff] %v1541
  // Predicated region
  $region26: #{dual_encoder_forward.3} parent=0 // pred_check
    _
  $region27: #{dual_encoder_forward.3} parent=0 // pred_check_branch
    %1544 = sbr.rel (0) target = $region29
  $region28: #{dual_encoder_forward.3} parent=0 // pred_region
    _
  $region29: #{dual_encoder_forward.3} parent=0 // pred_fallthru
    _
  // Predicated region
  $region30: #{dual_encoder_forward.3} parent=0 // pred_check
    _
  $region31: #{dual_encoder_forward.3} parent=0 // pred_check_branch
    %1546 = sbr.rel (0) target = $region33
  $region32: #{dual_encoder_forward.3} parent=0 // pred_region
    _
  $region33: #{dual_encoder_forward.3} parent=0 // pred_fallthru
    _

</llo_original>
